<compile_context>
chip_gen: v5e
topology: v5e:2x2
jax: 0.10.0
libtpu: 0.0.40
codegen_flags: <defaults>
</compile_context>

<pallas_src>
import functools
import math

import jax
import jax.numpy as jnp
from jax import lax
from jax.experimental import pallas as pl
from jax.experimental.pallas import tpu as pltpu

_MIB = 1 << 20


# ------------------------------- helpers -----------------------------------

def _nbytes(shape, dtype):
    return math.prod(shape) * jnp.dtype(dtype).itemsize


def _compiler_params(sem, block_bytes):
    """Per-kernel CompilerParams with an explicit scoped-VMEM budget.

    Default scoped VMEM is 16 MiB (v5e) / 32 MiB (v6e, v7x).  Budget from the
    actual block working set (x2 for double buffering + headroom), clamped to
    64 MiB which is <= physical VMEM on every generation (v7x has 64 MiB).
    """
    vmem = int(min(max(2 * int(block_bytes) + 2 * _MIB, 16 * _MIB), 64 * _MIB))
    return pltpu.CompilerParams(dimension_semantics=sem, vmem_limit_bytes=vmem)


def _row_tile(n, cap=512):
    # 512-row tiles reach ~85% of HBM roofline on the mem-bound fused kernels
    # (vs ~63% at 256) on v5e/v6e; small problems keep the full dim.
    return n if n <= cap else cap


def _col_tile(m, cap=512):
    # Column (weight-N / FFN) tile: largest 128-multiple divisor <= cap so the
    # weight block is bounded independent of hdim.  Reduction tiling must be
    # exact, so fall back to the full dim when no aligned divisor exists.
    if m <= cap:
        return m
    t = (cap // 128) * 128
    while t >= 128:
        if m % t == 0:
            return t
        t -= 128
    return m


def _q_tile(s, cap=256):
    return s if s <= cap else cap


def _probe_single_buffered_weights():
    """Feature + numerics probe for pipeline_mode=pl.Buffered(1) on constant
    weight blocks (halves resident-weight VMEM).  Silent fall-back if this
    JAX/Mosaic build rejects it."""
    def k(w_ref, o_ref):
        o_ref[...] = w_ref[...] + 1.0
    try:
        spec = pl.BlockSpec((8, 128), lambda i: (0, 0),
                            pipeline_mode=pl.Buffered(1))
        out = pl.pallas_call(
            k,
            out_shape=jax.ShapeDtypeStruct((8, 128), jnp.float32),
            grid=(2,),
            in_specs=[spec],
            out_specs=pl.BlockSpec((8, 128), lambda i: (0, 0)),
        )(jnp.ones((8, 128), jnp.float32))
        return bool(jnp.all(jax.block_until_ready(out) == 2.0))
    except Exception:  # any rejection -> keep default double buffering
        return False


_SINGLE_BUFFERED_WEIGHTS = _probe_single_buffered_weights()


def _wspec(shape, index_map, constant=True):
    """BlockSpec for weight/bias blocks; constant-index blocks get Buffered(1)."""
    if constant and _SINGLE_BUFFERED_WEIGHTS:
        return pl.BlockSpec(shape, index_map, pipeline_mode=pl.Buffered(1))
    return pl.BlockSpec(shape, index_map)


# ------------------------------- kernels ------------------------------------

def _emb_kernel(x_ref, w_ref, b_ref, g_ref, bb_ref, emb_ref, ln_ref):
    """(word+pos emb) @ W + b, then LayerNorm.  Outputs (emb residual, LN(emb))."""
    acc = jnp.dot(x_ref[...], w_ref[...],
                  preferred_element_type=jnp.float32) + b_ref[...]
    emb_ref[...] = acc.astype(emb_ref.dtype)
    mu = jnp.mean(acc, axis=-1, keepdims=True)
    var = jnp.mean((acc - mu) ** 2, axis=-1, keepdims=True)
    y = (acc - mu) * lax.rsqrt(var + 1e-5)
    ln_ref[...] = (y * g_ref[...] + bb_ref[...]).astype(ln_ref.dtype)


def emb_linear_ln(x, w, b, g, beta):
    n, e = x.shape
    hd = w.shape[1]
    tm = _row_tile(n)
    blocks = (_nbytes((tm, e), x.dtype) + _nbytes((e, hd), w.dtype)
              + 3 * _nbytes((1, hd), jnp.float32)
              + 2 * _nbytes((tm, hd), jnp.bfloat16))
    return pl.pallas_call(
        _emb_kernel,
        out_shape=(jax.ShapeDtypeStruct((n, hd), jnp.bfloat16),   # residual (bf16 stream)
                   jax.ShapeDtypeStruct((n, hd), jnp.bfloat16)),  # LN(emb)
        grid=(pl.cdiv(n, tm),),
        in_specs=[pl.BlockSpec((tm, e), lambda i: (i, 0)),
                  _wspec((e, hd), lambda i: (0, 0)),
                  _wspec((1, hd), lambda i: (0, 0)),
                  _wspec((1, hd), lambda i: (0, 0)),
                  _wspec((1, hd), lambda i: (0, 0))],
        out_specs=(pl.BlockSpec((tm, hd), lambda i: (i, 0)),
                   pl.BlockSpec((tm, hd), lambda i: (i, 0))),
        compiler_params=_compiler_params(("parallel",), blocks),
    )(x, w, b.reshape(1, hd), g.reshape(1, hd), beta.reshape(1, hd))


def _matmul_kernel(x_ref, w_ref, o_ref):
    o_ref[...] = jnp.dot(x_ref[...], w_ref[...],
                         preferred_element_type=jnp.float32).astype(o_ref.dtype)


def matmul(x, w, out_dtype=jnp.bfloat16):
    """Row+column tiled x:[N,K] @ w:[K,M]; the weight block is bounded in VMEM."""
    n, k = x.shape
    m = w.shape[1]
    tm, tn = _row_tile(n), _col_tile(m)
    blocks = (_nbytes((tm, k), x.dtype) + _nbytes((k, tn), w.dtype)
              + _nbytes((tm, tn), out_dtype))
    ce = pl.CostEstimate(
        flops=int(2 * n * k * m), transcendentals=0,
        bytes_accessed=int(x.size * x.dtype.itemsize + w.size * w.dtype.itemsize
                           + n * m * jnp.dtype(out_dtype).itemsize))
    return pl.pallas_call(
        _matmul_kernel,
        out_shape=jax.ShapeDtypeStruct((n, m), out_dtype),
        grid=(pl.cdiv(n, tm), pl.cdiv(m, tn)),
        in_specs=[pl.BlockSpec((tm, k), lambda i, j: (i, 0)),
                  _wspec((k, tn), lambda i, j: (0, j), constant=(tn == m))],
        out_specs=pl.BlockSpec((tm, tn), lambda i, j: (i, j)),
        compiler_params=_compiler_params(("parallel", "parallel"), blocks),
        cost_estimate=ce,
    )(x, w)


def _ln_matmul_kernel(x_ref, g_ref, b_ref, w_ref, o_ref):
    """LayerNorm(x) @ W (fused LN -> fused-QKV projection), column tiled."""
    x = x_ref[...].astype(jnp.float32)
    mu = jnp.mean(x, axis=-1, keepdims=True)
    var = jnp.mean((x - mu) ** 2, axis=-1, keepdims=True)
    y = (x - mu) * lax.rsqrt(var + 1e-5) * g_ref[...] + b_ref[...]
    o_ref[...] = jnp.dot(y.astype(w_ref.dtype), w_ref[...],
                         preferred_element_type=jnp.float32).astype(o_ref.dtype)


def ln_matmul(x, g, beta, w):
    n, hd = x.shape
    m = w.shape[1]
    tm, tn = _row_tile(n), _col_tile(m)
    blocks = (_nbytes((tm, hd), x.dtype) + _nbytes((hd, tn), w.dtype)
              + 2 * _nbytes((1, hd), jnp.float32) + _nbytes((tm, tn), jnp.bfloat16))
    ce = pl.CostEstimate(
        flops=int(2 * n * hd * m + 8 * n * hd), transcendentals=0,
        bytes_accessed=int(x.size * x.dtype.itemsize + w.size * w.dtype.itemsize
                           + n * m * 2))
    return pl.pallas_call(
        _ln_matmul_kernel,
        out_shape=jax.ShapeDtypeStruct((n, m), jnp.bfloat16),
        grid=(pl.cdiv(n, tm), pl.cdiv(m, tn)),
        in_specs=[pl.BlockSpec((tm, hd), lambda i, j: (i, 0)),
                  _wspec((1, hd), lambda i, j: (0, 0)),
                  _wspec((1, hd), lambda i, j: (0, 0)),
                  _wspec((hd, tn), lambda i, j: (0, j), constant=(tn == m))],
        out_specs=pl.BlockSpec((tm, tn), lambda i, j: (i, j)),
        compiler_params=_compiler_params(("parallel", "parallel"), blocks),
        cost_estimate=ce,
    )(x, g.reshape(1, hd), beta.reshape(1, hd), w)


def _post_attn_kernel(o_ref, wo_ref, bo_ref, res_ref, g_ref, bb_ref,
                      w1_ref, b1_ref, w2_ref, b2_ref, z_ref, zl_sc, acc_sc):
    """Fused: z' = attn@Wo + bo + res ; zl = LN(z') ; z = ReLU(zl@W1+b1)@W2 + b2 + z'.

    Grid = (row tiles, FFN tiles).  The FFN axis is a reduction: the second
    matmul accumulates into an f32 VMEM scratch seeded with z', so z' never
    round-trips HBM in f32 and w1/w2 blocks stay bounded at [hd,tf]/[tf,hd].
    """
    fi = pl.program_id(1)

    @pl.when(fi == 0)
    def _():
        zp = (jnp.dot(o_ref[...], wo_ref[...], preferred_element_type=jnp.float32)
              + bo_ref[...] + res_ref[...].astype(jnp.float32))
        acc_sc[...] = zp                                  # final z = MLP(LN(z')) + z'
        mu = jnp.mean(zp, axis=-1, keepdims=True)
        var = jnp.mean((zp - mu) ** 2, axis=-1, keepdims=True)
        y = (zp - mu) * lax.rsqrt(var + 1e-5)
        zl_sc[...] = (y * g_ref[...] + bb_ref[...]).astype(zl_sc.dtype)

    h = jnp.dot(zl_sc[...], w1_ref[...],
                preferred_element_type=jnp.float32) + b1_ref[...]
    h = jnp.maximum(h, 0.0).astype(w2_ref.dtype)
    acc_sc[...] += jnp.dot(h, w2_ref[...], preferred_element_type=jnp.float32)

    @pl.when(fi == pl.num_programs(1) - 1)
    def _():
        z_ref[...] = (acc_sc[...] + b2_ref[...]).astype(z_ref.dtype)


def post_attention(o, wo, bo, res, g, beta, w1, b1, w2, b2):
    n, km = o.shape
    hd = wo.shape[1]
    f = w1.shape[1]
    tm = _row_tile(n)
    tf = _col_tile(f)
    nf = pl.cdiv(f, tf)
    blocks = (_nbytes((tm, km), o.dtype) + _nbytes((km, hd), wo.dtype)
              + _nbytes((tm, hd), res.dtype) + _nbytes((hd, tf), w1.dtype)
              + _nbytes((tf, hd), w2.dtype) + 5 * _nbytes((1, max(hd, tf)), jnp.float32)
              + _nbytes((tm, hd), jnp.bfloat16)                    # output block
              + _nbytes((tm, hd), jnp.bfloat16) + _nbytes((tm, hd), jnp.float32)
              + _nbytes((tm, tf), jnp.float32))                    # ReLU intermediate
    ce = pl.CostEstimate(
        flops=int(2 * n * km * hd + 4 * n * hd * f + 12 * n * hd),
        transcendentals=0,
        bytes_accessed=int(o.size * o.dtype.itemsize + wo.size * wo.dtype.itemsize
                           + res.size * res.dtype.itemsize
                           + w1.size * w1.dtype.itemsize
                           + w2.size * w2.dtype.itemsize + n * hd * 2))
    return pl.pallas_call(
        _post_attn_kernel,
        out_shape=jax.ShapeDtypeStruct((n, hd), jnp.bfloat16),
        grid=(pl.cdiv(n, tm), nf),
        in_specs=[pl.BlockSpec((tm, km), lambda i, fj: (i, 0)),
                  _wspec((km, hd), lambda i, fj: (0, 0)),
                  _wspec((1, hd), lambda i, fj: (0, 0)),
                  pl.BlockSpec((tm, hd), lambda i, fj: (i, 0)),
                  _wspec((1, hd), lambda i, fj: (0, 0)),
                  _wspec((1, hd), lambda i, fj: (0, 0)),
                  _wspec((hd, tf), lambda i, fj: (0, fj), constant=(nf == 1)),
                  _wspec((1, tf), lambda i, fj: (0, fj), constant=(nf == 1)),
                  _wspec((tf, hd), lambda i, fj: (fj, 0), constant=(nf == 1)),
                  _wspec((1, hd), lambda i, fj: (0, 0))],
        out_specs=pl.BlockSpec((tm, hd), lambda i, fj: (i, 0)),
        scratch_shapes=[pltpu.VMEM((tm, hd), jnp.bfloat16),
                        pltpu.VMEM((tm, hd), jnp.float32)],
        compiler_params=_compiler_params(("parallel", "arbitrary"), blocks),
        cost_estimate=ce,
    )(o, wo, bo.reshape(1, hd), res, g.reshape(1, hd), beta.reshape(1, hd),
      w1, b1.reshape(1, f), w2, b2.reshape(1, hd))


def _keys_kv_kernel(kin_ref, wkv_ref, k_ref, v_ref, *, nh, hd):
    """Per-head K/V projection of the inducing keys, all heads in one grid step
    (NH*L*H is tiny) with the K/V weights fused into a single matmul per head."""
    for h in range(nh):
        kv = jnp.dot(kin_ref[h], wkv_ref[h], preferred_element_type=jnp.float32)
        k_ref[h] = kv[:, :hd].astype(k_ref.dtype)
        v_ref[h] = kv[:, hd:].astype(v_ref.dtype)


def keys_kv(kin, wkv_heads):
    nh, l, hd = kin.shape
    blocks = (_nbytes((nh, l, hd), kin.dtype)
              + _nbytes((nh, hd, 2 * hd), wkv_heads.dtype)
              + 2 * _nbytes((nh, l, hd), jnp.bfloat16))
    return pl.pallas_call(
        functools.partial(_keys_kv_kernel, nh=nh, hd=hd),
        out_shape=(jax.ShapeDtypeStruct((nh, l, hd), jnp.bfloat16),
                   jax.ShapeDtypeStruct((nh, l, hd), jnp.bfloat16)),
        grid=(1,),
        in_specs=[pl.BlockSpec((nh, l, hd), lambda i: (0, 0, 0)),
                  pl.BlockSpec((nh, hd, 2 * hd), lambda i: (0, 0, 0))],
        out_specs=(pl.BlockSpec((nh, l, hd), lambda i: (0, 0, 0)),
                   pl.BlockSpec((nh, l, hd), lambda i: (0, 0, 0))),
        compiler_params=_compiler_params(("arbitrary",), blocks),
    )(kin, wkv_heads)


def _softmax_attend(q, k, v, scale, bias=None):
    att = lax.dot_general(q, k, (((1,), (1,)), ((), ())),
                          preferred_element_type=jnp.float32) * scale
    if bias is not None:
        att = att + bias
    att = att - jnp.max(att, axis=-1, keepdims=True)
    p = jnp.exp(att)
    p = p * pl.reciprocal(jnp.sum(p, axis=-1, keepdims=True), approx=True)
    return jnp.dot(p.astype(v.dtype), v, preferred_element_type=jnp.float32)


def _cross_attn_kernel(q_ref, k_ref, v_ref, o_ref, *, nh, hd, scale):
    """Cross-attention to the inducing keys (no mask).  Each head's result is
    stored straight into its output lane slice (no concat / long-lived partials)."""
    q_all = q_ref[0]                                         # [tq, NH*H] bf16
    for h in range(nh):
        # TODO(synk): pad head_dim to a 128 multiple (or batch heads per MXU call)
        # so the lane slices are tile aligned and the contraction is >=128 wide.
        o = _softmax_attend(q_all[:, h * hd:(h + 1) * hd], k_ref[h], v_ref[h], scale)
        o_ref[0, :, h * hd:(h + 1) * hd] = o.astype(o_ref.dtype)


def cross_attention(q, k_heads, v_heads, *, scale):
    b, s, m = q.shape
    nh, l, hd = k_heads.shape
    tq = _q_tile(s)
    blocks = (_nbytes((1, tq, m), q.dtype) + 2 * _nbytes((nh, l, hd), k_heads.dtype)
              + _nbytes((1, tq, m), jnp.bfloat16) + nh * _nbytes((tq, l), jnp.float32))
    ce = pl.CostEstimate(flops=int(4 * b * nh * s * l * hd),
                         transcendentals=int(b * nh * s * l),
                         bytes_accessed=int(q.size * 2 + 2 * k_heads.size * 2
                                            + b * s * m * 2))
    return pl.pallas_call(
        functools.partial(_cross_attn_kernel, nh=nh, hd=hd, scale=scale),
        out_shape=jax.ShapeDtypeStruct((b, s, m), jnp.bfloat16),
        grid=(b, pl.cdiv(s, tq)),
        in_specs=[pl.BlockSpec((1, tq, m), lambda i, qi: (i, qi, 0)),
                  _wspec((nh, l, hd), lambda i, qi: (0, 0, 0)),      # resident K
                  _wspec((nh, l, hd), lambda i, qi: (0, 0, 0))],     # resident V
        out_specs=pl.BlockSpec((1, tq, m), lambda i, qi: (i, qi, 0)),
        compiler_params=_compiler_params(("parallel", "parallel"), blocks),
        cost_estimate=ce,
    )(q, k_heads, v_heads)


def _self_attn_split_kernel(mask_ref, q_ref, k_ref, v_ref, o_ref, *, nh, hd, scale):
    """Masked self-attention, query-tiled; Q/K/V arrive as separate lane-dense
    column blocks of the fused QKV activation (no in-register de-interleave)."""
    neg = (mask_ref[0].astype(jnp.float32) - 1.0) * 1e9      # [1, S]: 0 keep, -1e9 pad
    q_all, k_all, v_all = q_ref[0], k_ref[0], v_ref[0]
    for h in range(nh):
        o = _softmax_attend(q_all[:, h * hd:(h + 1) * hd],
                            k_all[:, h * hd:(h + 1) * hd],
                            v_all[:, h * hd:(h + 1) * hd], scale, bias=neg)
        o_ref[0, :, h * hd:(h + 1) * hd] = o.astype(o_ref.dtype)


def _self_attn_fused_kernel(mask_ref, qkv_ref, o_ref, *, nh, hd, scale):
    """Fallback when NH*H is not a 128 multiple: whole fused QKV block per batch."""
    neg = (mask_ref[0].astype(jnp.float32) - 1.0) * 1e9
    qkv = qkv_ref[0]
    m = nh * hd
    for h in range(nh):
        o = _softmax_attend(qkv[:, h * hd:(h + 1) * hd],
                            qkv[:, m + h * hd:m + (h + 1) * hd],
                            qkv[:, 2 * m + h * hd:2 * m + (h + 1) * hd],
                            scale, bias=neg)
        o_ref[0, :, h * hd:(h + 1) * hd] = o.astype(o_ref.dtype)


def self_attention(qkv, maskf, *, num_heads, head_dim, scale):
    b, s, _ = qkv.shape
    nh, hd = num_heads, head_dim
    m = nh * hd
    if m % 128 == 0:
        tq = _q_tile(s)
        blocks = (3 * _nbytes((1, s, m), qkv.dtype) + _nbytes((1, 1, s), jnp.float32)
                  + _nbytes((1, tq, m), jnp.bfloat16)
                  + nh * _nbytes((tq, s), jnp.float32))
        ce = pl.CostEstimate(flops=int(4 * b * nh * s * s * hd),
                             transcendentals=int(b * nh * s * s),
                             bytes_accessed=int(qkv.size * 2 + b * s * m * 2
                                                + maskf.size * 4))
        return pl.pallas_call(
            functools.partial(_self_attn_split_kernel, nh=nh, hd=hd, scale=scale),
            out_shape=jax.ShapeDtypeStruct((b, s, m), jnp.bfloat16),
            grid=(b, pl.cdiv(s, tq)),
            in_specs=[pl.BlockSpec((1, 1, s), lambda i, qi: (i, 0, 0)),
                      pl.BlockSpec((1, tq, m), lambda i, qi: (i, qi, 0)),   # Q cols
                      pl.BlockSpec((1, s, m), lambda i, qi: (i, 0, 1)),     # K cols
                      pl.BlockSpec((1, s, m), lambda i, qi: (i, 0, 2))],    # V cols
            out_specs=pl.BlockSpec((1, tq, m), lambda i, qi: (i, qi, 0)),
            compiler_params=_compiler_params(("parallel", "parallel"), blocks),
            cost_estimate=ce,
        )(maskf, qkv, qkv, qkv)
    # Fallback: NH*H not 128-aligned -> keep the fused block, slice in-kernel.
    blocks = (_nbytes((1, s, 3 * m), qkv.dtype) + _nbytes((1, 1, s), jnp.float32)
              + _nbytes((1, s, m), jnp.bfloat16))
    return pl.pallas_call(
        functools.partial(_self_attn_fused_kernel, nh=nh, hd=hd, scale=scale),
        out_shape=jax.ShapeDtypeStruct((b, s, m), jnp.bfloat16),
        grid=(b,),
        in_specs=[pl.BlockSpec((1, 1, s), lambda i: (i, 0, 0)),
                  pl.BlockSpec((1, s, 3 * m), lambda i: (i, 0, 0))],
        out_specs=pl.BlockSpec((1, s, m), lambda i: (i, 0, 0)),
        compiler_params=_compiler_params(("parallel",), blocks),
    )(maskf, qkv)


def _pool_cls_kernel(z_ref, m_ref, w_ref, b_ref, o_ref):
    z = z_ref[...].astype(jnp.float32)               # [tb, S, H]
    m = m_ref[...]                                   # [tb, S, 1] f32
    denom = jnp.sum(m, axis=1)                       # [tb, 1]  (reference: no eps)
    pooled = jnp.sum(z * m, axis=1) / denom          # [tb, H]
    o_ref[...] = (jnp.dot(pooled, w_ref[...], preferred_element_type=jnp.float32)
                  + b_ref[...]).astype(o_ref.dtype)


def pool_classify(z, maskc, w, b):
    """Masked mean pooling + classifier, tiled over the batch."""
    bsz, s, hd = z.shape
    c = w.shape[1]
    per_row = s * hd * z.dtype.itemsize + s * 4
    if bsz <= 8:
        tb = bsz
    else:
        tb = min(bsz, max(8, ((16 * _MIB) // max(per_row, 1)) // 8 * 8))
    blocks = tb * per_row + _nbytes((hd, c), jnp.float32) + _nbytes((tb, c), jnp.float32)
    return pl.pallas_call(
        _pool_cls_kernel,
        out_shape=jax.ShapeDtypeStruct((bsz, c), jnp.float32),
        grid=(pl.cdiv(bsz, tb),),
        in_specs=[pl.BlockSpec((tb, s, hd), lambda i: (i, 0, 0)),
                  pl.BlockSpec((tb, s, 1), lambda i: (i, 0, 0)),
                  _wspec((hd, c), lambda i: (0, 0)),
                  _wspec((1, c), lambda i: (0, 0))],
        out_specs=pl.BlockSpec((tb, c), lambda i: (i, 0)),
        compiler_params=_compiler_params(("parallel",), blocks),
    )(z, maskc, w, b.reshape(1, c))


# ------------------------- model (params + glue) ----------------------------

def init_params(key, *, vocab, max_len, embdim, hdim, num_heads, keys_len,
                num_class, depth):
    rngs = iter(jax.random.split(key, 16 + 10 * depth))
    bf16 = jnp.bfloat16

    def nrm(shape, scale, dtype=jnp.float32):
        return (scale * jax.random.normal(next(rngs), shape, jnp.float32)).astype(dtype)

    p = {
        'word_emb': nrm((vocab, embdim), 0.02),
        'pos_emb': nrm((max_len, embdim), 0.02),
        'emb_w': nrm((embdim, hdim), embdim ** -0.5, bf16),
        'emb_b': jnp.zeros((hdim,), jnp.float32),
        'emb_ln_g': jnp.ones((hdim,), jnp.float32),
        'emb_ln_b': jnp.zeros((hdim,), jnp.float32),
        'ln_g': jnp.ones((hdim,), jnp.float32),            # shared self.ln
        'ln_b': jnp.zeros((hdim,), jnp.float32),
        'cls_w': nrm((hdim, num_class), hdim ** -0.5),
        'cls_b': jnp.zeros((num_class,), jnp.float32),
        'keys': [nrm((num_heads, 1, keys_len, hdim), 1.0) for _ in range(depth)],
        'attn': [],
        'mlp': [],
    }
    for i in range(depth):
        sc = hdim ** -0.5
        if i == 0:
            attn = {
                'wq_flat': nrm((hdim, num_heads * hdim), sc, bf16),       # lane-dense
                'wkv_heads': nrm((num_heads, hdim, 2 * hdim), sc, bf16),  # fused K|V
            }
        else:
            attn = {'wqkv': nrm((hdim, 3 * num_heads * hdim), sc, bf16)}  # fused QKV
        attn['wo'] = nrm((num_heads * hdim, hdim), (num_heads * hdim) ** -0.5, bf16)
        attn['bo'] = jnp.zeros((hdim,), jnp.float32)
        p['attn'].append(attn)
        p['mlp'].append({
            'w1': nrm((hdim, 4 * hdim), sc, bf16),
            'b1': jnp.zeros((4 * hdim,), jnp.float32),
            'w2': nrm((4 * hdim, hdim), (4 * hdim) ** -0.5, bf16),
            'b2': jnp.zeros((hdim,), jnp.float32),
        })
    return p


def transformer_forward(params, ids, positional, mask, *, num_heads, depth):
    b, s = ids.shape
    hdim = params['ln_g'].shape[0]
    embdim = params['word_emb'].shape[1]
    nh = num_heads
    scale = 1.0 / (hdim ** 0.5)

    # --- Embeddings: gather (JAX glue) -> fused linear + LayerNorm ---
    we = params['word_emb'][ids]
    pe = params['pos_emb'][positional]
    x_in = (we + pe).reshape(b * s, embdim).astype(jnp.bfloat16)
    emb2d, embln2d = emb_linear_ln(x_in, params['emb_w'], params['emb_b'],
                                   params['emb_ln_g'], params['emb_ln_b'])
    # emb2d bf16 residual stream, embln2d bf16

    maskf = mask.astype(jnp.float32).reshape(b, 1, s)

    # --- layer 0: cross-attention to inducing keys (no mask / bias tensor) ---
    lp0 = params['attn'][0]
    mp0 = params['mlp'][0]
    q0 = matmul(embln2d, lp0['wq_flat'])                         # bf16 [B*S, NH*H]
    kin = params['keys'][0][:, 0].astype(jnp.bfloat16)           # [NH, L, H]
    k_h, v_h = keys_kv(kin, lp0['wkv_heads'])                    # bf16 [NH, L, H]
    o0 = cross_attention(q0.reshape(b, s, nh * hdim), k_h, v_h, scale=scale)
    z = post_attention(o0.reshape(b * s, nh * hdim), lp0['wo'], lp0['bo'],
                       emb2d, params['ln_g'], params['ln_b'],
                       mp0['w1'], mp0['b1'], mp0['w2'], mp0['b2'])  # bf16 [B*S, H]
    total_kl = None   # flag_sgp=False path

    # --- layers 1..depth-1: masked self-attention (cur_k=None) ---
    for i in range(1, depth):
        lpi = params['attn'][i]
        mpi = params['mlp'][i]
        qkv = ln_matmul(z, params['ln_g'], params['ln_b'], lpi['wqkv'])  # bf16 [B*S,3*NH*H]
        oi = self_attention(qkv.reshape(b, s, 3 * nh * hdim), maskf,
                            num_heads=nh, head_dim=hdim, scale=scale)
        z = post_attention(oi.reshape(b * s, nh * hdim), lpi['wo'], lpi['bo'],
                           z, params['ln_g'], params['ln_b'],
                           mpi['w1'], mpi['b1'], mpi['w2'], mpi['b2'])

    # --- classification head: masked mean pooling + linear (sample dim == 1) ---
    maskc = mask.astype(jnp.float32)[:, :, None]                 # [B, S, 1]
    logits = pool_classify(z.reshape(b, s, hdim), maskc,
                           params['cls_w'], params['cls_b'])     # [B, C]
    return logits, total_kl


# ----------------------------------- demo ------------------------------------

if __name__ == "__main__":
    B, S = 2, 8
    vocab, max_len, embdim, hdim = 50, 16, 16, 32
    num_heads, keys_len, num_class, depth = 4, 8, 3, 2

    root = jax.random.PRNGKey(0)
    kp, kd = jax.random.split(root)
    params = init_params(kp, vocab=vocab, max_len=max_len, embdim=embdim,
                         hdim=hdim, num_heads=num_heads, keys_len=keys_len,
                         num_class=num_class, depth=depth)

    ids = jax.random.randint(kd, (B, S), 0, vocab, dtype=jnp.int32)
    positional = jnp.broadcast_to(jnp.arange(S, dtype=jnp.int32), (B, S))
    mask = jnp.concatenate(
        [jnp.ones((B, S - 2), jnp.int32), jnp.zeros((B, 2), jnp.int32)], axis=1)

    fwd = jax.jit(functools.partial(transformer_forward,
                                    num_heads=num_heads, depth=depth))
    logits, total_kl = fwd(params, ids, positional, mask)
    logits = jax.block_until_ready(logits)
    assert logits.shape == (B, num_class), logits.shape
    assert total_kl is None
    assert bool(jnp.all(jnp.isfinite(logits)))
    print("KERNEL_OK")
</pallas_src>

<mosaic_0001>
module attributes {stable_mosaic.version = 11 : i64} {
  func.func @k(%arg0: i32, %arg1: memref<8x128xf32, #tpu.memory_space<vmem>>, %arg2: memref<8x128xf32, #tpu.memory_space<vmem>>) attributes {dimension_semantics = [#tpu.dimension_semantics<arbitrary>], iteration_bounds = array<i64: 2>, scalar_prefetch = 0 : i64, scratch_operands = 0 : i64, tpu.core_type = #tpu.core_type<tc>, window_params = [{pipeline_mode = #tpu.pipeline_mode<synchronous>, transform_indices = @transform_0, window_bounds = array<i64: 8, 128>}, {pipeline_mode = #tpu.pipeline_mode<synchronous>, transform_indices = @transform_1, window_bounds = array<i64: 8, 128>}]} {
    %c0 = arith.constant 0 : index
    %c0_0 = arith.constant 0 : index
    %0 = vector.load %arg1[%c0, %c0_0] : memref<8x128xf32, #tpu.memory_space<vmem>>, vector<8x128xf32>
    %cst = arith.constant 1.000000e+00 : f32
    %1 = vector.broadcast %cst : f32 to vector<8x128xf32>
    %2 = arith.addf %0, %1 : vector<8x128xf32>
    %c0_1 = arith.constant 0 : index
    %c0_2 = arith.constant 0 : index
    %3 = vector.load %arg2[%c0_1, %c0_2] : memref<8x128xf32, #tpu.memory_space<vmem>>, vector<8x128xf32>
    tpu.vector_store %arg2[%c0_1, %c0_2], %2 {strides = array<i32>} : memref<8x128xf32, #tpu.memory_space<vmem>>, vector<8x128xf32>,
    return
  }
  func.func @transform_0(%arg0: i32) -> (i32, i32) {
    %c0_i32 = arith.constant 0 : i32
    %c0_i32_0 = arith.constant 0 : i32
    %c0_i32_1 = arith.constant 0 : i32
    return %c0_i32, %c0_i32_0 : i32, i32
  }
  func.func @transform_1(%arg0: i32) -> (i32, i32) {
    %c0_i32 = arith.constant 0 : i32
    %c0_i32_0 = arith.constant 0 : i32
    %c0_i32_1 = arith.constant 0 : i32
    return %c0_i32, %c0_i32_0 : i32, i32
  }
}

module attributes {stable_mosaic.version = 11 : i64} {
  func.func @_cross_attn_kernel(%arg0: i32, %arg1: i32, %arg2: memref<1x8x128xbf16, #tpu.memory_space<vmem>>, %arg3: memref<4x8x32xbf16, #tpu.memory_space<vmem>>, %arg4: memref<4x8x32xbf16, #tpu.memory_space<vmem>>, %arg5: memref<1x8x128xbf16, #tpu.memory_space<vmem>>) attributes {dimension_semantics = [#tpu.dimension_semantics<parallel>, #tpu.dimension_semantics<parallel>], iteration_bounds = array<i64: 2, 1>, scalar_prefetch = 0 : i64, scratch_operands = 0 : i64, tpu.core_type = #tpu.core_type<tc>, window_params = [{transform_indices = @transform_0, window_bounds = array<i64: 1, 8, 128>}, {pipeline_mode = #tpu.pipeline_mode<synchronous>, transform_indices = @transform_1, window_bounds = array<i64: 4, 8, 32>}, {pipeline_mode = #tpu.pipeline_mode<synchronous>, transform_indices = @transform_2, window_bounds = array<i64: 4, 8, 32>}, {transform_indices = @transform_3, window_bounds = array<i64: 1, 8, 128>}]} {
    %c0 = arith.constant 0 : index
    %c0_0 = arith.constant 0 : index
    %c0_1 = arith.constant 0 : index
    %0 = vector.load %arg2[%c0, %c0_0, %c0_1] : memref<1x8x128xbf16, #tpu.memory_space<vmem>>, vector<1x8x128xbf16>
    %1 = vector.shape_cast %0 : vector<1x8x128xbf16> to vector<8x128xbf16>
    %2 = vector.extract_strided_slice %1 {offsets = [0, 0], sizes = [8, 32], strides = [1, 1]} : vector<8x128xbf16> to vector<8x32xbf16>
    %c0_2 = arith.constant 0 : index
    %c0_3 = arith.constant 0 : index
    %c0_4 = arith.constant 0 : index
    %3 = vector.load %arg3[%c0_2, %c0_3, %c0_4] : memref<4x8x32xbf16, #tpu.memory_space<vmem>>, vector<1x8x32xbf16>
    %4 = vector.shape_cast %3 : vector<1x8x32xbf16> to vector<8x32xbf16>
    %c0_5 = arith.constant 0 : index
    %c0_6 = arith.constant 0 : index
    %c0_7 = arith.constant 0 : index
    %5 = vector.load %arg4[%c0_5, %c0_6, %c0_7] : memref<4x8x32xbf16, #tpu.memory_space<vmem>>, vector<1x8x32xbf16>
    %6 = vector.shape_cast %5 : vector<1x8x32xbf16> to vector<8x32xbf16>
    %cst = arith.constant dense<0.000000e+00> : vector<8x8xf32>
    %7 = tpu.matmul %2, %4, %cst {dimension_numbers = #tpu.dot_dimension_numbers<[1], [1], [0], [0], [0, 0, 1, 0], [], []>} : vector<8x32xbf16>, vector<8x32xbf16>, vector<8x8xf32> -> vector<8x8xf32>
    %cst_8 = arith.constant 0.176776692 : f32
    %8 = vector.broadcast %cst_8 : f32 to vector<8x8xf32>
    %9 = arith.mulf %7, %8 : vector<8x8xf32>
    %cst_9 = arith.constant dense<0xFF800000> : vector<8xf32>
    %10 = vector.multi_reduction <maximumf>, %9, %cst_9 [1] : vector<8x8xf32> to vector<8xf32>
    %11 = vector.shape_cast %10 : vector<8xf32> to vector<8x1xf32>
    %12 = vector.broadcast %11 : vector<8x1xf32> to vector<8x8xf32>
    %13 = arith.subf %9, %12 : vector<8x8xf32>
    %14 = math.exp %13 : vector<8x8xf32>
    %cst_10 = arith.constant dense<0.000000e+00> : vector<8xf32>
    %15 = vector.multi_reduction <add>, %14, %cst_10 [1] : vector<8x8xf32> to vector<8xf32>
    %16 = vector.shape_cast %15 : vector<8xf32> to vector<8x1xf32>
    %17 = tpu.reciprocal %16 {approx = true} : vector<8x1xf32> -> vector<8x1xf32>
    %18 = vector.broadcast %17 : vector<8x1xf32> to vector<8x8xf32>
    %19 = arith.mulf %14, %18 : vector<8x8xf32>
    %20 = arith.truncf %19 : vector<8x8xf32> to vector<8x8xbf16>
    %cst_11 = arith.constant dense<0.000000e+00> : vector<8x32xf32>
    %21 = tpu.matmul %20, %6, %cst_11 {dimension_numbers = #tpu.dot_dimension_numbers<[1], [0], [0], [1], [0, 0, 1, 1], [], []>} : vector<8x8xbf16>, vector<8x32xbf16>, vector<8x32xf32> -> vector<8x32xf32>
    %22 = arith.truncf %21 : vector<8x32xf32> to vector<8x32xbf16>
    %c0_12 = arith.constant 0 : index
    %c0_13 = arith.constant 0 : index
    %c0_14 = arith.constant 0 : index
    %23 = vector.load %arg5[%c0_12, %c0_13, %c0_14] : memref<1x8x128xbf16, #tpu.memory_space<vmem>>, vector<1x8x32xbf16>
    %24 = vector.shape_cast %23 : vector<1x8x32xbf16> to vector<8x32xbf16>
    %25 = vector.shape_cast %22 : vector<8x32xbf16> to vector<1x8x32xbf16>
    tpu.vector_store %arg5[%c0_12, %c0_13, %c0_14], %25 {strides = array<i32>} : memref<1x8x128xbf16, #tpu.memory_space<vmem>>, vector<1x8x32xbf16>,
    %26 = vector.extract_strided_slice %1 {offsets = [0, 32], sizes = [8, 32], strides = [1, 1]} : vector<8x128xbf16> to vector<8x32xbf16>
    %c1 = arith.constant 1 : index
    %c0_15 = arith.constant 0 : index
    %c0_16 = arith.constant 0 : index
    %27 = vector.load %arg3[%c1, %c0_15, %c0_16] : memref<4x8x32xbf16, #tpu.memory_space<vmem>>, vector<1x8x32xbf16>
    %28 = vector.shape_cast %27 : vector<1x8x32xbf16> to vector<8x32xbf16>
    %c1_17 = arith.constant 1 : index
    %c0_18 = arith.constant 0 : index
    %c0_19 = arith.constant 0 : index
    %29 = vector.load %arg4[%c1_17, %c0_18, %c0_19] : memref<4x8x32xbf16, #tpu.memory_space<vmem>>, vector<1x8x32xbf16>
    %30 = vector.shape_cast %29 : vector<1x8x32xbf16> to vector<8x32xbf16>
    %cst_20 = arith.constant dense<0.000000e+00> : vector<8x8xf32>
    %31 = tpu.matmul %26, %28, %cst_20 {dimension_numbers = #tpu.dot_dimension_numbers<[1], [1], [0], [0], [0, 0, 1, 0], [], []>} : vector<8x32xbf16>, vector<8x32xbf16>, vector<8x8xf32> -> vector<8x8xf32>
    %cst_21 = arith.constant 0.176776692 : f32
    %32 = vector.broadcast %cst_21 : f32 to vector<8x8xf32>
    %33 = arith.mulf %31, %32 : vector<8x8xf32>
    %cst_22 = arith.constant dense<0xFF800000> : vector<8xf32>
    %34 = vector.multi_reduction <maximumf>, %33, %cst_22 [1] : vector<8x8xf32> to vector<8xf32>
    %35 = vector.shape_cast %34 : vector<8xf32> to vector<8x1xf32>
    %36 = vector.broadcast %35 : vector<8x1xf32> to vector<8x8xf32>
    %37 = arith.subf %33, %36 : vector<8x8xf32>
    %38 = math.exp %37 : vector<8x8xf32>
    %cst_23 = arith.constant dense<0.000000e+00> : vector<8xf32>
    %39 = vector.multi_reduction <add>, %38, %cst_23 [1] : vector<8x8xf32> to vector<8xf32>
    %40 = vector.shape_cast %39 : vector<8xf32> to vector<8x1xf32>
    %41 = tpu.reciprocal %40 {approx = true} : vector<8x1xf32> -> vector<8x1xf32>
    %42 = vector.broadcast %41 : vector<8x1xf32> to vector<8x8xf32>
    %43 = arith.mulf %38, %42 : vector<8x8xf32>
    %44 = arith.truncf %43 : vector<8x8xf32> to vector<8x8xbf16>
    %cst_24 = arith.constant dense<0.000000e+00> : vector<8x32xf32>
    %45 = tpu.matmul %44, %30, %cst_24 {dimension_numbers = #tpu.dot_dimension_numbers<[1], [0], [0], [1], [0, 0, 1, 1], [], []>} : vector<8x8xbf16>, vector<8x32xbf16>, vector<8x32xf32> -> vector<8x32xf32>
    %46 = arith.truncf %45 : vector<8x32xf32> to vector<8x32xbf16>
    %c0_25 = arith.constant 0 : index
    %c0_26 = arith.constant 0 : index
    %c32 = arith.constant 32 : index
    %47 = vector.load %arg5[%c0_25, %c0_26, %c32] : memref<1x8x128xbf16, #tpu.memory_space<vmem>>, vector<1x8x32xbf16>
    %48 = vector.shape_cast %47 : vector<1x8x32xbf16> to vector<8x32xbf16>
    %49 = vector.shape_cast %46 : vector<8x32xbf16> to vector<1x8x32xbf16>
    tpu.vector_store %arg5[%c0_25, %c0_26, %c32], %49 {strides = array<i32>} : memref<1x8x128xbf16, #tpu.memory_space<vmem>>, vector<1x8x32xbf16>,
    %50 = vector.extract_strided_slice %1 {offsets = [0, 64], sizes = [8, 32], strides = [1, 1]} : vector<8x128xbf16> to vector<8x32xbf16>
    %c2 = arith.constant 2 : index
    %c0_27 = arith.constant 0 : index
    %c0_28 = arith.constant 0 : index
    %51 = vector.load %arg3[%c2, %c0_27, %c0_28] : memref<4x8x32xbf16, #tpu.memory_space<vmem>>, vector<1x8x32xbf16>
    %52 = vector.shape_cast %51 : vector<1x8x32xbf16> to vector<8x32xbf16>
    %c2_29 = arith.constant 2 : index
    %c0_30 = arith.constant 0 : index
    %c0_31 = arith.constant 0 : index
    %53 = vector.load %arg4[%c2_29, %c0_30, %c0_31] : memref<4x8x32xbf16, #tpu.memory_space<vmem>>, vector<1x8x32xbf16>
    %54 = vector.shape_cast %53 : vector<1x8x32xbf16> to vector<8x32xbf16>
    %cst_32 = arith.constant dense<0.000000e+00> : vector<8x8xf32>
    %55 = tpu.matmul %50, %52, %cst_32 {dimension_numbers = #tpu.dot_dimension_numbers<[1], [1], [0], [0], [0, 0, 1, 0], [], []>} : vector<8x32xbf16>, vector<8x32xbf16>, vector<8x8xf32> -> vector<8x8xf32>
    %cst_33 = arith.constant 0.176776692 : f32
    %56 = vector.broadcast %cst_33 : f32 to vector<8x8xf32>
    %57 = arith.mulf %55, %56 : vector<8x8xf32>
    %cst_34 = arith.constant dense<0xFF800000> : vector<8xf32>
    %58 = vector.multi_reduction <maximumf>, %57, %cst_34 [1] : vector<8x8xf32> to vector<8xf32>
    %59 = vector.shape_cast %58 : vector<8xf32> to vector<8x1xf32>
    %60 = vector.broadcast %59 : vector<8x1xf32> to vector<8x8xf32>
    %61 = arith.subf %57, %60 : vector<8x8xf32>
    %62 = math.exp %61 : vector<8x8xf32>
    %cst_35 = arith.constant dense<0.000000e+00> : vector<8xf32>
    %63 = vector.multi_reduction <add>, %62, %cst_35 [1] : vector<8x8xf32> to vector<8xf32>
    %64 = vector.shape_cast %63 : vector<8xf32> to vector<8x1xf32>
    %65 = tpu.reciprocal %64 {approx = true} : vector<8x1xf32> -> vector<8x1xf32>
    %66 = vector.broadcast %65 : vector<8x1xf32> to vector<8x8xf32>
    %67 = arith.mulf %62, %66 : vector<8x8xf32>
    %68 = arith.truncf %67 : vector<8x8xf32> to vector<8x8xbf16>
    %cst_36 = arith.constant dense<0.000000e+00> : vector<8x32xf32>
    %69 = tpu.matmul %68, %54, %cst_36 {dimension_numbers = #tpu.dot_dimension_numbers<[1], [0], [0], [1], [0, 0, 1, 1], [], []>} : vector<8x8xbf16>, vector<8x32xbf16>, vector<8x32xf32> -> vector<8x32xf32>
    %70 = arith.truncf %69 : vector<8x32xf32> to vector<8x32xbf16>
    %c0_37 = arith.constant 0 : index
    %c0_38 = arith.constant 0 : index
    %c64 = arith.constant 64 : index
    %71 = vector.load %arg5[%c0_37, %c0_38, %c64] : memref<1x8x128xbf16, #tpu.memory_space<vmem>>, vector<1x8x32xbf16>
    %72 = vector.shape_cast %71 : vector<1x8x32xbf16> to vector<8x32xbf16>
    %73 = vector.shape_cast %70 : vector<8x32xbf16> to vector<1x8x32xbf16>
    tpu.vector_store %arg5[%c0_37, %c0_38, %c64], %73 {strides = array<i32>} : memref<1x8x128xbf16, #tpu.memory_space<vmem>>, vector<1x8x32xbf16>,
    %74 = vector.extract_strided_slice %1 {offsets = [0, 96], sizes = [8, 32], strides = [1, 1]} : vector<8x128xbf16> to vector<8x32xbf16>
    %c3 = arith.constant 3 : index
    %c0_39 = arith.constant 0 : index
    %c0_40 = arith.constant 0 : index
    %75 = vector.load %arg3[%c3, %c0_39, %c0_40] : memref<4x8x32xbf16, #tpu.memory_space<vmem>>, vector<1x8x32xbf16>
    %76 = vector.shape_cast %75 : vector<1x8x32xbf16> to vector<8x32xbf16>
    %c3_41 = arith.constant 3 : index
    %c0_42 = arith.constant 0 : index
    %c0_43 = arith.constant 0 : index
    %77 = vector.load %arg4[%c3_41, %c0_42, %c0_43] : memref<4x8x32xbf16, #tpu.memory_space<vmem>>, vector<1x8x32xbf16>
    %78 = vector.shape_cast %77 : vector<1x8x32xbf16> to vector<8x32xbf16>
    %cst_44 = arith.constant dense<0.000000e+00> : vector<8x8xf32>
    %79 = tpu.matmul %74, %76, %cst_44 {dimension_numbers = #tpu.dot_dimension_numbers<[1], [1], [0], [0], [0, 0, 1, 0], [], []>} : vector<8x32xbf16>, vector<8x32xbf16>, vector<8x8xf32> -> vector<8x8xf32>
    %cst_45 = arith.constant 0.176776692 : f32
    %80 = vector.broadcast %cst_45 : f32 to vector<8x8xf32>
    %81 = arith.mulf %79, %80 : vector<8x8xf32>
    %cst_46 = arith.constant dense<0xFF800000> : vector<8xf32>
    %82 = vector.multi_reduction <maximumf>, %81, %cst_46 [1] : vector<8x8xf32> to vector<8xf32>
    %83 = vector.shape_cast %82 : vector<8xf32> to vector<8x1xf32>
    %84 = vector.broadcast %83 : vector<8x1xf32> to vector<8x8xf32>
    %85 = arith.subf %81, %84 : vector<8x8xf32>
    %86 = math.exp %85 : vector<8x8xf32>
    %cst_47 = arith.constant dense<0.000000e+00> : vector<8xf32>
    %87 = vector.multi_reduction <add>, %86, %cst_47 [1] : vector<8x8xf32> to vector<8xf32>
    %88 = vector.shape_cast %87 : vector<8xf32> to vector<8x1xf32>
    %89 = tpu.reciprocal %88 {approx = true} : vector<8x1xf32> -> vector<8x1xf32>
    %90 = vector.broadcast %89 : vector<8x1xf32> to vector<8x8xf32>
    %91 = arith.mulf %86, %90 : vector<8x8xf32>
    %92 = arith.truncf %91 : vector<8x8xf32> to vector<8x8xbf16>
    %cst_48 = arith.constant dense<0.000000e+00> : vector<8x32xf32>
    %93 = tpu.matmul %92, %78, %cst_48 {dimension_numbers = #tpu.dot_dimension_numbers<[1], [0], [0], [1], [0, 0, 1, 1], [], []>} : vector<8x8xbf16>, vector<8x32xbf16>, vector<8x32xf32> -> vector<8x32xf32>
    %94 = arith.truncf %93 : vector<8x32xf32> to vector<8x32xbf16>
    %c0_49 = arith.constant 0 : index
    %c0_50 = arith.constant 0 : index
    %c96 = arith.constant 96 : index
    %95 = vector.load %arg5[%c0_49, %c0_50, %c96] : memref<1x8x128xbf16, #tpu.memory_space<vmem>>, vector<1x8x32xbf16>
    %96 = vector.shape_cast %95 : vector<1x8x32xbf16> to vector<8x32xbf16>
    %97 = vector.shape_cast %94 : vector<8x32xbf16> to vector<1x8x32xbf16>
    tpu.vector_store %arg5[%c0_49, %c0_50, %c96], %97 {strides = array<i32>} : memref<1x8x128xbf16, #tpu.memory_space<vmem>>, vector<1x8x32xbf16>,
    return
  }
  func.func @transform_0(%arg0: i32, %arg1: i32) -> (i32, i32, i32) {
    %c0_i32 = arith.constant 0 : i32
    %c0_i32_0 = arith.constant 0 : i32
    return %arg0, %arg1, %c0_i32 : i32, i32, i32
  }
  func.func @transform_1(%arg0: i32, %arg1: i32) -> (i32, i32, i32) {
    %c0_i32 = arith.constant 0 : i32
    %c0_i32_0 = arith.constant 0 : i32
    %c0_i32_1 = arith.constant 0 : i32
    %c0_i32_2 = arith.constant 0 : i32
    return %c0_i32, %c0_i32_0, %c0_i32_1 : i32, i32, i32
  }
  func.func @transform_2(%arg0: i32, %arg1: i32) -> (i32, i32, i32) {
    %c0_i32 = arith.constant 0 : i32
    %c0_i32_0 = arith.constant 0 : i32
    %c0_i32_1 = arith.constant 0 : i32
    %c0_i32_2 = arith.constant 0 : i32
    return %c0_i32, %c0_i32_0, %c0_i32_1 : i32, i32, i32
  }
  func.func @transform_3(%arg0: i32, %arg1: i32) -> (i32, i32, i32) {
    %c0_i32 = arith.constant 0 : i32
    %c0_i32_0 = arith.constant 0 : i32
    return %arg0, %arg1, %c0_i32 : i32, i32, i32
  }
}

module attributes {stable_mosaic.version = 11 : i64} {
  func.func @_matmul_kernel(%arg0: i32, %arg1: i32, %arg2: memref<16x32xbf16, #tpu.memory_space<vmem>>, %arg3: memref<32x128xbf16, #tpu.memory_space<vmem>>, %arg4: memref<16x128xbf16, #tpu.memory_space<vmem>>) attributes {dimension_semantics = [#tpu.dimension_semantics<parallel>, #tpu.dimension_semantics<parallel>], iteration_bounds = array<i64: 1, 1>, scalar_prefetch = 0 : i64, scratch_operands = 0 : i64, tpu.core_type = #tpu.core_type<tc>, window_params = [{transform_indices = @transform_0, window_bounds = array<i64: 16, 32>}, {transform_indices = @transform_1, window_bounds = array<i64: 32, 128>}, {transform_indices = @transform_2, window_bounds = array<i64: 16, 128>}]} {
    %c0 = arith.constant 0 : index
    %c0_0 = arith.constant 0 : index
    %0 = vector.load %arg2[%c0, %c0_0] : memref<16x32xbf16, #tpu.memory_space<vmem>>, vector<16x32xbf16>
    %c0_1 = arith.constant 0 : index
    %c0_2 = arith.constant 0 : index
    %1 = vector.load %arg3[%c0_1, %c0_2] : memref<32x128xbf16, #tpu.memory_space<vmem>>, vector<32x128xbf16>
    %cst = arith.constant dense<0.000000e+00> : vector<16x128xf32>
    %2 = tpu.matmul %0, %1, %cst {dimension_numbers = #tpu.dot_dimension_numbers<[1], [0], [0], [1], [0, 0, 1, 1], [], []>} : vector<16x32xbf16>, vector<32x128xbf16>, vector<16x128xf32> -> vector<16x128xf32>
    %3 = arith.truncf %2 : vector<16x128xf32> to vector<16x128xbf16>
    %c0_3 = arith.constant 0 : index
    %c0_4 = arith.constant 0 : index
    %4 = vector.load %arg4[%c0_3, %c0_4] : memref<16x128xbf16, #tpu.memory_space<vmem>>, vector<16x128xbf16>
    tpu.vector_store %arg4[%c0_3, %c0_4], %3 {strides = array<i32>} : memref<16x128xbf16, #tpu.memory_space<vmem>>, vector<16x128xbf16>,
    return
  }
  func.func @transform_0(%arg0: i32, %arg1: i32) -> (i32, i32) {
    %c0_i32 = arith.constant 0 : i32
    %c0_i32_0 = arith.constant 0 : i32
    return %arg0, %c0_i32 : i32, i32
  }
  func.func @transform_1(%arg0: i32, %arg1: i32) -> (i32, i32) {
    %c0_i32 = arith.constant 0 : i32
    %c0_i32_0 = arith.constant 0 : i32
    return %c0_i32, %arg1 : i32, i32
  }
  func.func @transform_2(%arg0: i32, %arg1: i32) -> (i32, i32) {
    %c0_i32 = arith.constant 0 : i32
    return %arg0, %arg1 : i32, i32
  }
}

module attributes {stable_mosaic.version = 11 : i64} {
  func.func @_emb_kernel(%arg0: i32, %arg1: memref<16x16xbf16, #tpu.memory_space<vmem>>, %arg2: memref<16x32xbf16, #tpu.memory_space<vmem>>, %arg3: memref<1x32xf32, #tpu.memory_space<vmem>>, %arg4: memref<1x32xf32, #tpu.memory_space<vmem>>, %arg5: memref<1x32xf32, #tpu.memory_space<vmem>>, %arg6: memref<16x32xbf16, #tpu.memory_space<vmem>>, %arg7: memref<16x32xbf16, #tpu.memory_space<vmem>>) attributes {dimension_semantics = [#tpu.dimension_semantics<parallel>], iteration_bounds = array<i64: 1>, scalar_prefetch = 0 : i64, scratch_operands = 0 : i64, tpu.core_type = #tpu.core_type<tc>, window_params = [{transform_indices = @transform_0, window_bounds = array<i64: 16, 16>}, {pipeline_mode = #tpu.pipeline_mode<synchronous>, transform_indices = @transform_1, window_bounds = array<i64: 16, 32>}, {pipeline_mode = #tpu.pipeline_mode<synchronous>, transform_indices = @transform_2, window_bounds = array<i64: 1, 32>}, {pipeline_mode = #tpu.pipeline_mode<synchronous>, transform_indices = @transform_3, window_bounds = array<i64: 1, 32>}, {pipeline_mode = #tpu.pipeline_mode<synchronous>, transform_indices = @transform_4, window_bounds = array<i64: 1, 32>}, {transform_indices = @transform_5, window_bounds = array<i64: 16, 32>}, {transform_indices = @transform_6, window_bounds = array<i64: 16, 32>}]} {
    %c0 = arith.constant 0 : index
    %c0_0 = arith.constant 0 : index
    %0 = vector.load %arg1[%c0, %c0_0] : memref<16x16xbf16, #tpu.memory_space<vmem>>, vector<16x16xbf16>
    %c0_1 = arith.constant 0 : index
    %c0_2 = arith.constant 0 : index
    %1 = vector.load %arg2[%c0_1, %c0_2] : memref<16x32xbf16, #tpu.memory_space<vmem>>, vector<16x32xbf16>
    %cst = arith.constant dense<0.000000e+00> : vector<16x32xf32>
    %2 = tpu.matmul %0, %1, %cst {dimension_numbers = #tpu.dot_dimension_numbers<[1], [0], [0], [1], [0, 0, 1, 1], [], []>} : vector<16x16xbf16>, vector<16x32xbf16>, vector<16x32xf32> -> vector<16x32xf32>
    %c0_3 = arith.constant 0 : index
    %c0_4 = arith.constant 0 : index
    %3 = vector.load %arg3[%c0_3, %c0_4] : memref<1x32xf32, #tpu.memory_space<vmem>>, vector<1x32xf32>
    %4 = vector.broadcast %3 : vector<1x32xf32> to vector<16x32xf32>
    %5 = arith.addf %2, %4 : vector<16x32xf32>
    %6 = arith.truncf %5 : vector<16x32xf32> to vector<16x32xbf16>
    %c0_5 = arith.constant 0 : index
    %c0_6 = arith.constant 0 : index
    %7 = vector.load %arg6[%c0_5, %c0_6] : memref<16x32xbf16, #tpu.memory_space<vmem>>, vector<16x32xbf16>
    tpu.vector_store %arg6[%c0_5, %c0_6], %6 {strides = array<i32>} : memref<16x32xbf16, #tpu.memory_space<vmem>>, vector<16x32xbf16>,
    %cst_7 = arith.constant dense<0.000000e+00> : vector<16xf32>
    %8 = vector.multi_reduction <add>, %5, %cst_7 [1] : vector<16x32xf32> to vector<16xf32>
    %9 = vector.shape_cast %8 : vector<16xf32> to vector<16x1xf32>
    %cst_8 = arith.constant 3.200000e+01 : f32
    %10 = vector.broadcast %cst_8 : f32 to vector<16x1xf32>
    %11 = arith.divf %9, %10 : vector<16x1xf32>
    %12 = vector.broadcast %11 : vector<16x1xf32> to vector<16x32xf32>
    %13 = arith.subf %5, %12 : vector<16x32xf32>
    %14 = arith.mulf %13, %13 : vector<16x32xf32>
    %cst_9 = arith.constant dense<0.000000e+00> : vector<16xf32>
    %15 = vector.multi_reduction <add>, %14, %cst_9 [1] : vector<16x32xf32> to vector<16xf32>
    %16 = vector.shape_cast %15 : vector<16xf32> to vector<16x1xf32>
    %cst_10 = arith.constant 3.200000e+01 : f32
    %17 = vector.broadcast %cst_10 : f32 to vector<16x1xf32>
    %18 = arith.divf %16, %17 : vector<16x1xf32>
    %19 = vector.broadcast %11 : vector<16x1xf32> to vector<16x32xf32>
    %20 = arith.subf %5, %19 : vector<16x32xf32>
    %cst_11 = arith.constant 9.99999974E-6 : f32
    %21 = vector.broadcast %cst_11 : f32 to vector<16x1xf32>
    %22 = arith.addf %18, %21 : vector<16x1xf32>
    %23 = math.rsqrt %22 : vector<16x1xf32>
    %24 = vector.broadcast %23 : vector<16x1xf32> to vector<16x32xf32>
    %25 = arith.mulf %20, %24 : vector<16x32xf32>
    %c0_12 = arith.constant 0 : index
    %c0_13 = arith.constant 0 : index
    %26 = vector.load %arg4[%c0_12, %c0_13] : memref<1x32xf32, #tpu.memory_space<vmem>>, vector<1x32xf32>
    %27 = vector.broadcast %26 : vector<1x32xf32> to vector<16x32xf32>
    %28 = arith.mulf %25, %27 : vector<16x32xf32>
    %c0_14 = arith.constant 0 : index
    %c0_15 = arith.constant 0 : index
    %29 = vector.load %arg5[%c0_14, %c0_15] : memref<1x32xf32, #tpu.memory_space<vmem>>, vector<1x32xf32>
    %30 = vector.broadcast %29 : vector<1x32xf32> to vector<16x32xf32>
    %31 = arith.addf %28, %30 : vector<16x32xf32>
    %32 = arith.truncf %31 : vector<16x32xf32> to vector<16x32xbf16>
    %c0_16 = arith.constant 0 : index
    %c0_17 = arith.constant 0 : index
    %33 = vector.load %arg7[%c0_16, %c0_17] : memref<16x32xbf16, #tpu.memory_space<vmem>>, vector<16x32xbf16>
    tpu.vector_store %arg7[%c0_16, %c0_17], %32 {strides = array<i32>} : memref<16x32xbf16, #tpu.memory_space<vmem>>, vector<16x32xbf16>,
    return
  }
  func.func @transform_0(%arg0: i32) -> (i32, i32) {
    %c0_i32 = arith.constant 0 : i32
    %c0_i32_0 = arith.constant 0 : i32
    return %arg0, %c0_i32 : i32, i32
  }
  func.func @transform_1(%arg0: i32) -> (i32, i32) {
    %c0_i32 = arith.constant 0 : i32
    %c0_i32_0 = arith.constant 0 : i32
    %c0_i32_1 = arith.constant 0 : i32
    return %c0_i32, %c0_i32_0 : i32, i32
  }
  func.func @transform_2(%arg0: i32) -> (i32, i32) {
    %c0_i32 = arith.constant 0 : i32
    %c0_i32_0 = arith.constant 0 : i32
    %c0_i32_1 = arith.constant 0 : i32
    return %c0_i32, %c0_i32_0 : i32, i32
  }
  func.func @transform_3(%arg0: i32) -> (i32, i32) {
    %c0_i32 = arith.constant 0 : i32
    %c0_i32_0 = arith.constant 0 : i32
    %c0_i32_1 = arith.constant 0 : i32
    return %c0_i32, %c0_i32_0 : i32, i32
  }
  func.func @transform_4(%arg0: i32) -> (i32, i32) {
    %c0_i32 = arith.constant 0 : i32
    %c0_i32_0 = arith.constant 0 : i32
    %c0_i32_1 = arith.constant 0 : i32
    return %c0_i32, %c0_i32_0 : i32, i32
  }
  func.func @transform_5(%arg0: i32) -> (i32, i32) {
    %c0_i32 = arith.constant 0 : i32
    %c0_i32_0 = arith.constant 0 : i32
    return %arg0, %c0_i32 : i32, i32
  }
  func.func @transform_6(%arg0: i32) -> (i32, i32) {
    %c0_i32 = arith.constant 0 : i32
    %c0_i32_0 = arith.constant 0 : i32
    return %arg0, %c0_i32 : i32, i32
  }
}

module attributes {stable_mosaic.version = 11 : i64} {
  func.func @_keys_kv_kernel(%arg0: i32, %arg1: memref<4x8x32xbf16, #tpu.memory_space<vmem>>, %arg2: memref<4x32x64xbf16, #tpu.memory_space<vmem>>, %arg3: memref<4x8x32xbf16, #tpu.memory_space<vmem>>, %arg4: memref<4x8x32xbf16, #tpu.memory_space<vmem>>) attributes {dimension_semantics = [#tpu.dimension_semantics<arbitrary>], iteration_bounds = array<i64: 1>, scalar_prefetch = 0 : i64, scratch_operands = 0 : i64, tpu.core_type = #tpu.core_type<tc>, window_params = [{pipeline_mode = #tpu.pipeline_mode<synchronous>, transform_indices = @transform_0, window_bounds = array<i64: 4, 8, 32>}, {pipeline_mode = #tpu.pipeline_mode<synchronous>, transform_indices = @transform_1, window_bounds = array<i64: 4, 32, 64>}, {pipeline_mode = #tpu.pipeline_mode<synchronous>, transform_indices = @transform_2, window_bounds = array<i64: 4, 8, 32>}, {pipeline_mode = #tpu.pipeline_mode<synchronous>, transform_indices = @transform_3, window_bounds = array<i64: 4, 8, 32>}]} {
    %c0 = arith.constant 0 : index
    %c0_0 = arith.constant 0 : index
    %c0_1 = arith.constant 0 : index
    %0 = vector.load %arg1[%c0, %c0_0, %c0_1] : memref<4x8x32xbf16, #tpu.memory_space<vmem>>, vector<1x8x32xbf16>
    %1 = vector.shape_cast %0 : vector<1x8x32xbf16> to vector<8x32xbf16>
    %c0_2 = arith.constant 0 : index
    %c0_3 = arith.constant 0 : index
    %c0_4 = arith.constant 0 : index
    %2 = vector.load %arg2[%c0_2, %c0_3, %c0_4] : memref<4x32x64xbf16, #tpu.memory_space<vmem>>, vector<1x32x64xbf16>
    %3 = vector.shape_cast %2 : vector<1x32x64xbf16> to vector<32x64xbf16>
    %cst = arith.constant dense<0.000000e+00> : vector<8x64xf32>
    %4 = tpu.matmul %1, %3, %cst {dimension_numbers = #tpu.dot_dimension_numbers<[1], [0], [0], [1], [0, 0, 1, 1], [], []>} : vector<8x32xbf16>, vector<32x64xbf16>, vector<8x64xf32> -> vector<8x64xf32>
    %5 = vector.extract_strided_slice %4 {offsets = [0, 0], sizes = [8, 32], strides = [1, 1]} : vector<8x64xf32> to vector<8x32xf32>
    %6 = arith.truncf %5 : vector<8x32xf32> to vector<8x32xbf16>
    %c0_5 = arith.constant 0 : index
    %c0_6 = arith.constant 0 : index
    %c0_7 = arith.constant 0 : index
    %7 = vector.load %arg3[%c0_5, %c0_6, %c0_7] : memref<4x8x32xbf16, #tpu.memory_space<vmem>>, vector<1x8x32xbf16>
    %8 = vector.shape_cast %7 : vector<1x8x32xbf16> to vector<8x32xbf16>
    %9 = vector.shape_cast %6 : vector<8x32xbf16> to vector<1x8x32xbf16>
    tpu.vector_store %arg3[%c0_5, %c0_6, %c0_7], %9 {strides = array<i32>} : memref<4x8x32xbf16, #tpu.memory_space<vmem>>, vector<1x8x32xbf16>,
    %10 = vector.extract_strided_slice %4 {offsets = [0, 32], sizes = [8, 32], strides = [1, 1]} : vector<8x64xf32> to vector<8x32xf32>
    %11 = arith.truncf %10 : vector<8x32xf32> to vector<8x32xbf16>
    %c0_8 = arith.constant 0 : index
    %c0_9 = arith.constant 0 : index
    %c0_10 = arith.constant 0 : index
    %12 = vector.load %arg4[%c0_8, %c0_9, %c0_10] : memref<4x8x32xbf16, #tpu.memory_space<vmem>>, vector<1x8x32xbf16>
    %13 = vector.shape_cast %12 : vector<1x8x32xbf16> to vector<8x32xbf16>
    %14 = vector.shape_cast %11 : vector<8x32xbf16> to vector<1x8x32xbf16>
    tpu.vector_store %arg4[%c0_8, %c0_9, %c0_10], %14 {strides = array<i32>} : memref<4x8x32xbf16, #tpu.memory_space<vmem>>, vector<1x8x32xbf16>,
    %c1 = arith.constant 1 : index
    %c0_11 = arith.constant 0 : index
    %c0_12 = arith.constant 0 : index
    %15 = vector.load %arg1[%c1, %c0_11, %c0_12] : memref<4x8x32xbf16, #tpu.memory_space<vmem>>, vector<1x8x32xbf16>
    %16 = vector.shape_cast %15 : vector<1x8x32xbf16> to vector<8x32xbf16>
    %c1_13 = arith.constant 1 : index
    %c0_14 = arith.constant 0 : index
    %c0_15 = arith.constant 0 : index
    %17 = vector.load %arg2[%c1_13, %c0_14, %c0_15] : memref<4x32x64xbf16, #tpu.memory_space<vmem>>, vector<1x32x64xbf16>
    %18 = vector.shape_cast %17 : vector<1x32x64xbf16> to vector<32x64xbf16>
    %cst_16 = arith.constant dense<0.000000e+00> : vector<8x64xf32>
    %19 = tpu.matmul %16, %18, %cst_16 {dimension_numbers = #tpu.dot_dimension_numbers<[1], [0], [0], [1], [0, 0, 1, 1], [], []>} : vector<8x32xbf16>, vector<32x64xbf16>, vector<8x64xf32> -> vector<8x64xf32>
    %20 = vector.extract_strided_slice %19 {offsets = [0, 0], sizes = [8, 32], strides = [1, 1]} : vector<8x64xf32> to vector<8x32xf32>
    %21 = arith.truncf %20 : vector<8x32xf32> to vector<8x32xbf16>
    %c1_17 = arith.constant 1 : index
    %c0_18 = arith.constant 0 : index
    %c0_19 = arith.constant 0 : index
    %22 = vector.load %arg3[%c1_17, %c0_18, %c0_19] : memref<4x8x32xbf16, #tpu.memory_space<vmem>>, vector<1x8x32xbf16>
    %23 = vector.shape_cast %22 : vector<1x8x32xbf16> to vector<8x32xbf16>
    %24 = vector.shape_cast %21 : vector<8x32xbf16> to vector<1x8x32xbf16>
    tpu.vector_store %arg3[%c1_17, %c0_18, %c0_19], %24 {strides = array<i32>} : memref<4x8x32xbf16, #tpu.memory_space<vmem>>, vector<1x8x32xbf16>,
    %25 = vector.extract_strided_slice %19 {offsets = [0, 32], sizes = [8, 32], strides = [1, 1]} : vector<8x64xf32> to vector<8x32xf32>
    %26 = arith.truncf %25 : vector<8x32xf32> to vector<8x32xbf16>
    %c1_20 = arith.constant 1 : index
    %c0_21 = arith.constant 0 : index
    %c0_22 = arith.constant 0 : index
    %27 = vector.load %arg4[%c1_20, %c0_21, %c0_22] : memref<4x8x32xbf16, #tpu.memory_space<vmem>>, vector<1x8x32xbf16>
    %28 = vector.shape_cast %27 : vector<1x8x32xbf16> to vector<8x32xbf16>
    %29 = vector.shape_cast %26 : vector<8x32xbf16> to vector<1x8x32xbf16>
    tpu.vector_store %arg4[%c1_20, %c0_21, %c0_22], %29 {strides = array<i32>} : memref<4x8x32xbf16, #tpu.memory_space<vmem>>, vector<1x8x32xbf16>,
    %c2 = arith.constant 2 : index
    %c0_23 = arith.constant 0 : index
    %c0_24 = arith.constant 0 : index
    %30 = vector.load %arg1[%c2, %c0_23, %c0_24] : memref<4x8x32xbf16, #tpu.memory_space<vmem>>, vector<1x8x32xbf16>
    %31 = vector.shape_cast %30 : vector<1x8x32xbf16> to vector<8x32xbf16>
    %c2_25 = arith.constant 2 : index
    %c0_26 = arith.constant 0 : index
    %c0_27 = arith.constant 0 : index
    %32 = vector.load %arg2[%c2_25, %c0_26, %c0_27] : memref<4x32x64xbf16, #tpu.memory_space<vmem>>, vector<1x32x64xbf16>
    %33 = vector.shape_cast %32 : vector<1x32x64xbf16> to vector<32x64xbf16>
    %cst_28 = arith.constant dense<0.000000e+00> : vector<8x64xf32>
    %34 = tpu.matmul %31, %33, %cst_28 {dimension_numbers = #tpu.dot_dimension_numbers<[1], [0], [0], [1], [0, 0, 1, 1], [], []>} : vector<8x32xbf16>, vector<32x64xbf16>, vector<8x64xf32> -> vector<8x64xf32>
    %35 = vector.extract_strided_slice %34 {offsets = [0, 0], sizes = [8, 32], strides = [1, 1]} : vector<8x64xf32> to vector<8x32xf32>
    %36 = arith.truncf %35 : vector<8x32xf32> to vector<8x32xbf16>
    %c2_29 = arith.constant 2 : index
    %c0_30 = arith.constant 0 : index
    %c0_31 = arith.constant 0 : index
    %37 = vector.load %arg3[%c2_29, %c0_30, %c0_31] : memref<4x8x32xbf16, #tpu.memory_space<vmem>>, vector<1x8x32xbf16>
    %38 = vector.shape_cast %37 : vector<1x8x32xbf16> to vector<8x32xbf16>
    %39 = vector.shape_cast %36 : vector<8x32xbf16> to vector<1x8x32xbf16>
    tpu.vector_store %arg3[%c2_29, %c0_30, %c0_31], %39 {strides = array<i32>} : memref<4x8x32xbf16, #tpu.memory_space<vmem>>, vector<1x8x32xbf16>,
    %40 = vector.extract_strided_slice %34 {offsets = [0, 32], sizes = [8, 32], strides = [1, 1]} : vector<8x64xf32> to vector<8x32xf32>
    %41 = arith.truncf %40 : vector<8x32xf32> to vector<8x32xbf16>
    %c2_32 = arith.constant 2 : index
    %c0_33 = arith.constant 0 : index
    %c0_34 = arith.constant 0 : index
    %42 = vector.load %arg4[%c2_32, %c0_33, %c0_34] : memref<4x8x32xbf16, #tpu.memory_space<vmem>>, vector<1x8x32xbf16>
    %43 = vector.shape_cast %42 : vector<1x8x32xbf16> to vector<8x32xbf16>
    %44 = vector.shape_cast %41 : vector<8x32xbf16> to vector<1x8x32xbf16>
    tpu.vector_store %arg4[%c2_32, %c0_33, %c0_34], %44 {strides = array<i32>} : memref<4x8x32xbf16, #tpu.memory_space<vmem>>, vector<1x8x32xbf16>,
    %c3 = arith.constant 3 : index
    %c0_35 = arith.constant 0 : index
    %c0_36 = arith.constant 0 : index
    %45 = vector.load %arg1[%c3, %c0_35, %c0_36] : memref<4x8x32xbf16, #tpu.memory_space<vmem>>, vector<1x8x32xbf16>
    %46 = vector.shape_cast %45 : vector<1x8x32xbf16> to vector<8x32xbf16>
    %c3_37 = arith.constant 3 : index
    %c0_38 = arith.constant 0 : index
    %c0_39 = arith.constant 0 : index
    %47 = vector.load %arg2[%c3_37, %c0_38, %c0_39] : memref<4x32x64xbf16, #tpu.memory_space<vmem>>, vector<1x32x64xbf16>
    %48 = vector.shape_cast %47 : vector<1x32x64xbf16> to vector<32x64xbf16>
    %cst_40 = arith.constant dense<0.000000e+00> : vector<8x64xf32>
    %49 = tpu.matmul %46, %48, %cst_40 {dimension_numbers = #tpu.dot_dimension_numbers<[1], [0], [0], [1], [0, 0, 1, 1], [], []>} : vector<8x32xbf16>, vector<32x64xbf16>, vector<8x64xf32> -> vector<8x64xf32>
    %50 = vector.extract_strided_slice %49 {offsets = [0, 0], sizes = [8, 32], strides = [1, 1]} : vector<8x64xf32> to vector<8x32xf32>
    %51 = arith.truncf %50 : vector<8x32xf32> to vector<8x32xbf16>
    %c3_41 = arith.constant 3 : index
    %c0_42 = arith.constant 0 : index
    %c0_43 = arith.constant 0 : index
    %52 = vector.load %arg3[%c3_41, %c0_42, %c0_43] : memref<4x8x32xbf16, #tpu.memory_space<vmem>>, vector<1x8x32xbf16>
    %53 = vector.shape_cast %52 : vector<1x8x32xbf16> to vector<8x32xbf16>
    %54 = vector.shape_cast %51 : vector<8x32xbf16> to vector<1x8x32xbf16>
    tpu.vector_store %arg3[%c3_41, %c0_42, %c0_43], %54 {strides = array<i32>} : memref<4x8x32xbf16, #tpu.memory_space<vmem>>, vector<1x8x32xbf16>,
    %55 = vector.extract_strided_slice %49 {offsets = [0, 32], sizes = [8, 32], strides = [1, 1]} : vector<8x64xf32> to vector<8x32xf32>
    %56 = arith.truncf %55 : vector<8x32xf32> to vector<8x32xbf16>
    %c3_44 = arith.constant 3 : index
    %c0_45 = arith.constant 0 : index
    %c0_46 = arith.constant 0 : index
    %57 = vector.load %arg4[%c3_44, %c0_45, %c0_46] : memref<4x8x32xbf16, #tpu.memory_space<vmem>>, vector<1x8x32xbf16>
    %58 = vector.shape_cast %57 : vector<1x8x32xbf16> to vector<8x32xbf16>
    %59 = vector.shape_cast %56 : vector<8x32xbf16> to vector<1x8x32xbf16>
    tpu.vector_store %arg4[%c3_44, %c0_45, %c0_46], %59 {strides = array<i32>} : memref<4x8x32xbf16, #tpu.memory_space<vmem>>, vector<1x8x32xbf16>,
    return
  }
  func.func @transform_0(%arg0: i32) -> (i32, i32, i32) {
    %c0_i32 = arith.constant 0 : i32
    %c0_i32_0 = arith.constant 0 : i32
    %c0_i32_1 = arith.constant 0 : i32
    %c0_i32_2 = arith.constant 0 : i32
    return %c0_i32, %c0_i32_0, %c0_i32_1 : i32, i32, i32
  }
  func.func @transform_1(%arg0: i32) -> (i32, i32, i32) {
    %c0_i32 = arith.constant 0 : i32
    %c0_i32_0 = arith.constant 0 : i32
    %c0_i32_1 = arith.constant 0 : i32
    %c0_i32_2 = arith.constant 0 : i32
    return %c0_i32, %c0_i32_0, %c0_i32_1 : i32, i32, i32
  }
  func.func @transform_2(%arg0: i32) -> (i32, i32, i32) {
    %c0_i32 = arith.constant 0 : i32
    %c0_i32_0 = arith.constant 0 : i32
    %c0_i32_1 = arith.constant 0 : i32
    %c0_i32_2 = arith.constant 0 : i32
    return %c0_i32, %c0_i32_0, %c0_i32_1 : i32, i32, i32
  }
  func.func @transform_3(%arg0: i32) -> (i32, i32, i32) {
    %c0_i32 = arith.constant 0 : i32
    %c0_i32_0 = arith.constant 0 : i32
    %c0_i32_1 = arith.constant 0 : i32
    %c0_i32_2 = arith.constant 0 : i32
    return %c0_i32, %c0_i32_0, %c0_i32_1 : i32, i32, i32
  }
}

module attributes {stable_mosaic.version = 11 : i64} {
  func.func @_post_attn_kernel(%arg0: i32, %arg1: i32, %arg2: memref<16x128xbf16, #tpu.memory_space<vmem>>, %arg3: memref<128x32xbf16, #tpu.memory_space<vmem>>, %arg4: memref<1x32xf32, #tpu.memory_space<vmem>>, %arg5: memref<16x32xbf16, #tpu.memory_space<vmem>>, %arg6: memref<1x32xf32, #tpu.memory_space<vmem>>, %arg7: memref<1x32xf32, #tpu.memory_space<vmem>>, %arg8: memref<32x128xbf16, #tpu.memory_space<vmem>>, %arg9: memref<1x128xf32, #tpu.memory_space<vmem>>, %arg10: memref<128x32xbf16, #tpu.memory_space<vmem>>, %arg11: memref<1x32xf32, #tpu.memory_space<vmem>>, %arg12: memref<16x32xbf16, #tpu.memory_space<vmem>>, %arg13: memref<16x32xbf16, #tpu.memory_space<vmem>>, %arg14: memref<16x32xf32, #tpu.memory_space<vmem>>) attributes {dimension_semantics = [#tpu.dimension_semantics<parallel>, #tpu.dimension_semantics<arbitrary>], iteration_bounds = array<i64: 1, 1>, scalar_prefetch = 0 : i64, scratch_operands = 2 : i64, tpu.core_type = #tpu.core_type<tc>, window_params = [{transform_indices = @transform_0, window_bounds = array<i64: 16, 128>}, {pipeline_mode = #tpu.pipeline_mode<synchronous>, transform_indices = @transform_1, window_bounds = array<i64: 128, 32>}, {pipeline_mode = #tpu.pipeline_mode<synchronous>, transform_indices = @transform_2, window_bounds = array<i64: 1, 32>}, {transform_indices = @transform_3, window_bounds = array<i64: 16, 32>}, {pipeline_mode = #tpu.pipeline_mode<synchronous>, transform_indices = @transform_4, window_bounds = array<i64: 1, 32>}, {pipeline_mode = #tpu.pipeline_mode<synchronous>, transform_indices = @transform_5, window_bounds = array<i64: 1, 32>}, {transform_indices = @transform_6, window_bounds = array<i64: 32, 128>}, {transform_indices = @transform_7, window_bounds = array<i64: 1, 128>}, {transform_indices = @transform_8, window_bounds = array<i64: 128, 32>}, {pipeline_mode = #tpu.pipeline_mode<synchronous>, transform_indices = @transform_9, window_bounds = array<i64: 1, 32>}, {transform_indices = @transform_10, window_bounds = array<i64: 16, 32>}]} {
    %c0_i32 = arith.constant 0 : i32
    %0 = arith.cmpi eq, %arg1, %c0_i32 : i32
    %1 = arith.extui %0 : i1 to i32
    %c0_i32_0 = arith.constant 0 : i32
    %2 = arith.cmpi ne, %1, %c0_i32_0 : i32
    scf.if %2 {
      %c0_16 = arith.constant 0 : index
      %c0_17 = arith.constant 0 : index
      %20 = vector.load %arg2[%c0_16, %c0_17] : memref<16x128xbf16, #tpu.memory_space<vmem>>, vector<16x128xbf16>
      %c0_18 = arith.constant 0 : index
      %c0_19 = arith.constant 0 : index
      %21 = vector.load %arg3[%c0_18, %c0_19] : memref<128x32xbf16, #tpu.memory_space<vmem>>, vector<128x32xbf16>
      %cst_20 = arith.constant dense<0.000000e+00> : vector<16x32xf32>
      %22 = tpu.matmul %20, %21, %cst_20 {dimension_numbers = #tpu.dot_dimension_numbers<[1], [0], [0], [1], [0, 0, 1, 1], [], []>} : vector<16x128xbf16>, vector<128x32xbf16>, vector<16x32xf32> -> vector<16x32xf32>
      %c0_21 = arith.constant 0 : index
      %c0_22 = arith.constant 0 : index
      %23 = vector.load %arg4[%c0_21, %c0_22] : memref<1x32xf32, #tpu.memory_space<vmem>>, vector<1x32xf32>
      %24 = vector.broadcast %23 : vector<1x32xf32> to vector<16x32xf32>
      %25 = arith.addf %22, %24 : vector<16x32xf32>
      %c0_23 = arith.constant 0 : index
      %c0_24 = arith.constant 0 : index
      %26 = vector.load %arg5[%c0_23, %c0_24] : memref<16x32xbf16, #tpu.memory_space<vmem>>, vector<16x32xbf16>
      %27 = arith.extf %26 : vector<16x32xbf16> to vector<16x32xf32>
      %28 = arith.addf %25, %27 : vector<16x32xf32>
      %c0_25 = arith.constant 0 : index
      %c0_26 = arith.constant 0 : index
      %29 = vector.load %arg14[%c0_25, %c0_26] : memref<16x32xf32, #tpu.memory_space<vmem>>, vector<16x32xf32>
      tpu.vector_store %arg14[%c0_25, %c0_26], %28 {strides = array<i32>} : memref<16x32xf32, #tpu.memory_space<vmem>>, vector<16x32xf32>,
      %cst_27 = arith.constant dense<0.000000e+00> : vector<16xf32>
      %30 = vector.multi_reduction <add>, %28, %cst_27 [1] : vector<16x32xf32> to vector<16xf32>
      %31 = vector.shape_cast %30 : vector<16xf32> to vector<16x1xf32>
      %cst_28 = arith.constant 3.200000e+01 : f32
      %32 = vector.broadcast %cst_28 : f32 to vector<16x1xf32>
      %33 = arith.divf %31, %32 : vector<16x1xf32>
      %34 = vector.broadcast %33 : vector<16x1xf32> to vector<16x32xf32>
      %35 = arith.subf %28, %34 : vector<16x32xf32>
      %36 = arith.mulf %35, %35 : vector<16x32xf32>
      %cst_29 = arith.constant dense<0.000000e+00> : vector<16xf32>
      %37 = vector.multi_reduction <add>, %36, %cst_29 [1] : vector<16x32xf32> to vector<16xf32>
      %38 = vector.shape_cast %37 : vector<16xf32> to vector<16x1xf32>
      %cst_30 = arith.constant 3.200000e+01 : f32
      %39 = vector.broadcast %cst_30 : f32 to vector<16x1xf32>
      %40 = arith.divf %38, %39 : vector<16x1xf32>
      %41 = vector.broadcast %33 : vector<16x1xf32> to vector<16x32xf32>
      %42 = arith.subf %28, %41 : vector<16x32xf32>
      %cst_31 = arith.constant 9.99999974E-6 : f32
      %43 = vector.broadcast %cst_31 : f32 to vector<16x1xf32>
      %44 = arith.addf %40, %43 : vector<16x1xf32>
      %45 = math.rsqrt %44 : vector<16x1xf32>
      %46 = vector.broadcast %45 : vector<16x1xf32> to vector<16x32xf32>
      %47 = arith.mulf %42, %46 : vector<16x32xf32>
      %c0_32 = arith.constant 0 : index
      %c0_33 = arith.constant 0 : index
      %48 = vector.load %arg6[%c0_32, %c0_33] : memref<1x32xf32, #tpu.memory_space<vmem>>, vector<1x32xf32>
      %49 = vector.broadcast %48 : vector<1x32xf32> to vector<16x32xf32>
      %50 = arith.mulf %47, %49 : vector<16x32xf32>
      %c0_34 = arith.constant 0 : index
      %c0_35 = arith.constant 0 : index
      %51 = vector.load %arg7[%c0_34, %c0_35] : memref<1x32xf32, #tpu.memory_space<vmem>>, vector<1x32xf32>
      %52 = vector.broadcast %51 : vector<1x32xf32> to vector<16x32xf32>
      %53 = arith.addf %50, %52 : vector<16x32xf32>
      %54 = arith.truncf %53 : vector<16x32xf32> to vector<16x32xbf16>
      %c0_36 = arith.constant 0 : index
      %c0_37 = arith.constant 0 : index
      %55 = vector.load %arg13[%c0_36, %c0_37] : memref<16x32xbf16, #tpu.memory_space<vmem>>, vector<16x32xbf16>
      tpu.vector_store %arg13[%c0_36, %c0_37], %54 {strides = array<i32>} : memref<16x32xbf16, #tpu.memory_space<vmem>>, vector<16x32xbf16>,
    } else {
    }
    %c0 = arith.constant 0 : index
    %c0_1 = arith.constant 0 : index
    %3 = vector.load %arg13[%c0, %c0_1] : memref<16x32xbf16, #tpu.memory_space<vmem>>, vector<16x32xbf16>
    %c0_2 = arith.constant 0 : index
    %c0_3 = arith.constant 0 : index
    %4 = vector.load %arg8[%c0_2, %c0_3] : memref<32x128xbf16, #tpu.memory_space<vmem>>, vector<32x128xbf16>
    %cst = arith.constant dense<0.000000e+00> : vector<16x128xf32>
    %5 = tpu.matmul %3, %4, %cst {dimension_numbers = #tpu.dot_dimension_numbers<[1], [0], [0], [1], [0, 0, 1, 1], [], []>} : vector<16x32xbf16>, vector<32x128xbf16>, vector<16x128xf32> -> vector<16x128xf32>
    %c0_4 = arith.constant 0 : index
    %c0_5 = arith.constant 0 : index
    %6 = vector.load %arg9[%c0_4, %c0_5] : memref<1x128xf32, #tpu.memory_space<vmem>>, vector<1x128xf32>
    %7 = vector.broadcast %6 : vector<1x128xf32> to vector<16x128xf32>
    %8 = arith.addf %5, %7 : vector<16x128xf32>
    %cst_6 = arith.constant 0.000000e+00 : f32
    %9 = vector.broadcast %cst_6 : f32 to vector<16x128xf32>
    %10 = arith.maximumf %8, %9 : vector<16x128xf32>
    %11 = arith.truncf %10 : vector<16x128xf32> to vector<16x128xbf16>
    %c0_7 = arith.constant 0 : index
    %c0_8 = arith.constant 0 : index
    %12 = vector.load %arg14[%c0_7, %c0_8] : memref<16x32xf32, #tpu.memory_space<vmem>>, vector<16x32xf32>
    %c0_9 = arith.constant 0 : index
    %c0_10 = arith.constant 0 : index
    %13 = vector.load %arg10[%c0_9, %c0_10] : memref<128x32xbf16, #tpu.memory_space<vmem>>, vector<128x32xbf16>
    %cst_11 = arith.constant dense<0.000000e+00> : vector<16x32xf32>
    %14 = tpu.matmul %11, %13, %cst_11 {dimension_numbers = #tpu.dot_dimension_numbers<[1], [0], [0], [1], [0, 0, 1, 1], [], []>} : vector<16x128xbf16>, vector<128x32xbf16>, vector<16x32xf32> -> vector<16x32xf32>
    %15 = arith.addf %12, %14 : vector<16x32xf32>
    %c0_12 = arith.constant 0 : index
    %c0_13 = arith.constant 0 : index
    %16 = vector.load %arg14[%c0_12, %c0_13] : memref<16x32xf32, #tpu.memory_space<vmem>>, vector<16x32xf32>
    tpu.vector_store %arg14[%c0_12, %c0_13], %15 {strides = array<i32>} : memref<16x32xf32, #tpu.memory_space<vmem>>, vector<16x32xf32>,
    %c0_i32_14 = arith.constant 0 : i32
    %17 = arith.cmpi eq, %arg1, %c0_i32_14 : i32
    %18 = arith.extui %17 : i1 to i32
    %c0_i32_15 = arith.constant 0 : i32
    %19 = arith.cmpi ne, %18, %c0_i32_15 : i32
    scf.if %19 {
      %c0_16 = arith.constant 0 : index
      %c0_17 = arith.constant 0 : index
      %20 = vector.load %arg14[%c0_16, %c0_17] : memref<16x32xf32, #tpu.memory_space<vmem>>, vector<16x32xf32>
      %c0_18 = arith.constant 0 : index
      %c0_19 = arith.constant 0 : index
      %21 = vector.load %arg11[%c0_18, %c0_19] : memref<1x32xf32, #tpu.memory_space<vmem>>, vector<1x32xf32>
      %22 = vector.broadcast %21 : vector<1x32xf32> to vector<16x32xf32>
      %23 = arith.addf %20, %22 : vector<16x32xf32>
      %24 = arith.truncf %23 : vector<16x32xf32> to vector<16x32xbf16>
      %c0_20 = arith.constant 0 : index
      %c0_21 = arith.constant 0 : index
      %25 = vector.load %arg12[%c0_20, %c0_21] : memref<16x32xbf16, #tpu.memory_space<vmem>>, vector<16x32xbf16>
      tpu.vector_store %arg12[%c0_20, %c0_21], %24 {strides = array<i32>} : memref<16x32xbf16, #tpu.memory_space<vmem>>, vector<16x32xbf16>,
    } else {
    }
    return
  }
  func.func @transform_0(%arg0: i32, %arg1: i32) -> (i32, i32) {
    %c0_i32 = arith.constant 0 : i32
    %c0_i32_0 = arith.constant 0 : i32
    return %arg0, %c0_i32 : i32, i32
  }
  func.func @transform_1(%arg0: i32, %arg1: i32) -> (i32, i32) {
    %c0_i32 = arith.constant 0 : i32
    %c0_i32_0 = arith.constant 0 : i32
    %c0_i32_1 = arith.constant 0 : i32
    return %c0_i32, %c0_i32_0 : i32, i32
  }
  func.func @transform_2(%arg0: i32, %arg1: i32) -> (i32, i32) {
    %c0_i32 = arith.constant 0 : i32
    %c0_i32_0 = arith.constant 0 : i32
    %c0_i32_1 = arith.constant 0 : i32
    return %c0_i32, %c0_i32_0 : i32, i32
  }
  func.func @transform_3(%arg0: i32, %arg1: i32) -> (i32, i32) {
    %c0_i32 = arith.constant 0 : i32
    %c0_i32_0 = arith.constant 0 : i32
    return %arg0, %c0_i32 : i32, i32
  }
  func.func @transform_4(%arg0: i32, %arg1: i32) -> (i32, i32) {
    %c0_i32 = arith.constant 0 : i32
    %c0_i32_0 = arith.constant 0 : i32
    %c0_i32_1 = arith.constant 0 : i32
    return %c0_i32, %c0_i32_0 : i32, i32
  }
  func.func @transform_5(%arg0: i32, %arg1: i32) -> (i32, i32) {
    %c0_i32 = arith.constant 0 : i32
    %c0_i32_0 = arith.constant 0 : i32
    %c0_i32_1 = arith.constant 0 : i32
    return %c0_i32, %c0_i32_0 : i32, i32
  }
  func.func @transform_6(%arg0: i32, %arg1: i32) -> (i32, i32) {
    %c0_i32 = arith.constant 0 : i32
    %c0_i32_0 = arith.constant 0 : i32
    return %c0_i32, %arg1 : i32, i32
  }
  func.func @transform_7(%arg0: i32, %arg1: i32) -> (i32, i32) {
    %c0_i32 = arith.constant 0 : i32
    %c0_i32_0 = arith.constant 0 : i32
    return %c0_i32, %arg1 : i32, i32
  }
  func.func @transform_8(%arg0: i32, %arg1: i32) -> (i32, i32) {
    %c0_i32 = arith.constant 0 : i32
    %c0_i32_0 = arith.constant 0 : i32
    return %arg1, %c0_i32 : i32, i32
  }
  func.func @transform_9(%arg0: i32, %arg1: i32) -> (i32, i32) {
    %c0_i32 = arith.constant 0 : i32
    %c0_i32_0 = arith.constant 0 : i32
    %c0_i32_1 = arith.constant 0 : i32
    return %c0_i32, %c0_i32_0 : i32, i32
  }
  func.func @transform_10(%arg0: i32, %arg1: i32) -> (i32, i32) {
    %c0_i32 = arith.constant 0 : i32
    %c0_i32_0 = arith.constant 0 : i32
    return %arg0, %c0_i32 : i32, i32
  }
}

module attributes {stable_mosaic.version = 11 : i64} {
  func.func @_self_attn_split_kernel(%arg0: i32, %arg1: i32, %arg2: memref<1x1x8xf32, #tpu.memory_space<vmem>>, %arg3: memref<1x8x128xbf16, #tpu.memory_space<vmem>>, %arg4: memref<1x8x128xbf16, #tpu.memory_space<vmem>>, %arg5: memref<1x8x128xbf16, #tpu.memory_space<vmem>>, %arg6: memref<1x8x128xbf16, #tpu.memory_space<vmem>>) attributes {dimension_semantics = [#tpu.dimension_semantics<parallel>, #tpu.dimension_semantics<parallel>], iteration_bounds = array<i64: 2, 1>, scalar_prefetch = 0 : i64, scratch_operands = 0 : i64, tpu.core_type = #tpu.core_type<tc>, window_params = [{transform_indices = @transform_0, window_bounds = array<i64: 1, 1, 8>}, {transform_indices = @transform_1, window_bounds = array<i64: 1, 8, 128>}, {transform_indices = @transform_2, window_bounds = array<i64: 1, 8, 128>}, {transform_indices = @transform_3, window_bounds = array<i64: 1, 8, 128>}, {transform_indices = @transform_4, window_bounds = array<i64: 1, 8, 128>}]} {
    %c0 = arith.constant 0 : index
    %c0_0 = arith.constant 0 : index
    %c0_1 = arith.constant 0 : index
    %0 = vector.load %arg2[%c0, %c0_0, %c0_1] : memref<1x1x8xf32, #tpu.memory_space<vmem>>, vector<1x1x8xf32>
    %1 = vector.shape_cast %0 : vector<1x1x8xf32> to vector<1x8xf32>
    %cst = arith.constant 1.000000e+00 : f32
    %2 = vector.broadcast %cst : f32 to vector<1x8xf32>
    %3 = arith.subf %1, %2 : vector<1x8xf32>
    %cst_2 = arith.constant 1.000000e+09 : f32
    %4 = vector.broadcast %cst_2 : f32 to vector<1x8xf32>
    %5 = arith.mulf %3, %4 : vector<1x8xf32>
    %c0_3 = arith.constant 0 : index
    %c0_4 = arith.constant 0 : index
    %c0_5 = arith.constant 0 : index
    %6 = vector.load %arg3[%c0_3, %c0_4, %c0_5] : memref<1x8x128xbf16, #tpu.memory_space<vmem>>, vector<1x8x128xbf16>
    %7 = vector.shape_cast %6 : vector<1x8x128xbf16> to vector<8x128xbf16>
    %c0_6 = arith.constant 0 : index
    %c0_7 = arith.constant 0 : index
    %c0_8 = arith.constant 0 : index
    %8 = vector.load %arg4[%c0_6, %c0_7, %c0_8] : memref<1x8x128xbf16, #tpu.memory_space<vmem>>, vector<1x8x128xbf16>
    %9 = vector.shape_cast %8 : vector<1x8x128xbf16> to vector<8x128xbf16>
    %c0_9 = arith.constant 0 : index
    %c0_10 = arith.constant 0 : index
    %c0_11 = arith.constant 0 : index
    %10 = vector.load %arg5[%c0_9, %c0_10, %c0_11] : memref<1x8x128xbf16, #tpu.memory_space<vmem>>, vector<1x8x128xbf16>
    %11 = vector.shape_cast %10 : vector<1x8x128xbf16> to vector<8x128xbf16>
    %12 = vector.extract_strided_slice %7 {offsets = [0, 0], sizes = [8, 32], strides = [1, 1]} : vector<8x128xbf16> to vector<8x32xbf16>
    %13 = vector.extract_strided_slice %9 {offsets = [0, 0], sizes = [8, 32], strides = [1, 1]} : vector<8x128xbf16> to vector<8x32xbf16>
    %14 = vector.extract_strided_slice %11 {offsets = [0, 0], sizes = [8, 32], strides = [1, 1]} : vector<8x128xbf16> to vector<8x32xbf16>
    %cst_12 = arith.constant dense<0.000000e+00> : vector<8x8xf32>
    %15 = tpu.matmul %12, %13, %cst_12 {dimension_numbers = #tpu.dot_dimension_numbers<[1], [1], [0], [0], [0, 0, 1, 0], [], []>} : vector<8x32xbf16>, vector<8x32xbf16>, vector<8x8xf32> -> vector<8x8xf32>
    %cst_13 = arith.constant 0.176776692 : f32
    %16 = vector.broadcast %cst_13 : f32 to vector<8x8xf32>
    %17 = arith.mulf %15, %16 : vector<8x8xf32>
    %18 = vector.broadcast %5 : vector<1x8xf32> to vector<8x8xf32>
    %19 = arith.addf %17, %18 : vector<8x8xf32>
    %cst_14 = arith.constant dense<0xFF800000> : vector<8xf32>
    %20 = vector.multi_reduction <maximumf>, %19, %cst_14 [1] : vector<8x8xf32> to vector<8xf32>
    %21 = vector.shape_cast %20 : vector<8xf32> to vector<8x1xf32>
    %22 = vector.broadcast %21 : vector<8x1xf32> to vector<8x8xf32>
    %23 = arith.subf %19, %22 : vector<8x8xf32>
    %24 = math.exp %23 : vector<8x8xf32>
    %cst_15 = arith.constant dense<0.000000e+00> : vector<8xf32>
    %25 = vector.multi_reduction <add>, %24, %cst_15 [1] : vector<8x8xf32> to vector<8xf32>
    %26 = vector.shape_cast %25 : vector<8xf32> to vector<8x1xf32>
    %27 = tpu.reciprocal %26 {approx = true} : vector<8x1xf32> -> vector<8x1xf32>
    %28 = vector.broadcast %27 : vector<8x1xf32> to vector<8x8xf32>
    %29 = arith.mulf %24, %28 : vector<8x8xf32>
    %30 = arith.truncf %29 : vector<8x8xf32> to vector<8x8xbf16>
    %cst_16 = arith.constant dense<0.000000e+00> : vector<8x32xf32>
    %31 = tpu.matmul %30, %14, %cst_16 {dimension_numbers = #tpu.dot_dimension_numbers<[1], [0], [0], [1], [0, 0, 1, 1], [], []>} : vector<8x8xbf16>, vector<8x32xbf16>, vector<8x32xf32> -> vector<8x32xf32>
    %32 = arith.truncf %31 : vector<8x32xf32> to vector<8x32xbf16>
    %c0_17 = arith.constant 0 : index
    %c0_18 = arith.constant 0 : index
    %c0_19 = arith.constant 0 : index
    %33 = vector.load %arg6[%c0_17, %c0_18, %c0_19] : memref<1x8x128xbf16, #tpu.memory_space<vmem>>, vector<1x8x32xbf16>
    %34 = vector.shape_cast %33 : vector<1x8x32xbf16> to vector<8x32xbf16>
    %35 = vector.shape_cast %32 : vector<8x32xbf16> to vector<1x8x32xbf16>
    tpu.vector_store %arg6[%c0_17, %c0_18, %c0_19], %35 {strides = array<i32>} : memref<1x8x128xbf16, #tpu.memory_space<vmem>>, vector<1x8x32xbf16>,
    %36 = vector.extract_strided_slice %7 {offsets = [0, 32], sizes = [8, 32], strides = [1, 1]} : vector<8x128xbf16> to vector<8x32xbf16>
    %37 = vector.extract_strided_slice %9 {offsets = [0, 32], sizes = [8, 32], strides = [1, 1]} : vector<8x128xbf16> to vector<8x32xbf16>
    %38 = vector.extract_strided_slice %11 {offsets = [0, 32], sizes = [8, 32], strides = [1, 1]} : vector<8x128xbf16> to vector<8x32xbf16>
    %cst_20 = arith.constant dense<0.000000e+00> : vector<8x8xf32>
    %39 = tpu.matmul %36, %37, %cst_20 {dimension_numbers = #tpu.dot_dimension_numbers<[1], [1], [0], [0], [0, 0, 1, 0], [], []>} : vector<8x32xbf16>, vector<8x32xbf16>, vector<8x8xf32> -> vector<8x8xf32>
    %cst_21 = arith.constant 0.176776692 : f32
    %40 = vector.broadcast %cst_21 : f32 to vector<8x8xf32>
    %41 = arith.mulf %39, %40 : vector<8x8xf32>
    %42 = vector.broadcast %5 : vector<1x8xf32> to vector<8x8xf32>
    %43 = arith.addf %41, %42 : vector<8x8xf32>
    %cst_22 = arith.constant dense<0xFF800000> : vector<8xf32>
    %44 = vector.multi_reduction <maximumf>, %43, %cst_22 [1] : vector<8x8xf32> to vector<8xf32>
    %45 = vector.shape_cast %44 : vector<8xf32> to vector<8x1xf32>
    %46 = vector.broadcast %45 : vector<8x1xf32> to vector<8x8xf32>
    %47 = arith.subf %43, %46 : vector<8x8xf32>
    %48 = math.exp %47 : vector<8x8xf32>
    %cst_23 = arith.constant dense<0.000000e+00> : vector<8xf32>
    %49 = vector.multi_reduction <add>, %48, %cst_23 [1] : vector<8x8xf32> to vector<8xf32>
    %50 = vector.shape_cast %49 : vector<8xf32> to vector<8x1xf32>
    %51 = tpu.reciprocal %50 {approx = true} : vector<8x1xf32> -> vector<8x1xf32>
    %52 = vector.broadcast %51 : vector<8x1xf32> to vector<8x8xf32>
    %53 = arith.mulf %48, %52 : vector<8x8xf32>
    %54 = arith.truncf %53 : vector<8x8xf32> to vector<8x8xbf16>
    %cst_24 = arith.constant dense<0.000000e+00> : vector<8x32xf32>
    %55 = tpu.matmul %54, %38, %cst_24 {dimension_numbers = #tpu.dot_dimension_numbers<[1], [0], [0], [1], [0, 0, 1, 1], [], []>} : vector<8x8xbf16>, vector<8x32xbf16>, vector<8x32xf32> -> vector<8x32xf32>
    %56 = arith.truncf %55 : vector<8x32xf32> to vector<8x32xbf16>
    %c0_25 = arith.constant 0 : index
    %c0_26 = arith.constant 0 : index
    %c32 = arith.constant 32 : index
    %57 = vector.load %arg6[%c0_25, %c0_26, %c32] : memref<1x8x128xbf16, #tpu.memory_space<vmem>>, vector<1x8x32xbf16>
    %58 = vector.shape_cast %57 : vector<1x8x32xbf16> to vector<8x32xbf16>
    %59 = vector.shape_cast %56 : vector<8x32xbf16> to vector<1x8x32xbf16>
    tpu.vector_store %arg6[%c0_25, %c0_26, %c32], %59 {strides = array<i32>} : memref<1x8x128xbf16, #tpu.memory_space<vmem>>, vector<1x8x32xbf16>,
    %60 = vector.extract_strided_slice %7 {offsets = [0, 64], sizes = [8, 32], strides = [1, 1]} : vector<8x128xbf16> to vector<8x32xbf16>
    %61 = vector.extract_strided_slice %9 {offsets = [0, 64], sizes = [8, 32], strides = [1, 1]} : vector<8x128xbf16> to vector<8x32xbf16>
    %62 = vector.extract_strided_slice %11 {offsets = [0, 64], sizes = [8, 32], strides = [1, 1]} : vector<8x128xbf16> to vector<8x32xbf16>
    %cst_27 = arith.constant dense<0.000000e+00> : vector<8x8xf32>
    %63 = tpu.matmul %60, %61, %cst_27 {dimension_numbers = #tpu.dot_dimension_numbers<[1], [1], [0], [0], [0, 0, 1, 0], [], []>} : vector<8x32xbf16>, vector<8x32xbf16>, vector<8x8xf32> -> vector<8x8xf32>
    %cst_28 = arith.constant 0.176776692 : f32
    %64 = vector.broadcast %cst_28 : f32 to vector<8x8xf32>
    %65 = arith.mulf %63, %64 : vector<8x8xf32>
    %66 = vector.broadcast %5 : vector<1x8xf32> to vector<8x8xf32>
    %67 = arith.addf %65, %66 : vector<8x8xf32>
    %cst_29 = arith.constant dense<0xFF800000> : vector<8xf32>
    %68 = vector.multi_reduction <maximumf>, %67, %cst_29 [1] : vector<8x8xf32> to vector<8xf32>
    %69 = vector.shape_cast %68 : vector<8xf32> to vector<8x1xf32>
    %70 = vector.broadcast %69 : vector<8x1xf32> to vector<8x8xf32>
    %71 = arith.subf %67, %70 : vector<8x8xf32>
    %72 = math.exp %71 : vector<8x8xf32>
    %cst_30 = arith.constant dense<0.000000e+00> : vector<8xf32>
    %73 = vector.multi_reduction <add>, %72, %cst_30 [1] : vector<8x8xf32> to vector<8xf32>
    %74 = vector.shape_cast %73 : vector<8xf32> to vector<8x1xf32>
    %75 = tpu.reciprocal %74 {approx = true} : vector<8x1xf32> -> vector<8x1xf32>
    %76 = vector.broadcast %75 : vector<8x1xf32> to vector<8x8xf32>
    %77 = arith.mulf %72, %76 : vector<8x8xf32>
    %78 = arith.truncf %77 : vector<8x8xf32> to vector<8x8xbf16>
    %cst_31 = arith.constant dense<0.000000e+00> : vector<8x32xf32>
    %79 = tpu.matmul %78, %62, %cst_31 {dimension_numbers = #tpu.dot_dimension_numbers<[1], [0], [0], [1], [0, 0, 1, 1], [], []>} : vector<8x8xbf16>, vector<8x32xbf16>, vector<8x32xf32> -> vector<8x32xf32>
    %80 = arith.truncf %79 : vector<8x32xf32> to vector<8x32xbf16>
    %c0_32 = arith.constant 0 : index
    %c0_33 = arith.constant 0 : index
    %c64 = arith.constant 64 : index
    %81 = vector.load %arg6[%c0_32, %c0_33, %c64] : memref<1x8x128xbf16, #tpu.memory_space<vmem>>, vector<1x8x32xbf16>
    %82 = vector.shape_cast %81 : vector<1x8x32xbf16> to vector<8x32xbf16>
    %83 = vector.shape_cast %80 : vector<8x32xbf16> to vector<1x8x32xbf16>
    tpu.vector_store %arg6[%c0_32, %c0_33, %c64], %83 {strides = array<i32>} : memref<1x8x128xbf16, #tpu.memory_space<vmem>>, vector<1x8x32xbf16>,
    %84 = vector.extract_strided_slice %7 {offsets = [0, 96], sizes = [8, 32], strides = [1, 1]} : vector<8x128xbf16> to vector<8x32xbf16>
    %85 = vector.extract_strided_slice %9 {offsets = [0, 96], sizes = [8, 32], strides = [1, 1]} : vector<8x128xbf16> to vector<8x32xbf16>
    %86 = vector.extract_strided_slice %11 {offsets = [0, 96], sizes = [8, 32], strides = [1, 1]} : vector<8x128xbf16> to vector<8x32xbf16>
    %cst_34 = arith.constant dense<0.000000e+00> : vector<8x8xf32>
    %87 = tpu.matmul %84, %85, %cst_34 {dimension_numbers = #tpu.dot_dimension_numbers<[1], [1], [0], [0], [0, 0, 1, 0], [], []>} : vector<8x32xbf16>, vector<8x32xbf16>, vector<8x8xf32> -> vector<8x8xf32>
    %cst_35 = arith.constant 0.176776692 : f32
    %88 = vector.broadcast %cst_35 : f32 to vector<8x8xf32>
    %89 = arith.mulf %87, %88 : vector<8x8xf32>
    %90 = vector.broadcast %5 : vector<1x8xf32> to vector<8x8xf32>
    %91 = arith.addf %89, %90 : vector<8x8xf32>
    %cst_36 = arith.constant dense<0xFF800000> : vector<8xf32>
    %92 = vector.multi_reduction <maximumf>, %91, %cst_36 [1] : vector<8x8xf32> to vector<8xf32>
    %93 = vector.shape_cast %92 : vector<8xf32> to vector<8x1xf32>
    %94 = vector.broadcast %93 : vector<8x1xf32> to vector<8x8xf32>
    %95 = arith.subf %91, %94 : vector<8x8xf32>
    %96 = math.exp %95 : vector<8x8xf32>
    %cst_37 = arith.constant dense<0.000000e+00> : vector<8xf32>
    %97 = vector.multi_reduction <add>, %96, %cst_37 [1] : vector<8x8xf32> to vector<8xf32>
    %98 = vector.shape_cast %97 : vector<8xf32> to vector<8x1xf32>
    %99 = tpu.reciprocal %98 {approx = true} : vector<8x1xf32> -> vector<8x1xf32>
    %100 = vector.broadcast %99 : vector<8x1xf32> to vector<8x8xf32>
    %101 = arith.mulf %96, %100 : vector<8x8xf32>
    %102 = arith.truncf %101 : vector<8x8xf32> to vector<8x8xbf16>
    %cst_38 = arith.constant dense<0.000000e+00> : vector<8x32xf32>
    %103 = tpu.matmul %102, %86, %cst_38 {dimension_numbers = #tpu.dot_dimension_numbers<[1], [0], [0], [1], [0, 0, 1, 1], [], []>} : vector<8x8xbf16>, vector<8x32xbf16>, vector<8x32xf32> -> vector<8x32xf32>
    %104 = arith.truncf %103 : vector<8x32xf32> to vector<8x32xbf16>
    %c0_39 = arith.constant 0 : index
    %c0_40 = arith.constant 0 : index
    %c96 = arith.constant 96 : index
    %105 = vector.load %arg6[%c0_39, %c0_40, %c96] : memref<1x8x128xbf16, #tpu.memory_space<vmem>>, vector<1x8x32xbf16>
    %106 = vector.shape_cast %105 : vector<1x8x32xbf16> to vector<8x32xbf16>
    %107 = vector.shape_cast %104 : vector<8x32xbf16> to vector<1x8x32xbf16>
    tpu.vector_store %arg6[%c0_39, %c0_40, %c96], %107 {strides = array<i32>} : memref<1x8x128xbf16, #tpu.memory_space<vmem>>, vector<1x8x32xbf16>,
    return
  }
  func.func @transform_0(%arg0: i32, %arg1: i32) -> (i32, i32, i32) {
    %c0_i32 = arith.constant 0 : i32
    %c0_i32_0 = arith.constant 0 : i32
    %c0_i32_1 = arith.constant 0 : i32
    return %arg0, %c0_i32, %c0_i32_0 : i32, i32, i32
  }
  func.func @transform_1(%arg0: i32, %arg1: i32) -> (i32, i32, i32) {
    %c0_i32 = arith.constant 0 : i32
    %c0_i32_0 = arith.constant 0 : i32
    return %arg0, %arg1, %c0_i32 : i32, i32, i32
  }
  func.func @transform_2(%arg0: i32, %arg1: i32) -> (i32, i32, i32) {
    %c0_i32 = arith.constant 0 : i32
    %c1_i32 = arith.constant 1 : i32
    %c0_i32_0 = arith.constant 0 : i32
    return %arg0, %c0_i32, %c1_i32 : i32, i32, i32
  }
  func.func @transform_3(%arg0: i32, %arg1: i32) -> (i32, i32, i32) {
    %c0_i32 = arith.constant 0 : i32
    %c2_i32 = arith.constant 2 : i32
    %c0_i32_0 = arith.constant 0 : i32
    return %arg0, %c0_i32, %c2_i32 : i32, i32, i32
  }
  func.func @transform_4(%arg0: i32, %arg1: i32) -> (i32, i32, i32) {
    %c0_i32 = arith.constant 0 : i32
    %c0_i32_0 = arith.constant 0 : i32
    return %arg0, %arg1, %c0_i32 : i32, i32, i32
  }
}

module attributes {stable_mosaic.version = 11 : i64} {
  func.func @_ln_matmul_kernel(%arg0: i32, %arg1: i32, %arg2: memref<16x32xbf16, #tpu.memory_space<vmem>>, %arg3: memref<1x32xf32, #tpu.memory_space<vmem>>, %arg4: memref<1x32xf32, #tpu.memory_space<vmem>>, %arg5: memref<32x384xbf16, #tpu.memory_space<vmem>>, %arg6: memref<16x384xbf16, #tpu.memory_space<vmem>>) attributes {dimension_semantics = [#tpu.dimension_semantics<parallel>, #tpu.dimension_semantics<parallel>], iteration_bounds = array<i64: 1, 1>, scalar_prefetch = 0 : i64, scratch_operands = 0 : i64, tpu.core_type = #tpu.core_type<tc>, window_params = [{transform_indices = @transform_0, window_bounds = array<i64: 16, 32>}, {pipeline_mode = #tpu.pipeline_mode<synchronous>, transform_indices = @transform_1, window_bounds = array<i64: 1, 32>}, {pipeline_mode = #tpu.pipeline_mode<synchronous>, transform_indices = @transform_2, window_bounds = array<i64: 1, 32>}, {transform_indices = @transform_3, window_bounds = array<i64: 32, 384>}, {transform_indices = @transform_4, window_bounds = array<i64: 16, 384>}]} {
    %c0 = arith.constant 0 : index
    %c0_0 = arith.constant 0 : index
    %0 = vector.load %arg2[%c0, %c0_0] : memref<16x32xbf16, #tpu.memory_space<vmem>>, vector<16x32xbf16>
    %1 = arith.extf %0 : vector<16x32xbf16> to vector<16x32xf32>
    %cst = arith.constant dense<0.000000e+00> : vector<16xf32>
    %2 = vector.multi_reduction <add>, %1, %cst [1] : vector<16x32xf32> to vector<16xf32>
    %3 = vector.shape_cast %2 : vector<16xf32> to vector<16x1xf32>
    %cst_1 = arith.constant 3.200000e+01 : f32
    %4 = vector.broadcast %cst_1 : f32 to vector<16x1xf32>
    %5 = arith.divf %3, %4 : vector<16x1xf32>
    %6 = vector.broadcast %5 : vector<16x1xf32> to vector<16x32xf32>
    %7 = arith.subf %1, %6 : vector<16x32xf32>
    %8 = arith.mulf %7, %7 : vector<16x32xf32>
    %cst_2 = arith.constant dense<0.000000e+00> : vector<16xf32>
    %9 = vector.multi_reduction <add>, %8, %cst_2 [1] : vector<16x32xf32> to vector<16xf32>
    %10 = vector.shape_cast %9 : vector<16xf32> to vector<16x1xf32>
    %cst_3 = arith.constant 3.200000e+01 : f32
    %11 = vector.broadcast %cst_3 : f32 to vector<16x1xf32>
    %12 = arith.divf %10, %11 : vector<16x1xf32>
    %13 = vector.broadcast %5 : vector<16x1xf32> to vector<16x32xf32>
    %14 = arith.subf %1, %13 : vector<16x32xf32>
    %cst_4 = arith.constant 9.99999974E-6 : f32
    %15 = vector.broadcast %cst_4 : f32 to vector<16x1xf32>
    %16 = arith.addf %12, %15 : vector<16x1xf32>
    %17 = math.rsqrt %16 : vector<16x1xf32>
    %18 = vector.broadcast %17 : vector<16x1xf32> to vector<16x32xf32>
    %19 = arith.mulf %14, %18 : vector<16x32xf32>
    %c0_5 = arith.constant 0 : index
    %c0_6 = arith.constant 0 : index
    %20 = vector.load %arg3[%c0_5, %c0_6] : memref<1x32xf32, #tpu.memory_space<vmem>>, vector<1x32xf32>
    %21 = vector.broadcast %20 : vector<1x32xf32> to vector<16x32xf32>
    %22 = arith.mulf %19, %21 : vector<16x32xf32>
    %c0_7 = arith.constant 0 : index
    %c0_8 = arith.constant 0 : index
    %23 = vector.load %arg4[%c0_7, %c0_8] : memref<1x32xf32, #tpu.memory_space<vmem>>, vector<1x32xf32>
    %24 = vector.broadcast %23 : vector<1x32xf32> to vector<16x32xf32>
    %25 = arith.addf %22, %24 : vector<16x32xf32>
    %26 = arith.truncf %25 : vector<16x32xf32> to vector<16x32xbf16>
    %c0_9 = arith.constant 0 : index
    %c0_10 = arith.constant 0 : index
    %27 = vector.load %arg5[%c0_9, %c0_10] : memref<32x384xbf16, #tpu.memory_space<vmem>>, vector<32x384xbf16>
    %cst_11 = arith.constant dense<0.000000e+00> : vector<16x384xf32>
    %28 = tpu.matmul %26, %27, %cst_11 {dimension_numbers = #tpu.dot_dimension_numbers<[1], [0], [0], [1], [0, 0, 1, 1], [], []>} : vector<16x32xbf16>, vector<32x384xbf16>, vector<16x384xf32> -> vector<16x384xf32>
    %29 = arith.truncf %28 : vector<16x384xf32> to vector<16x384xbf16>
    %c0_12 = arith.constant 0 : index
    %c0_13 = arith.constant 0 : index
    %30 = vector.load %arg6[%c0_12, %c0_13] : memref<16x384xbf16, #tpu.memory_space<vmem>>, vector<16x384xbf16>
    tpu.vector_store %arg6[%c0_12, %c0_13], %29 {strides = array<i32>} : memref<16x384xbf16, #tpu.memory_space<vmem>>, vector<16x384xbf16>,
    return
  }
  func.func @transform_0(%arg0: i32, %arg1: i32) -> (i32, i32) {
    %c0_i32 = arith.constant 0 : i32
    %c0_i32_0 = arith.constant 0 : i32
    return %arg0, %c0_i32 : i32, i32
  }
  func.func @transform_1(%arg0: i32, %arg1: i32) -> (i32, i32) {
    %c0_i32 = arith.constant 0 : i32
    %c0_i32_0 = arith.constant 0 : i32
    %c0_i32_1 = arith.constant 0 : i32
    return %c0_i32, %c0_i32_0 : i32, i32
  }
  func.func @transform_2(%arg0: i32, %arg1: i32) -> (i32, i32) {
    %c0_i32 = arith.constant 0 : i32
    %c0_i32_0 = arith.constant 0 : i32
    %c0_i32_1 = arith.constant 0 : i32
    return %c0_i32, %c0_i32_0 : i32, i32
  }
  func.func @transform_3(%arg0: i32, %arg1: i32) -> (i32, i32) {
    %c0_i32 = arith.constant 0 : i32
    %c0_i32_0 = arith.constant 0 : i32
    return %c0_i32, %arg1 : i32, i32
  }
  func.func @transform_4(%arg0: i32, %arg1: i32) -> (i32, i32) {
    %c0_i32 = arith.constant 0 : i32
    return %arg0, %arg1 : i32, i32
  }
}

module attributes {stable_mosaic.version = 11 : i64} {
  func.func @_pool_cls_kernel(%arg0: i32, %arg1: memref<2x8x32xbf16, #tpu.memory_space<vmem>>, %arg2: memref<2x8x1xf32, #tpu.memory_space<vmem>>, %arg3: memref<32x3xf32, #tpu.memory_space<vmem>>, %arg4: memref<1x3xf32, #tpu.memory_space<vmem>>, %arg5: memref<2x3xf32, #tpu.memory_space<vmem>>) attributes {dimension_semantics = [#tpu.dimension_semantics<parallel>], iteration_bounds = array<i64: 1>, scalar_prefetch = 0 : i64, scratch_operands = 0 : i64, tpu.core_type = #tpu.core_type<tc>, window_params = [{transform_indices = @transform_0, window_bounds = array<i64: 2, 8, 32>}, {transform_indices = @transform_1, window_bounds = array<i64: 2, 8, 1>}, {pipeline_mode = #tpu.pipeline_mode<synchronous>, transform_indices = @transform_2, window_bounds = array<i64: 32, 3>}, {pipeline_mode = #tpu.pipeline_mode<synchronous>, transform_indices = @transform_3, window_bounds = array<i64: 1, 3>}, {transform_indices = @transform_4, window_bounds = array<i64: 2, 3>}]} {
    %c0 = arith.constant 0 : index
    %c0_0 = arith.constant 0 : index
    %c0_1 = arith.constant 0 : index
    %0 = vector.load %arg1[%c0, %c0_0, %c0_1] : memref<2x8x32xbf16, #tpu.memory_space<vmem>>, vector<2x8x32xbf16>
    %1 = arith.extf %0 : vector<2x8x32xbf16> to vector<2x8x32xf32>
    %c0_2 = arith.constant 0 : index
    %c0_3 = arith.constant 0 : index
    %c0_4 = arith.constant 0 : index
    %2 = vector.load %arg2[%c0_2, %c0_3, %c0_4] : memref<2x8x1xf32, #tpu.memory_space<vmem>>, vector<2x8x1xf32>
    %cst = arith.constant dense<0.000000e+00> : vector<2x1xf32>
    %3 = vector.multi_reduction <add>, %2, %cst [1] : vector<2x8x1xf32> to vector<2x1xf32>
    %4 = vector.broadcast %2 : vector<2x8x1xf32> to vector<2x8x32xf32>
    %5 = arith.mulf %1, %4 : vector<2x8x32xf32>
    %cst_5 = arith.constant dense<0.000000e+00> : vector<2x32xf32>
    %6 = vector.multi_reduction <add>, %5, %cst_5 [1] : vector<2x8x32xf32> to vector<2x32xf32>
    %7 = vector.broadcast %3 : vector<2x1xf32> to vector<2x32xf32>
    %8 = arith.divf %6, %7 : vector<2x32xf32>
    %c0_6 = arith.constant 0 : index
    %c0_7 = arith.constant 0 : index
    %9 = vector.load %arg3[%c0_6, %c0_7] : memref<32x3xf32, #tpu.memory_space<vmem>>, vector<32x3xf32>
    %cst_8 = arith.constant dense<0.000000e+00> : vector<2x3xf32>
    %10 = tpu.matmul %8, %9, %cst_8 {dimension_numbers = #tpu.dot_dimension_numbers<[1], [0], [0], [1], [0, 0, 1, 1], [], []>} : vector<2x32xf32>, vector<32x3xf32>, vector<2x3xf32> -> vector<2x3xf32>
    %c0_9 = arith.constant 0 : index
    %c0_10 = arith.constant 0 : index
    %11 = vector.load %arg4[%c0_9, %c0_10] : memref<1x3xf32, #tpu.memory_space<vmem>>, vector<1x3xf32>
    %12 = vector.broadcast %11 : vector<1x3xf32> to vector<2x3xf32>
    %13 = arith.addf %10, %12 : vector<2x3xf32>
    %c0_11 = arith.constant 0 : index
    %c0_12 = arith.constant 0 : index
    %14 = vector.load %arg5[%c0_11, %c0_12] : memref<2x3xf32, #tpu.memory_space<vmem>>, vector<2x3xf32>
    tpu.vector_store %arg5[%c0_11, %c0_12], %13 {strides = array<i32>} : memref<2x3xf32, #tpu.memory_space<vmem>>, vector<2x3xf32>,
    return
  }
  func.func @transform_0(%arg0: i32) -> (i32, i32, i32) {
    %c0_i32 = arith.constant 0 : i32
    %c0_i32_0 = arith.constant 0 : i32
    %c0_i32_1 = arith.constant 0 : i32
    return %arg0, %c0_i32, %c0_i32_0 : i32, i32, i32
  }
  func.func @transform_1(%arg0: i32) -> (i32, i32, i32) {
    %c0_i32 = arith.constant 0 : i32
    %c0_i32_0 = arith.constant 0 : i32
    %c0_i32_1 = arith.constant 0 : i32
    return %arg0, %c0_i32, %c0_i32_0 : i32, i32, i32
  }
  func.func @transform_2(%arg0: i32) -> (i32, i32) {
    %c0_i32 = arith.constant 0 : i32
    %c0_i32_0 = arith.constant 0 : i32
    %c0_i32_1 = arith.constant 0 : i32
    return %c0_i32, %c0_i32_0 : i32, i32
  }
  func.func @transform_3(%arg0: i32) -> (i32, i32) {
    %c0_i32 = arith.constant 0 : i32
    %c0_i32_0 = arith.constant 0 : i32
    %c0_i32_1 = arith.constant 0 : i32
    return %c0_i32, %c0_i32_0 : i32, i32
  }
  func.func @transform_4(%arg0: i32) -> (i32, i32) {
    %c0_i32 = arith.constant 0 : i32
    %c0_i32_0 = arith.constant 0 : i32
    return %arg0, %c0_i32 : i32, i32
  }
}

</mosaic_0001>

<llo_original>
// kernel: tpu_custom_call.1
$region0: #{tpu_custom_call.1}
  #allocation0 [shape = 'u32[]', space=smem, size = 0x4, offset = 0x4, fixed_abs, tag = 'smem constant byte address 0x4 - core index']
  #allocation1 [shape = 'u32[72,128]{1,0:T(1,128)}', space=vmem, size = 0x9000, scoped, tag = 'internal scratch']
  %s0 = inlined_call_operand.hbm [shape: f32[8,128], index: 0, kind: input, shape index: {}]
  %s1 = inlined_call_operand.hbm [shape: f32[8,128], index: 1, kind: output, shape index: {}]
  %s2 = sld [smem:[#allocation0]]
  $region41: #{tpu_custom_call.1} parent=0
    _
  %s4 = ssub.s32 1, %s2
  %s5 = scalar_select 0, %s4, %s2
  $region1: #{tpu_custom_call.1} parent=0
    #allocation2 [shape = 'u8[4096]{0}', space=vmem, size = 0x1000, scoped, tag = 'input window, operand 0, single buffered']
    #allocation3 [shape = 's32[2]{0}', space=sflag, size = 0x8, scoped, tag = 'scoped memory for tpu_custom_call.1']
    #allocation4 [shape = 's32[2]{0}', space=sflag, size = 0x8, scoped, tag = 'scoped memory for tpu_custom_call.1']
    #allocation5 [shape = 'u8[4096]{0}', space=vmem, size = 0x1000, scoped, tag = 'output window, operand 0, single buffered']
    %6 = vsyncpa [#allocation3], 0
    %7 = vsyncpa [#allocation4], 0
    loop: start=0, step=1, limit=4
    $region2: #{tpu_custom_call.1} parent=1 // loop_pre_header
      _
    $region3: #{tpu_custom_call.1} parent=1 // loop_header
      %s9 = sphi 0, %s13
      %p10 = scmp.ge.s32.totalorder %s9, 4
      %s17 = sphi 0, %s17
      %s19 = sphi 0, %s17
      %s20 = sphi 0, %s19
      %s34 = sphi 0, %s20
      %s38 = sphi 0, %s38
      %s40 = sphi 0, %s38
      %s41 = sphi 0, %s40
      %s55 = sphi 0, %s41
    $region4: #{tpu_custom_call.1} parent=1 // loop_header_branch
      %12 = sbr.rel (%p10) target = $region8
    $region5: #{tpu_custom_call.1} parent=1 // loop_body
      %s14 = ssub.s32 %s9, 1
      %s15 = ssub.s32 %s9, 2
      %s16 = sadd.s32 %s9, 1
      %s18 = sadd.s32 %s17, 1
      %p21 = scmp.eq.s32.totalorder %s9, 1
      %p22 = scmp.ne.s32.totalorder %s17, %s19
      %p23 = scmp.eq.s32.totalorder %s9, 0
      %p24 = por %p22, %p23
      %p25 = scmp.ne.s32.totalorder %s17, %s19
      %p26 = scmp.eq.s32.totalorder %s14, 1
      %p27 = por %p25, %p26
      %p28 = scmp.ne.s32.totalorder %s19, %s20
      %p29 = scmp.eq.s32.totalorder %s14, 0
      %p30 = por %p28, %p29
      %p31 = scmp.ne.s32.totalorder %s19, %s20
      %p32 = scmp.eq.s32.totalorder %s15, 1
      %p33 = por %p31, %p32
      %p35 = scmp.ne.s32.totalorder %s20, %s34
      %p36 = scmp.eq.s32.totalorder %s15, 0
      %p37 = por %p35, %p36
      %s39 = sadd.s32 %s38, 1
      %p42 = scmp.eq.s32.totalorder %s9, 1
      %p43 = scmp.ne.s32.totalorder %s38, %s40
      %p44 = scmp.eq.s32.totalorder %s9, 0
      %p45 = por %p43, %p44
      %p46 = scmp.ne.s32.totalorder %s38, %s40
      %p47 = scmp.eq.s32.totalorder %s14, 1
      %p48 = por %p46, %p47
      %p49 = scmp.ne.s32.totalorder %s40, %s41
      %p50 = scmp.eq.s32.totalorder %s14, 0
      %p51 = por %p49, %p50
      %p52 = scmp.ne.s32.totalorder %s40, %s41
      %p53 = scmp.eq.s32.totalorder %s15, 1
      %p54 = por %p52, %p53
      %p56 = scmp.ne.s32.totalorder %s41, %s55
      %p57 = scmp.eq.s32.totalorder %s15, 0
      %p58 = por %p56, %p57
      %p59 = scmp.le.s32.totalorder 1, %s9
      %p60 = scmp.lt.s32.totalorder %s9, 3
      %p61 = pnand %p59, %p60
      %p62 = pneg %p61
      // Predicated region
      $region9: #{tpu_custom_call.1} parent=5 // pred_check
        _
      $region10: #{tpu_custom_call.1} parent=5 // pred_check_branch
        %64 = sbr.rel (%p61) target = $region12
      $region11: #{tpu_custom_call.1} parent=5 // pred_region
        %s65 = ssub.s32 %s9, 1
        // Predicated region
        $region13: #{tpu_custom_call.1} parent=11 // pred_check
          %p66 = pneg %p30
        $region14: #{tpu_custom_call.1} parent=11 // pred_check_branch
          %68 = sbr.rel (%p66) target = $region16
        $region15: #{tpu_custom_call.1} parent=11 // pred_region
          %70 = vsyncadd [#allocation3], 0
          %s72 = sshll.u32 %s0, 4
          %s73 = int_to_ptr.hbm [resolvable:$true] %s72
          %s74 = sshll.u32 [#allocation2], 4
          %s75 = int_to_ptr.vmem [resolvable:$true] %s74
          %77 = dma.hbm_to_vmem [thread:$0]  %s73, 128, %s75, [#allocation3]
        $region16: #{tpu_custom_call.1} parent=11 // pred_fallthru
          _
      $region12: #{tpu_custom_call.1} parent=5 // pred_fallthru
        _
      %p78 = scmp.lt.s32.totalorder %s9, 2
      // Predicated region
      $region17: #{tpu_custom_call.1} parent=5 // pred_check
        %p79 = pneg %p78
      $region18: #{tpu_custom_call.1} parent=5 // pred_check_branch
        %81 = sbr.rel (%p79) target = $region20
      $region19: #{tpu_custom_call.1} parent=5 // pred_region
        _
      $region20: #{tpu_custom_call.1} parent=5 // pred_fallthru
        _
      %p82 = scmp.le.s32.totalorder 1, %s9
      %p83 = scmp.lt.s32.totalorder %s9, 3
      %p84 = pnand %p82, %p83
      %p85 = pneg %p84
      // Predicated region
      $region21: #{tpu_custom_call.1} parent=5 // pred_check
        _
      $region22: #{tpu_custom_call.1} parent=5 // pred_check_branch
        %87 = sbr.rel (%p84) target = $region24
      $region23: #{tpu_custom_call.1} parent=5 // pred_region
        %s88 = ssub.s32 %s9, 1
        // Predicated region
        $region25: #{tpu_custom_call.1} parent=23 // pred_check
          %p89 = pneg %p30
        $region26: #{tpu_custom_call.1} parent=23 // pred_check_branch
          %91 = sbr.rel (%p89) target = $region28
        $region27: #{tpu_custom_call.1} parent=23 // pred_region
          %93 = dma.done [#allocation3], 128
        $region28: #{tpu_custom_call.1} parent=23 // pred_fallthru
          _
        %p94 = pneg %p30
        %p95 = pneg %p27
        %p96 = pneg %p51
        %p97 = pneg %p48
        %v98 = vld [vmem:[#allocation2] sm:$0xff]
        %v99 = vadd.f32 %v98, 1.0
        %100 = vst [vmem:[#allocation5] sm:$0xff] %v99
        // Predicated region
        $region29: #{tpu_custom_call.1} parent=23 // pred_check
          %p101 = pneg %p48
        $region30: #{tpu_custom_call.1} parent=23 // pred_check_branch
          %103 = sbr.rel (%p101) target = $region32
        $region31: #{tpu_custom_call.1} parent=23 // pred_region
          %105 = vsyncadd [#allocation4], 0
          %s107 = sshll.u32 [#allocation5], 4
          %s108 = int_to_ptr.vmem [resolvable:$true] %s107
          %s109 = sshll.u32 %s1, 4
          %s110 = int_to_ptr.hbm [resolvable:$true] %s109
          %112 = dma.vmem_to_hbm [thread:$0]  %s108, 128, %s110, [#allocation4]
        $region32: #{tpu_custom_call.1} parent=23 // pred_fallthru
          _
        // Predicated region
        $region33: #{tpu_custom_call.1} parent=23 // pred_check
          %p113 = pneg %p48
        $region34: #{tpu_custom_call.1} parent=23 // pred_check_branch
          %115 = sbr.rel (%p113) target = $region36
        $region35: #{tpu_custom_call.1} parent=23 // pred_region
          %117 = dma.done [#allocation4], 128
        $region36: #{tpu_custom_call.1} parent=23 // pred_fallthru
          _
      $region24: #{tpu_custom_call.1} parent=5 // pred_fallthru
        _
      %p118 = scmp.le.s32.totalorder 2, %s9
      // Predicated region
      $region37: #{tpu_custom_call.1} parent=5 // pred_check
        %p119 = pneg %p118
      $region38: #{tpu_custom_call.1} parent=5 // pred_check_branch
        %121 = sbr.rel (%p119) target = $region40
      $region39: #{tpu_custom_call.1} parent=5 // pred_region
        %s122 = ssub.s32 %s9, 2
      $region40: #{tpu_custom_call.1} parent=5 // pred_fallthru
        _
    $region6: #{tpu_custom_call.1} parent=1 // loop_footer
      %s13 = sadd.s32 1, %s9
    $region7: #{tpu_custom_call.1} parent=1 // loop_footer_branch
      %8 = sbr.rel target = $region3
    $region8: #{tpu_custom_call.1} parent=1 // loop_exit
      _
    %123 = vsyncpa [#allocation3], 1
    %s124 = scalar_lea.sflag [#allocation3], 1
    %125 = vsyncpa %s124, 1
    %126 = vsyncpa [#allocation4], 1
    %s127 = scalar_lea.sflag [#allocation4], 1
    %128 = vsyncpa %s127, 1

// kernel: transformer_forward.12
$region0: #{transformer_forward.12}
  #allocation0 [shape = 'u32[]', space=smem, size = 0x4, offset = 0x4, fixed_abs, tag = 'smem constant byte address 0x4 - core index']
  #allocation1 [shape = 'u32[72,128]{1,0:T(1,128)}', space=vmem, size = 0x9000, scoped, tag = 'internal scratch']
  %s0 = inlined_call_operand.vmem [shape: bf16[2,8,128], index: 0, kind: input, shape index: {}]
  %s1 = inlined_call_operand.vmem [shape: bf16[4,8,32], index: 1, kind: input, shape index: {}]
  %s2 = inlined_call_operand.vmem [shape: bf16[4,8,32], index: 2, kind: input, shape index: {}]
  %s3 = inlined_call_operand.vmem [shape: bf16[2,8,128], index: 3, kind: output, shape index: {}]
  %s4 = sld [smem:[#allocation0]]
  $region45: #{transformer_forward.12} parent=0
    _
  %s6 = ssub.s32 1, %s4
  %s7 = scalar_select 0, %s6, %s4
  loop: start=0, step=1, limit=4
  $region2: #{transformer_forward.12} parent=0 // loop_pre_header
    _
  $region3: #{transformer_forward.12} parent=0 // loop_header
    %s9 = sphi 0, %s13
    %p10 = scmp.ge.s32.totalorder %s9, 4
    %s16 = sphi 0, %s28
    %s17 = sphi 0, %s24
    %s18 = sphi 0, %s16
    %s19 = sphi 0, %s17
    %s20 = sphi 0, %s18
    %s21 = sphi 0, %s19
    %s33 = sphi 0, %s35
    %s36 = sphi 0, %s33
    %s37 = sphi 0, %s36
    %s53 = sphi 0, %s37
    %s57 = sphi 0, %s57
    %s59 = sphi 0, %s57
    %s60 = sphi 0, %s59
    %s74 = sphi 0, %s60
    %s78 = sphi 0, %s78
    %s80 = sphi 0, %s78
    %s81 = sphi 0, %s80
    %s95 = sphi 0, %s81
    %s103 = sphi 0, %s105
    %s106 = sphi 0, %s103
    %s107 = sphi 0, %s106
    %s123 = sphi 0, %s107
  $region4: #{transformer_forward.12} parent=0 // loop_header_branch
    %12 = sbr.rel (%p10) target = $region8
  $region5: #{transformer_forward.12} parent=0 // loop_body
    %s14 = ssub.s32 %s9, 1
    %s15 = ssub.s32 %s9, 2
    %s22 = sadd.s32 1, %s17
    %p23 = scmp.ge.s32.totalorder %s22, 1
    %s24 = scalar_select %p23, 0, %s22
    %s25 = sadd.s32 1, %s16
    %s26 = scalar_select %p23, %s25, %s16
    %p27 = scmp.ge.s32.totalorder %s26, 2
    %s28 = scalar_select %p27, 0, %s26
    %s29 = ssub.s32 %s16, %s28
    %s30 = ssub.s32 %s17, %s24
    %s31 = sor.u32 %s29, %s30
    %p32 = scmp.eq.s32.totalorder %s31, 0
    %s34 = sadd.s32 %s33, 1
    %s35 = scalar_select %p32, %s33, %s34
    %p38 = pneg %p32
    %p39 = scmp.eq.s32.totalorder %s9, 1
    %p40 = por %p38, %p39
    %p41 = scmp.ne.s32.totalorder %s33, %s36
    %p42 = scmp.eq.s32.totalorder %s9, 0
    %p43 = por %p41, %p42
    %p44 = scmp.ne.s32.totalorder %s33, %s36
    %p45 = scmp.eq.s32.totalorder %s14, 1
    %p46 = por %p44, %p45
    %p47 = scmp.ne.s32.totalorder %s36, %s37
    %p48 = scmp.eq.s32.totalorder %s14, 0
    %p49 = por %p47, %p48
    %p50 = scmp.ne.s32.totalorder %s36, %s37
    %p51 = scmp.eq.s32.totalorder %s15, 1
    %p52 = por %p50, %p51
    %p54 = scmp.ne.s32.totalorder %s37, %s53
    %p55 = scmp.eq.s32.totalorder %s15, 0
    %p56 = por %p54, %p55
    %s58 = sadd.s32 %s57, 1
    %p61 = scmp.eq.s32.totalorder %s9, 1
    %p62 = scmp.ne.s32.totalorder %s57, %s59
    %p63 = scmp.eq.s32.totalorder %s9, 0
    %p64 = por %p62, %p63
    %p65 = scmp.ne.s32.totalorder %s57, %s59
    %p66 = scmp.eq.s32.totalorder %s14, 1
    %p67 = por %p65, %p66
    %p68 = scmp.ne.s32.totalorder %s59, %s60
    %p69 = scmp.eq.s32.totalorder %s14, 0
    %p70 = por %p68, %p69
    %p71 = scmp.ne.s32.totalorder %s59, %s60
    %p72 = scmp.eq.s32.totalorder %s15, 1
    %p73 = por %p71, %p72
    %p75 = scmp.ne.s32.totalorder %s60, %s74
    %p76 = scmp.eq.s32.totalorder %s15, 0
    %p77 = por %p75, %p76
    %s79 = sadd.s32 %s78, 1
    %p82 = scmp.eq.s32.totalorder %s9, 1
    %p83 = scmp.ne.s32.totalorder %s78, %s80
    %p84 = scmp.eq.s32.totalorder %s9, 0
    %p85 = por %p83, %p84
    %p86 = scmp.ne.s32.totalorder %s78, %s80
    %p87 = scmp.eq.s32.totalorder %s14, 1
    %p88 = por %p86, %p87
    %p89 = scmp.ne.s32.totalorder %s80, %s81
    %p90 = scmp.eq.s32.totalorder %s14, 0
    %p91 = por %p89, %p90
    %p92 = scmp.ne.s32.totalorder %s80, %s81
    %p93 = scmp.eq.s32.totalorder %s15, 1
    %p94 = por %p92, %p93
    %p96 = scmp.ne.s32.totalorder %s81, %s95
    %p97 = scmp.eq.s32.totalorder %s15, 0
    %p98 = por %p96, %p97
    %s99 = ssub.s32 %s16, %s28
    %s100 = ssub.s32 %s17, %s24
    %s101 = sor.u32 %s99, %s100
    %p102 = scmp.eq.s32.totalorder %s101, 0
    %s104 = sadd.s32 %s103, 1
    %s105 = scalar_select %p102, %s103, %s104
    %p108 = pneg %p102
    %p109 = scmp.eq.s32.totalorder %s9, 1
    %p110 = por %p108, %p109
    %p111 = scmp.ne.s32.totalorder %s103, %s106
    %p112 = scmp.eq.s32.totalorder %s9, 0
    %p113 = por %p111, %p112
    %p114 = scmp.ne.s32.totalorder %s103, %s106
    %p115 = scmp.eq.s32.totalorder %s14, 1
    %p116 = por %p114, %p115
    %p117 = scmp.ne.s32.totalorder %s106, %s107
    %p118 = scmp.eq.s32.totalorder %s14, 0
    %p119 = por %p117, %p118
    %p120 = scmp.ne.s32.totalorder %s106, %s107
    %p121 = scmp.eq.s32.totalorder %s15, 1
    %p122 = por %p120, %p121
    %p124 = scmp.ne.s32.totalorder %s107, %s123
    %p125 = scmp.eq.s32.totalorder %s15, 0
    %p126 = por %p124, %p125
    %p127 = scmp.le.s32.totalorder 1, %s9
    %p128 = scmp.lt.s32.totalorder %s9, 3
    %p129 = pnand %p127, %p128
    %p130 = pneg %p129
    // Predicated region
    $region9: #{transformer_forward.12} parent=5 // pred_check
      _
    $region10: #{transformer_forward.12} parent=5 // pred_check_branch
      %132 = sbr.rel (%p129) target = $region12
    $region11: #{transformer_forward.12} parent=5 // pred_region
      %s133 = ssub.s32 %s9, 1
      // Predicated region
      $region13: #{transformer_forward.12} parent=11 // pred_check
        %p134 = pneg %p70
      $region14: #{transformer_forward.12} parent=11 // pred_check_branch
        %136 = sbr.rel (%p134) target = $region16
      $region15: #{transformer_forward.12} parent=11 // pred_region
        _
      $region16: #{transformer_forward.12} parent=11 // pred_fallthru
        _
      // Predicated region
      $region17: #{transformer_forward.12} parent=11 // pred_check
        %p137 = pneg %p91
      $region18: #{transformer_forward.12} parent=11 // pred_check_branch
        %139 = sbr.rel (%p137) target = $region20
      $region19: #{transformer_forward.12} parent=11 // pred_region
        _
      $region20: #{transformer_forward.12} parent=11 // pred_fallthru
        _
    $region12: #{transformer_forward.12} parent=5 // pred_fallthru
      _
    %p140 = scmp.lt.s32.totalorder %s9, 2
    // Predicated region
    $region21: #{transformer_forward.12} parent=5 // pred_check
      %p141 = pneg %p140
    $region22: #{transformer_forward.12} parent=5 // pred_check_branch
      %143 = sbr.rel (%p141) target = $region24
    $region23: #{transformer_forward.12} parent=5 // pred_region
      // Predicated region
      $region25: #{transformer_forward.12} parent=23 // pred_check
        %p144 = pneg %p43
      $region26: #{transformer_forward.12} parent=23 // pred_check_branch
        %146 = sbr.rel (%p144) target = $region28
      $region27: #{transformer_forward.12} parent=23 // pred_region
        %p147 = scmp.lt.s32.totalorder %s16, 1
        %s148 = scalar_select %p147, %s16, 1
        %p149 = scmp.lt.s32.totalorder %s17, 0
        %s150 = scalar_select %p149, %s17, 0
        %s151 = sadd.s32 %s150, %s148
        %s152 = smul.addr %s151, 4
        %s153 = scalar_lea.vmem %s0, %s152
      $region28: #{transformer_forward.12} parent=23 // pred_fallthru
        _
    $region24: #{transformer_forward.12} parent=5 // pred_fallthru
      _
    %p154 = scmp.le.s32.totalorder 1, %s9
    %p155 = scmp.lt.s32.totalorder %s9, 3
    %p156 = pnand %p154, %p155
    %p157 = pneg %p156
    // Predicated region
    $region29: #{transformer_forward.12} parent=5 // pred_check
      _
    $region30: #{transformer_forward.12} parent=5 // pred_check_branch
      %159 = sbr.rel (%p156) target = $region32
    $region31: #{transformer_forward.12} parent=5 // pred_region
      %s160 = ssub.s32 %s9, 1
      %p161 = scmp.lt.s32.totalorder %s18, 1
      %s162 = scalar_select %p161, %s18, 1
      %p163 = scmp.lt.s32.totalorder %s19, 0
      %s164 = scalar_select %p163, %s19, 0
      %s165 = sadd.s32 %s164, %s162
      %s166 = smul.addr %s165, 4
      %s167 = scalar_lea.vmem %s0, %s166
      %p168 = pneg %p49
      %p169 = pneg %p46
      %p170 = pneg %p70
      %p171 = pneg %p67
      %p172 = pneg %p91
      %p173 = pneg %p88
      %p174 = pneg %p119
      %p175 = pneg %p116
      %p176 = scmp.lt.s32.totalorder %s18, 1
      %s177 = scalar_select %p176, %s18, 1
      %p178 = scmp.lt.s32.totalorder %s19, 0
      %s179 = scalar_select %p178, %s19, 0
      %s180 = sadd.s32 %s179, %s177
      %s181 = smul.addr %s180, 4
      %s182 = scalar_lea.vmem %s3, %s181
      %p183 = scmp.lt.s32.totalorder %s18, 1
      %s184 = scalar_select %p183, %s18, 1
      %p185 = scmp.lt.s32.totalorder %s19, 0
      %s186 = scalar_select %p185, %s19, 0
      %s187 = sadd.s32 %s186, %s184
      %s188 = smul.addr %s187, 4
      %s189 = scalar_lea.vmem %s0, %s188
      %p190 = scmp.lt.s32.totalorder %s18, 1
      %s191 = scalar_select %p190, %s18, 1
      %p192 = scmp.lt.s32.totalorder %s19, 0
      %s193 = scalar_select %p192, %s19, 0
      %s194 = sadd.s32 %s193, %s191
      %s195 = smul.addr %s194, 4
      %s196 = scalar_lea.vmem %s3, %s195
      %v198 = vld [vmem:[%s189] sm:$0xf]
      %v199 = vld [vmem:[%s1] sm:$0xf]
      %v200 = vld [vmem:[%s2] sm:$0xf]
      %vm201 = vcmask 261120
      %v203 = vsel %vm201, %v198, 0
      %v206 = vsel %vm201, %v199, 0
      %208 = vmatpush.bf16.xpose.msra.mxu0 0
      %209 = vmatpush.bf16.xpose.msra.mxu0 0
      %210 = vmatpush.bf16.xpose.msra.mxu0 0
      %211 = vmatpush.bf16.xpose.msra.mxu0 0
      %212 = vmatpush.bf16.xpose.msra.mxu0 0
      %213 = vmatpush.bf16.xpose.msra.mxu0 0
      %214 = vmatpush.bf16.xpose.msra.mxu0 0
      %215 = vmatpush.bf16.xpose.msra.mxu0 %v206
      %216 = vmatmul.bf16.gmra.mxu0 %v203
      %v217 = vpop.f32.mrf.mxu0
      %v218 = vadd.f32 0.0, %v217
      %v219 = vpop.f32.mrf.mxu0
      %220 = vdwg.mxu0
      %v221 = vmul.f32 %v218, 0.17677669
      %vm222 = vcmask 64512
      %v223 = vsel %vm222, %v221, -inf
      %224 = vmax.xlane.f32.xlu0 %v223
      %v225 = vpop.xlane.xlu0 %224
      %v226 = vsub.f32 %v221, %v225
      %v227 = vmul.f32 %v226, 1.442695
      %v228 = vpow.pop %v227
      %v229 = vsel %vm222, %v228, 0.0
      %230 = vadd.xlane.f32.xlu0 %v229
      %v231 = vpop.xlane.xlu0 %230
      %v232 = vrcp.pop %v231
      %v233 = vmul.f32 %v228, %v232
      %v234 = vpack.c.bf16 %v233, %v233
      %v236 = vsel %vm222, %v234, 0
      %vm238 = vcmask 1043456
      %v240 = vsel %vm238, %v200, 0
      %242 = vmatpush.bf16.msra.mxu0 0
      %243 = vmatpush.bf16.msra.mxu0 0
      %244 = vmatpush.bf16.msra.mxu0 0
      %245 = vmatpush.bf16.msra.mxu0 0
      %246 = vmatpush.bf16.msra.mxu0 0
      %247 = vmatpush.bf16.msra.mxu0 0
      %248 = vmatpush.bf16.msra.mxu0 0
      %249 = vmatpush.bf16.msra.mxu0 %v240
      %250 = vmatmul.bf16.gmra.mxu0 %v236
      %v251 = vpop.f32.mrf.mxu0
      %v252 = vadd.f32 0.0, %v251
      %v253 = vpop.f32.mrf.mxu0
      %254 = vdwg.mxu0
      %v255 = vpack.c.bf16 %v252, %v252
      %vm256 = vcmask 257024
      %257 = vst.msk [vmem:[%s196] sm:$0xf] %vm256, %v255
      %s258 = scalar_lea.vmem %s1, 4
      %v259 = vld [vmem:[%s258] sm:$0xf]
      %s260 = scalar_lea.vmem %s2, 4
      %v261 = vld [vmem:[%s260] sm:$0xf]
      %v263 = vunpack.c.l.b16 %v198
      %v264 = vpack.c.b16 %v263, %v263
      %265 = vrot.lane.b32.xlu0 %v264, 96
      %v266 = vpop.permute.xlu0 %265
      %v268 = vsel %vm201, %v266, 0
      %v271 = vsel %vm201, %v259, 0
      %273 = vmatpush.bf16.xpose.msra.mxu0 0
      %274 = vmatpush.bf16.xpose.msra.mxu0 0
      %275 = vmatpush.bf16.xpose.msra.mxu0 0
      %276 = vmatpush.bf16.xpose.msra.mxu0 0
      %277 = vmatpush.bf16.xpose.msra.mxu0 0
      %278 = vmatpush.bf16.xpose.msra.mxu0 0
      %279 = vmatpush.bf16.xpose.msra.mxu0 0
      %280 = vmatpush.bf16.xpose.msra.mxu0 %v271
      %281 = vmatmul.bf16.gmra.mxu0 %v268
      %v282 = vpop.f32.mrf.mxu0
      %v283 = vadd.f32 0.0, %v282
      %v284 = vpop.f32.mrf.mxu0
      %285 = vdwg.mxu0
      %v286 = vmul.f32 %v283, 0.17677669
      %v287 = vsel %vm222, %v286, -inf
      %288 = vmax.xlane.f32.xlu0 %v287
      %v289 = vpop.xlane.xlu0 %288
      %v290 = vsub.f32 %v286, %v289
      %v291 = vmul.f32 %v290, 1.442695
      %v292 = vpow.pop %v291
      %v293 = vsel %vm222, %v292, 0.0
      %294 = vadd.xlane.f32.xlu0 %v293
      %v295 = vpop.xlane.xlu0 %294
      %v296 = vrcp.pop %v295
      %v297 = vmul.f32 %v292, %v296
      %v298 = vpack.c.bf16 %v297, %v297
      %v300 = vsel %vm222, %v298, 0
      %v303 = vsel %vm238, %v261, 0
      %305 = vmatpush.bf16.msra.mxu0 0
      %306 = vmatpush.bf16.msra.mxu0 0
      %307 = vmatpush.bf16.msra.mxu0 0
      %308 = vmatpush.bf16.msra.mxu0 0
      %309 = vmatpush.bf16.msra.mxu0 0
      %310 = vmatpush.bf16.msra.mxu0 0
      %311 = vmatpush.bf16.msra.mxu0 0
      %312 = vmatpush.bf16.msra.mxu0 %v303
      %313 = vmatmul.bf16.gmra.mxu0 %v300
      %v314 = vpop.f32.mrf.mxu0
      %v315 = vadd.f32 0.0, %v314
      %v316 = vpop.f32.mrf.mxu0
      %317 = vdwg.mxu0
      %v318 = vpack.c.bf16 %v315, %v315
      %320 = vrot.lane.b32.xlu0 %v318, 32
      %v321 = vpop.permute.xlu0 %320
      %vm323 = vcmask 519424
      %324 = vst.msk [vmem:[%s196] sm:$0xf] %vm323, %v321
      %s325 = scalar_lea.vmem %s1, 8
      %v326 = vld [vmem:[%s325] sm:$0xf]
      %s327 = scalar_lea.vmem %s2, 8
      %v328 = vld [vmem:[%s327] sm:$0xf]
      %329 = vrot.lane.b32.xlu0 %v264, 64
      %v330 = vpop.permute.xlu0 %329
      %v332 = vsel %vm201, %v330, 0
      %v335 = vsel %vm201, %v326, 0
      %337 = vmatpush.bf16.xpose.msra.mxu0 0
      %338 = vmatpush.bf16.xpose.msra.mxu0 0
      %339 = vmatpush.bf16.xpose.msra.mxu0 0
      %340 = vmatpush.bf16.xpose.msra.mxu0 0
      %341 = vmatpush.bf16.xpose.msra.mxu0 0
      %342 = vmatpush.bf16.xpose.msra.mxu0 0
      %343 = vmatpush.bf16.xpose.msra.mxu0 0
      %344 = vmatpush.bf16.xpose.msra.mxu0 %v335
      %345 = vmatmul.bf16.gmra.mxu0 %v332
      %v346 = vpop.f32.mrf.mxu0
      %v347 = vadd.f32 0.0, %v346
      %v348 = vpop.f32.mrf.mxu0
      %349 = vdwg.mxu0
      %v350 = vmul.f32 %v347, 0.17677669
      %v351 = vsel %vm222, %v350, -inf
      %352 = vmax.xlane.f32.xlu0 %v351
      %v353 = vpop.xlane.xlu0 %352
      %v354 = vsub.f32 %v350, %v353
      %v355 = vmul.f32 %v354, 1.442695
      %v356 = vpow.pop %v355
      %v357 = vsel %vm222, %v356, 0.0
      %358 = vadd.xlane.f32.xlu0 %v357
      %v359 = vpop.xlane.xlu0 %358
      %v360 = vrcp.pop %v359
      %v361 = vmul.f32 %v356, %v360
      %v362 = vpack.c.bf16 %v361, %v361
      %v364 = vsel %vm222, %v362, 0
      %v367 = vsel %vm238, %v328, 0
      %369 = vmatpush.bf16.msra.mxu0 0
      %370 = vmatpush.bf16.msra.mxu0 0
      %371 = vmatpush.bf16.msra.mxu0 0
      %372 = vmatpush.bf16.msra.mxu0 0
      %373 = vmatpush.bf16.msra.mxu0 0
      %374 = vmatpush.bf16.msra.mxu0 0
      %375 = vmatpush.bf16.msra.mxu0 0
      %376 = vmatpush.bf16.msra.mxu0 %v367
      %377 = vmatmul.bf16.gmra.mxu0 %v364
      %v378 = vpop.f32.mrf.mxu0
      %v379 = vadd.f32 0.0, %v378
      %v380 = vpop.f32.mrf.mxu0
      %381 = vdwg.mxu0
      %v382 = vpack.c.bf16 %v379, %v379
      %384 = vrot.lane.b32.xlu0 %v382, 64
      %v385 = vpop.permute.xlu0 %384
      %vm387 = vcmask 781824
      %388 = vst.msk [vmem:[%s196] sm:$0xf] %vm387, %v385
      %s389 = scalar_lea.vmem %s1, 12
      %v390 = vld [vmem:[%s389] sm:$0xf]
      %s391 = scalar_lea.vmem %s2, 12
      %v392 = vld [vmem:[%s391] sm:$0xf]
      %393 = vrot.lane.b32.xlu0 %v264, 32
      %v394 = vpop.permute.xlu0 %393
      %v396 = vsel %vm201, %v394, 0
      %v399 = vsel %vm201, %v390, 0
      %401 = vmatpush.bf16.xpose.msra.mxu0 0
      %402 = vmatpush.bf16.xpose.msra.mxu0 0
      %403 = vmatpush.bf16.xpose.msra.mxu0 0
      %404 = vmatpush.bf16.xpose.msra.mxu0 0
      %405 = vmatpush.bf16.xpose.msra.mxu0 0
      %406 = vmatpush.bf16.xpose.msra.mxu0 0
      %407 = vmatpush.bf16.xpose.msra.mxu0 0
      %408 = vmatpush.bf16.xpose.msra.mxu0 %v399
      %409 = vmatmul.bf16.gmra.mxu0 %v396
      %v410 = vpop.f32.mrf.mxu0
      %v411 = vadd.f32 0.0, %v410
      %v412 = vpop.f32.mrf.mxu0
      %413 = vdwg.mxu0
      %v414 = vmul.f32 %v411, 0.17677669
      %v415 = vsel %vm222, %v414, -inf
      %416 = vmax.xlane.f32.xlu0 %v415
      %v417 = vpop.xlane.xlu0 %416
      %v418 = vsub.f32 %v414, %v417
      %v419 = vmul.f32 %v418, 1.442695
      %v420 = vpow.pop %v419
      %v421 = vsel %vm222, %v420, 0.0
      %422 = vadd.xlane.f32.xlu0 %v421
      %v423 = vpop.xlane.xlu0 %422
      %v424 = vrcp.pop %v423
      %v425 = vmul.f32 %v420, %v424
      %v426 = vpack.c.bf16 %v425, %v425
      %v428 = vsel %vm222, %v426, 0
      %v431 = vsel %vm238, %v392, 0
      %433 = vmatpush.bf16.msra.mxu0 0
      %434 = vmatpush.bf16.msra.mxu0 0
      %435 = vmatpush.bf16.msra.mxu0 0
      %436 = vmatpush.bf16.msra.mxu0 0
      %437 = vmatpush.bf16.msra.mxu0 0
      %438 = vmatpush.bf16.msra.mxu0 0
      %439 = vmatpush.bf16.msra.mxu0 0
      %440 = vmatpush.bf16.msra.mxu0 %v431
      %441 = vmatmul.bf16.gmra.mxu0 %v428
      %v442 = vpop.f32.mrf.mxu0
      %v443 = vadd.f32 0.0, %v442
      %v444 = vpop.f32.mrf.mxu0
      %445 = vdwg.mxu0
      %v446 = vpack.c.bf16 %v443, %v443
      %448 = vrot.lane.b32.xlu0 %v446, 96
      %v449 = vpop.permute.xlu0 %448
      %vm451 = vcmask 1044224
      %452 = vst.msk [vmem:[%s196] sm:$0xf] %vm451, %v449
      %p453 = scmp.lt.s32.totalorder %s18, 1
      %s454 = scalar_select %p453, %s18, 1
      %p455 = scmp.lt.s32.totalorder %s19, 0
      %s456 = scalar_select %p455, %s19, 0
      %s457 = sadd.s32 %s456, %s454
      %s458 = smul.addr %s457, 4
      %s459 = scalar_lea.vmem %s3, %s458
      // Predicated region
      $region33: #{transformer_forward.12} parent=31 // pred_check
        %p460 = pneg %p116
      $region34: #{transformer_forward.12} parent=31 // pred_check_branch
        %462 = sbr.rel (%p460) target = $region36
      $region35: #{transformer_forward.12} parent=31 // pred_region
        _
      $region36: #{transformer_forward.12} parent=31 // pred_fallthru
        _
    $region32: #{transformer_forward.12} parent=5 // pred_fallthru
      _
    %p463 = scmp.le.s32.totalorder 2, %s9
    // Predicated region
    $region37: #{transformer_forward.12} parent=5 // pred_check
      %p464 = pneg %p463
    $region38: #{transformer_forward.12} parent=5 // pred_check_branch
      %466 = sbr.rel (%p464) target = $region40
    $region39: #{transformer_forward.12} parent=5 // pred_region
      %s467 = ssub.s32 %s9, 2
      // Predicated region
      $region41: #{transformer_forward.12} parent=39 // pred_check
        %p468 = pneg %p122
      $region42: #{transformer_forward.12} parent=39 // pred_check_branch
        %470 = sbr.rel (%p468) target = $region44
      $region43: #{transformer_forward.12} parent=39 // pred_region
        %p471 = scmp.lt.s32.totalorder %s20, 1
        %s472 = scalar_select %p471, %s20, 1
        %p473 = scmp.lt.s32.totalorder %s21, 0
        %s474 = scalar_select %p473, %s21, 0
        %s475 = sadd.s32 %s474, %s472
        %s476 = smul.addr %s475, 4
        %s477 = scalar_lea.vmem %s3, %s476
      $region44: #{transformer_forward.12} parent=39 // pred_fallthru
        _
    $region40: #{transformer_forward.12} parent=5 // pred_fallthru
      _
  $region6: #{transformer_forward.12} parent=0 // loop_footer
    %s13 = sadd.s32 1, %s9
  $region7: #{transformer_forward.12} parent=0 // loop_footer_branch
    %8 = sbr.rel target = $region3
  $region8: #{transformer_forward.12} parent=0 // loop_exit
    _

// kernel: transformer_forward.10
$region0: #{transformer_forward.10}
  #allocation0 [shape = 'u32[]', space=smem, size = 0x4, offset = 0x4, fixed_abs, tag = 'smem constant byte address 0x4 - core index']
  #allocation1 [shape = 'u32[72,128]{1,0:T(1,128)}', space=vmem, size = 0x9000, scoped, tag = 'internal scratch']
  %s0 = inlined_call_operand.vmem [shape: bf16[16,32], index: 0, kind: input, shape index: {}]
  %s1 = inlined_call_operand.vmem [shape: bf16[32,128], index: 1, kind: input, shape index: {}]
  %s2 = inlined_call_operand.vmem [shape: bf16[16,128], index: 2, kind: output, shape index: {}]
  %s3 = sld [smem:[#allocation0]]
  $region18: #{transformer_forward.10} parent=0
    _
  %s5 = ssub.s32 1, %s3
  %s6 = scalar_select 0, %s5, %s3
  // Predicated region
  $region2: #{transformer_forward.10} parent=0 // pred_check
    _
  $region3: #{transformer_forward.10} parent=0 // pred_check_branch
    %8 = sbr.rel (0) target = $region5
  $region4: #{transformer_forward.10} parent=0 // pred_region
    _
  $region5: #{transformer_forward.10} parent=0 // pred_fallthru
    _
  // Predicated region
  $region6: #{transformer_forward.10} parent=0 // pred_check
    _
  $region7: #{transformer_forward.10} parent=0 // pred_check_branch
    %10 = sbr.rel (0) target = $region9
  $region8: #{transformer_forward.10} parent=0 // pred_region
    _
  $region9: #{transformer_forward.10} parent=0 // pred_fallthru
    _
  %v12 = vld [vmem:[%s0] sm:$0xf]
  %v13 = vld [vmem:[%s0 + $0x4] sm:$0xf]
  %v14 = vld [vmem:[%s1] sm:$0xf]
  %v15 = vld [vmem:[%s1 + $0x4] sm:$0xf]
  %v16 = vld [vmem:[%s1 + $0x8] sm:$0xf]
  %v17 = vld [vmem:[%s1 + $0xc] sm:$0xf]
  %v20 = vunpack.c.l.b16 %v12
  %v21 = vunpack.c.l.b16 %v13
  %v22 = vpack.c.b16 %v21, %v20
  %v27 = vunpack.c.l.b16 %v14
  %v28 = vunpack.c.l.b16 %v15
  %v29 = vunpack.c.l.b16 %v16
  %v30 = vunpack.c.l.b16 %v17
  %v31 = vpack.c.b16 %v28, %v27
  %v32 = vpack.c.b16 %v30, %v29
  %vm35 = vcmask 261120
  %v37 = vsel %vm35, %v22, 0
  %39 = vmatpush.bf16.msra.mxu0 0
  %40 = vmatpush.bf16.msra.mxu0 0
  %41 = vmatpush.bf16.msra.mxu0 0
  %42 = vmatpush.bf16.msra.mxu0 0
  %43 = vmatpush.bf16.msra.mxu0 0
  %44 = vmatpush.bf16.msra.mxu0 0
  %45 = vmatpush.bf16.msra.mxu0 %v32
  %46 = vmatpush.bf16.msra.mxu0 %v31
  %47 = vmatmul.bf16.gmra.mxu0 %v37
  %v48 = vpop.f32.mrf.mxu0
  %v49 = vadd.f32 0.0, %v48
  %v50 = vpop.f32.mrf.mxu0
  %v51 = vadd.f32 0.0, %v50
  %52 = vdwg.mxu0
  %v53 = vpack.c.bf16 %v49, %v49
  %v54 = vpack.c.bf16 %v51, %v51
  %55 = vst [vmem:[%s2] sm:$0xf] %v53
  %56 = vst [vmem:[%s2 + $0x4] sm:$0xf] %v54
  // Predicated region
  $region10: #{transformer_forward.10} parent=0 // pred_check
    _
  $region11: #{transformer_forward.10} parent=0 // pred_check_branch
    %58 = sbr.rel (0) target = $region13
  $region12: #{transformer_forward.10} parent=0 // pred_region
    _
  $region13: #{transformer_forward.10} parent=0 // pred_fallthru
    _
  // Predicated region
  $region14: #{transformer_forward.10} parent=0 // pred_check
    _
  $region15: #{transformer_forward.10} parent=0 // pred_check_branch
    %60 = sbr.rel (0) target = $region17
  $region16: #{transformer_forward.10} parent=0 // pred_region
    _
  $region17: #{transformer_forward.10} parent=0 // pred_fallthru
    _

// kernel: transformer_forward.9
$region0: #{transformer_forward.9}
  #allocation0 [shape = 'u32[]', space=smem, size = 0x4, offset = 0x4, fixed_abs, tag = 'smem constant byte address 0x4 - core index']
  #allocation1 [shape = 'u32[72,128]{1,0:T(1,128)}', space=vmem, size = 0x9000, scoped, tag = 'internal scratch']
  %s0 = inlined_call_operand.vmem [shape: bf16[16,16], index: 0, kind: input, shape index: {}]
  %s1 = inlined_call_operand.vmem [shape: bf16[16,32], index: 1, kind: input, shape index: {}]
  %s2 = inlined_call_operand.vmem [shape: f32[1,32], index: 2, kind: input, shape index: {}]
  %s3 = inlined_call_operand.vmem [shape: f32[1,32], index: 3, kind: input, shape index: {}]
  %s4 = inlined_call_operand.vmem [shape: f32[1,32], index: 4, kind: input, shape index: {}]
  %s5 = inlined_call_operand.vmem [shape: bf16[16,32], index: 5, kind: output, shape index: {0}]
  %s6 = inlined_call_operand.vmem [shape: bf16[16,32], index: 6, kind: output, shape index: {1}]
  %7 = xla_tuple %s5, %s6
  %s8 = sld [smem:[#allocation0]]
  $region38: #{transformer_forward.9} parent=0
    _
  %s10 = ssub.s32 1, %s8
  %s11 = scalar_select 0, %s10, %s8
  // Predicated region
  $region2: #{transformer_forward.9} parent=0 // pred_check
    _
  $region3: #{transformer_forward.9} parent=0 // pred_check_branch
    %13 = sbr.rel (0) target = $region5
  $region4: #{transformer_forward.9} parent=0 // pred_region
    _
  $region5: #{transformer_forward.9} parent=0 // pred_fallthru
    _
  // Predicated region
  $region6: #{transformer_forward.9} parent=0 // pred_check
    _
  $region7: #{transformer_forward.9} parent=0 // pred_check_branch
    %15 = sbr.rel (0) target = $region9
  $region8: #{transformer_forward.9} parent=0 // pred_region
    _
  $region9: #{transformer_forward.9} parent=0 // pred_fallthru
    _
  // Predicated region
  $region10: #{transformer_forward.9} parent=0 // pred_check
    _
  $region11: #{transformer_forward.9} parent=0 // pred_check_branch
    %17 = sbr.rel (0) target = $region13
  $region12: #{transformer_forward.9} parent=0 // pred_region
    _
  $region13: #{transformer_forward.9} parent=0 // pred_fallthru
    _
  // Predicated region
  $region14: #{transformer_forward.9} parent=0 // pred_check
    _
  $region15: #{transformer_forward.9} parent=0 // pred_check_branch
    %19 = sbr.rel (0) target = $region17
  $region16: #{transformer_forward.9} parent=0 // pred_region
    _
  $region17: #{transformer_forward.9} parent=0 // pred_fallthru
    _
  // Predicated region
  $region18: #{transformer_forward.9} parent=0 // pred_check
    _
  $region19: #{transformer_forward.9} parent=0 // pred_check_branch
    %21 = sbr.rel (0) target = $region21
  $region20: #{transformer_forward.9} parent=0 // pred_region
    _
  $region21: #{transformer_forward.9} parent=0 // pred_fallthru
    _
  %v23 = vld [vmem:[%s0] sm:$0xf]
  %v24 = vld [vmem:[%s0 + $0x4] sm:$0xf]
  %v25 = vld [vmem:[%s1] sm:$0xf]
  %v26 = vld [vmem:[%s1 + $0x4] sm:$0xf]
  %v27 = vld [vmem:[%s2] sm:$0x1]
  %v29 = vperm.slane %v27, 0
  %v33 = vunpack.c.l.b16 %v23
  %v34 = vunpack.c.l.b16 %v24
  %v35 = vpack.c.b16 %v34, %v33
  %v38 = vunpack.c.l.b16 %v25
  %v39 = vunpack.c.l.b16 %v26
  %v40 = vpack.c.b16 %v39, %v38
  %vm42 = vcmask 130048
  %v44 = vsel %vm42, %v35, 0
  %46 = vmatpush.bf16.msra.mxu0 0
  %47 = vmatpush.bf16.msra.mxu0 0
  %48 = vmatpush.bf16.msra.mxu0 0
  %49 = vmatpush.bf16.msra.mxu0 0
  %50 = vmatpush.bf16.msra.mxu0 0
  %51 = vmatpush.bf16.msra.mxu0 0
  %52 = vmatpush.bf16.msra.mxu0 0
  %53 = vmatpush.bf16.msra.mxu0 %v40
  %54 = vmatmul.bf16.gmra.mxu0 %v44
  %v55 = vpop.f32.mrf.mxu0
  %v56 = vadd.f32 %v29, %v55
  %v57 = vpop.f32.mrf.mxu0
  %v58 = vadd.f32 %v29, %v57
  %59 = vdwg.mxu0
  %v60 = vpack.c.bf16 %v56, %v56
  %v61 = vpack.c.bf16 %v58, %v58
  %vm62 = vcmask 257024
  %63 = vst.msk [vmem:[%s5] sm:$0xf] %vm62, %v60
  %64 = vst.msk [vmem:[%s5 + $0x4] sm:$0xf] %vm62, %v61
  %vm65 = vcmask 261120
  %v66 = vsel %vm65, %v56, 0.0
  %67 = vadd.xlane.f32.xlu0 %v66
  %v68 = vpop.xlane.xlu0 %67
  %v69 = vsel %vm65, %v58, 0.0
  %70 = vadd.xlane.f32.xlu0 %v69
  %v71 = vpop.xlane.xlu0 %70
  %v72 = vrcp.pop 32.0
  %v73 = vmul.f32 32.0, %v72
  %v74 = vsub.f32 1.0, %v73
  %v75 = vmul.f32 %v72, %v74
  %v76 = vadd.f32 %v72, %v75
  %vm77 = vweird.f32 %v72
  %v78 = vsel %vm77, %v72, %v76
  %v79 = vmul.f32 %v68, %v78
  %v80 = vmul.f32 %v71, %v78
  %v81 = vsub.f32 %v56, %v79
  %v82 = vsub.f32 %v58, %v80
  %v83 = vmul.f32 %v81, %v81
  %v84 = vmul.f32 %v82, %v82
  %v85 = vsel %vm65, %v83, 0.0
  %86 = vadd.xlane.f32.xlu0 %v85
  %v87 = vpop.xlane.xlu0 %86
  %v88 = vsel %vm65, %v84, 0.0
  %89 = vadd.xlane.f32.xlu0 %v88
  %v90 = vpop.xlane.xlu0 %89
  %v91 = vmul.f32 %v87, %v78
  %v92 = vmul.f32 %v90, %v78
  %v93 = vadd.f32 %v91, 1e-05
  %v94 = vadd.f32 %v92, 1e-05
  %v95 = vrsqrt.pop %v93
  %v96 = vmul.f32 %v95, %v93
  %v97 = vmul.f32 %v96, %v95
  %v98 = vmul.f32 0.5, %v97
  %v99 = vsub.f32 1.5, %v98
  %v100 = vmul.f32 %v95, %v99
  %vm101 = vweird.f32 %v93
  %vm102 = vweird.f32 %v95
  %vm103 = vmor %vm101, %vm102
  %v104 = vsel %vm103, %v95, %v100
  %v105 = vrsqrt.pop %v94
  %v106 = vmul.f32 %v105, %v94
  %v107 = vmul.f32 %v106, %v105
  %v108 = vmul.f32 0.5, %v107
  %v109 = vsub.f32 1.5, %v108
  %v110 = vmul.f32 %v105, %v109
  %vm111 = vweird.f32 %v94
  %vm112 = vweird.f32 %v105
  %vm113 = vmor %vm111, %vm112
  %v114 = vsel %vm113, %v105, %v110
  %v115 = vmul.f32 %v81, %v104
  %v116 = vmul.f32 %v82, %v114
  %v117 = vld [vmem:[%s3] sm:$0x1]
  %v119 = vperm.slane %v117, 0
  %v121 = vmul.f32 %v115, %v119
  %v122 = vmul.f32 %v116, %v119
  %v123 = vld [vmem:[%s4] sm:$0x1]
  %v125 = vperm.slane %v123, 0
  %v127 = vadd.f32 %v121, %v125
  %v128 = vadd.f32 %v122, %v125
  %v129 = vpack.c.bf16 %v127, %v127
  %v130 = vpack.c.bf16 %v128, %v128
  %131 = vst.msk [vmem:[%s6] sm:$0xf] %vm62, %v129
  %132 = vst.msk [vmem:[%s6 + $0x4] sm:$0xf] %vm62, %v130
  // Predicated region
  $region22: #{transformer_forward.9} parent=0 // pred_check
    _
  $region23: #{transformer_forward.9} parent=0 // pred_check_branch
    %134 = sbr.rel (0) target = $region25
  $region24: #{transformer_forward.9} parent=0 // pred_region
    _
  $region25: #{transformer_forward.9} parent=0 // pred_fallthru
    _
  // Predicated region
  $region26: #{transformer_forward.9} parent=0 // pred_check
    _
  $region27: #{transformer_forward.9} parent=0 // pred_check_branch
    %136 = sbr.rel (0) target = $region29
  $region28: #{transformer_forward.9} parent=0 // pred_region
    _
  $region29: #{transformer_forward.9} parent=0 // pred_fallthru
    _
  // Predicated region
  $region30: #{transformer_forward.9} parent=0 // pred_check
    _
  $region31: #{transformer_forward.9} parent=0 // pred_check_branch
    %138 = sbr.rel (0) target = $region33
  $region32: #{transformer_forward.9} parent=0 // pred_region
    _
  $region33: #{transformer_forward.9} parent=0 // pred_fallthru
    _
  // Predicated region
  $region34: #{transformer_forward.9} parent=0 // pred_check
    _
  $region35: #{transformer_forward.9} parent=0 // pred_check_branch
    %140 = sbr.rel (0) target = $region37
  $region36: #{transformer_forward.9} parent=0 // pred_region
    _
  $region37: #{transformer_forward.9} parent=0 // pred_fallthru
    _

// kernel: transformer_forward.11
$region0: #{transformer_forward.11}
  #allocation0 [shape = 'u32[]', space=smem, size = 0x4, offset = 0x4, fixed_abs, tag = 'smem constant byte address 0x4 - core index']
  #allocation1 [shape = 'u32[72,128]{1,0:T(1,128)}', space=vmem, size = 0x9000, scoped, tag = 'internal scratch']
  %s0 = inlined_call_operand.vmem [shape: bf16[4,8,32], index: 0, kind: input, shape index: {}]
  %s1 = inlined_call_operand.vmem [shape: bf16[4,32,64], index: 1, kind: input, shape index: {}]
  %s2 = inlined_call_operand.vmem [shape: bf16[4,8,32], index: 2, kind: output, shape index: {0}]
  %s3 = inlined_call_operand.vmem [shape: bf16[4,8,32], index: 3, kind: output, shape index: {1}]
  %4 = xla_tuple %s2, %s3
  %s5 = sld [smem:[#allocation0]]
  $region26: #{transformer_forward.11} parent=0
    _
  %s7 = ssub.s32 1, %s5
  %s8 = scalar_select 0, %s7, %s5
  // Predicated region
  $region2: #{transformer_forward.11} parent=0 // pred_check
    _
  $region3: #{transformer_forward.11} parent=0 // pred_check_branch
    %10 = sbr.rel (0) target = $region5
  $region4: #{transformer_forward.11} parent=0 // pred_region
    _
  $region5: #{transformer_forward.11} parent=0 // pred_fallthru
    _
  // Predicated region
  $region6: #{transformer_forward.11} parent=0 // pred_check
    _
  $region7: #{transformer_forward.11} parent=0 // pred_check_branch
    %12 = sbr.rel (0) target = $region9
  $region8: #{transformer_forward.11} parent=0 // pred_region
    _
  $region9: #{transformer_forward.11} parent=0 // pred_fallthru
    _
  %v14 = vld [vmem:[%s0] sm:$0xf]
  %v15 = vld [vmem:[%s1] sm:$0xf]
  %v16 = vld [vmem:[%s1 + $0x4] sm:$0xf]
  %v17 = vld [vmem:[%s1 + $0x8] sm:$0xf]
  %v18 = vld [vmem:[%s1 + $0xc] sm:$0xf]
  %v23 = vunpack.c.l.b16 %v15
  %v24 = vunpack.c.l.b16 %v16
  %v25 = vunpack.c.l.b16 %v17
  %v26 = vunpack.c.l.b16 %v18
  %v27 = vpack.c.b16 %v24, %v23
  %v28 = vpack.c.b16 %v26, %v25
  %vm31 = vcmask 261120
  %v33 = vsel %vm31, %v14, 0
  %35 = vmatpush.bf16.msra.mxu0 0
  %36 = vmatpush.bf16.msra.mxu0 0
  %37 = vmatpush.bf16.msra.mxu0 0
  %38 = vmatpush.bf16.msra.mxu0 0
  %39 = vmatpush.bf16.msra.mxu0 0
  %40 = vmatpush.bf16.msra.mxu0 0
  %41 = vmatpush.bf16.msra.mxu0 %v28
  %42 = vmatpush.bf16.msra.mxu0 %v27
  %43 = vmatmul.bf16.gmra.mxu0 %v33
  %v44 = vpop.f32.mrf.mxu0
  %v45 = vadd.f32 0.0, %v44
  %v46 = vpop.f32.mrf.mxu0
  %47 = vdwg.mxu0
  %v48 = vpack.c.bf16 %v45, %v45
  %vm49 = vcmask 257024
  %50 = vst.msk [vmem:[%s2] sm:$0xf] %vm49, %v48
  %52 = vrot.lane.b32.xlu0 %v48, 96
  %v53 = vpop.permute.xlu0 %52
  %55 = vst.msk [vmem:[%s3] sm:$0xf] %vm49, %v53
  %s56 = scalar_lea.vmem %s0, 4
  %v57 = vld [vmem:[%s56] sm:$0xf]
  %s58 = scalar_lea.vmem %s1, 16
  %v59 = vld [vmem:[%s58] sm:$0xf]
  %v60 = vld [vmem:[%s58 + $0x4] sm:$0xf]
  %v61 = vld [vmem:[%s58 + $0x8] sm:$0xf]
  %v62 = vld [vmem:[%s58 + $0xc] sm:$0xf]
  %v67 = vunpack.c.l.b16 %v59
  %v68 = vunpack.c.l.b16 %v60
  %v69 = vunpack.c.l.b16 %v61
  %v70 = vunpack.c.l.b16 %v62
  %v71 = vpack.c.b16 %v68, %v67
  %v72 = vpack.c.b16 %v70, %v69
  %v76 = vsel %vm31, %v57, 0
  %78 = vmatpush.bf16.msra.mxu0 0
  %79 = vmatpush.bf16.msra.mxu0 0
  %80 = vmatpush.bf16.msra.mxu0 0
  %81 = vmatpush.bf16.msra.mxu0 0
  %82 = vmatpush.bf16.msra.mxu0 0
  %83 = vmatpush.bf16.msra.mxu0 0
  %84 = vmatpush.bf16.msra.mxu0 %v72
  %85 = vmatpush.bf16.msra.mxu0 %v71
  %86 = vmatmul.bf16.gmra.mxu0 %v76
  %v87 = vpop.f32.mrf.mxu0
  %v88 = vadd.f32 0.0, %v87
  %v89 = vpop.f32.mrf.mxu0
  %90 = vdwg.mxu0
  %v91 = vpack.c.bf16 %v88, %v88
  %s92 = scalar_lea.vmem %s2, 4
  %93 = vst.msk [vmem:[%s92] sm:$0xf] %vm49, %v91
  %95 = vrot.lane.b32.xlu0 %v91, 96
  %v96 = vpop.permute.xlu0 %95
  %s98 = scalar_lea.vmem %s3, 4
  %99 = vst.msk [vmem:[%s98] sm:$0xf] %vm49, %v96
  %s100 = scalar_lea.vmem %s0, 8
  %v101 = vld [vmem:[%s100] sm:$0xf]
  %s102 = scalar_lea.vmem %s1, 32
  %v103 = vld [vmem:[%s102] sm:$0xf]
  %v104 = vld [vmem:[%s102 + $0x4] sm:$0xf]
  %v105 = vld [vmem:[%s102 + $0x8] sm:$0xf]
  %v106 = vld [vmem:[%s102 + $0xc] sm:$0xf]
  %v111 = vunpack.c.l.b16 %v103
  %v112 = vunpack.c.l.b16 %v104
  %v113 = vunpack.c.l.b16 %v105
  %v114 = vunpack.c.l.b16 %v106
  %v115 = vpack.c.b16 %v112, %v111
  %v116 = vpack.c.b16 %v114, %v113
  %v120 = vsel %vm31, %v101, 0
  %122 = vmatpush.bf16.msra.mxu0 0
  %123 = vmatpush.bf16.msra.mxu0 0
  %124 = vmatpush.bf16.msra.mxu0 0
  %125 = vmatpush.bf16.msra.mxu0 0
  %126 = vmatpush.bf16.msra.mxu0 0
  %127 = vmatpush.bf16.msra.mxu0 0
  %128 = vmatpush.bf16.msra.mxu0 %v116
  %129 = vmatpush.bf16.msra.mxu0 %v115
  %130 = vmatmul.bf16.gmra.mxu0 %v120
  %v131 = vpop.f32.mrf.mxu0
  %v132 = vadd.f32 0.0, %v131
  %v133 = vpop.f32.mrf.mxu0
  %134 = vdwg.mxu0
  %v135 = vpack.c.bf16 %v132, %v132
  %s136 = scalar_lea.vmem %s2, 8
  %137 = vst.msk [vmem:[%s136] sm:$0xf] %vm49, %v135
  %139 = vrot.lane.b32.xlu0 %v135, 96
  %v140 = vpop.permute.xlu0 %139
  %s142 = scalar_lea.vmem %s3, 8
  %143 = vst.msk [vmem:[%s142] sm:$0xf] %vm49, %v140
  %s144 = scalar_lea.vmem %s0, 12
  %v145 = vld [vmem:[%s144] sm:$0xf]
  %s146 = scalar_lea.vmem %s1, 48
  %v147 = vld [vmem:[%s146] sm:$0xf]
  %v148 = vld [vmem:[%s146 + $0x4] sm:$0xf]
  %v149 = vld [vmem:[%s146 + $0x8] sm:$0xf]
  %v150 = vld [vmem:[%s146 + $0xc] sm:$0xf]
  %v155 = vunpack.c.l.b16 %v147
  %v156 = vunpack.c.l.b16 %v148
  %v157 = vunpack.c.l.b16 %v149
  %v158 = vunpack.c.l.b16 %v150
  %v159 = vpack.c.b16 %v156, %v155
  %v160 = vpack.c.b16 %v158, %v157
  %v164 = vsel %vm31, %v145, 0
  %166 = vmatpush.bf16.msra.mxu0 0
  %167 = vmatpush.bf16.msra.mxu0 0
  %168 = vmatpush.bf16.msra.mxu0 0
  %169 = vmatpush.bf16.msra.mxu0 0
  %170 = vmatpush.bf16.msra.mxu0 0
  %171 = vmatpush.bf16.msra.mxu0 0
  %172 = vmatpush.bf16.msra.mxu0 %v160
  %173 = vmatpush.bf16.msra.mxu0 %v159
  %174 = vmatmul.bf16.gmra.mxu0 %v164
  %v175 = vpop.f32.mrf.mxu0
  %v176 = vadd.f32 0.0, %v175
  %v177 = vpop.f32.mrf.mxu0
  %178 = vdwg.mxu0
  %v179 = vpack.c.bf16 %v176, %v176
  %s180 = scalar_lea.vmem %s2, 12
  %181 = vst.msk [vmem:[%s180] sm:$0xf] %vm49, %v179
  %183 = vrot.lane.b32.xlu0 %v179, 96
  %v184 = vpop.permute.xlu0 %183
  %s186 = scalar_lea.vmem %s3, 12
  %187 = vst.msk [vmem:[%s186] sm:$0xf] %vm49, %v184
  // Predicated region
  $region10: #{transformer_forward.11} parent=0 // pred_check
    _
  $region11: #{transformer_forward.11} parent=0 // pred_check_branch
    %189 = sbr.rel (0) target = $region13
  $region12: #{transformer_forward.11} parent=0 // pred_region
    _
  $region13: #{transformer_forward.11} parent=0 // pred_fallthru
    _
  // Predicated region
  $region14: #{transformer_forward.11} parent=0 // pred_check
    _
  $region15: #{transformer_forward.11} parent=0 // pred_check_branch
    %191 = sbr.rel (0) target = $region17
  $region16: #{transformer_forward.11} parent=0 // pred_region
    _
  $region17: #{transformer_forward.11} parent=0 // pred_fallthru
    _
  // Predicated region
  $region18: #{transformer_forward.11} parent=0 // pred_check
    _
  $region19: #{transformer_forward.11} parent=0 // pred_check_branch
    %193 = sbr.rel (0) target = $region21
  $region20: #{transformer_forward.11} parent=0 // pred_region
    _
  $region21: #{transformer_forward.11} parent=0 // pred_fallthru
    _
  // Predicated region
  $region22: #{transformer_forward.11} parent=0 // pred_check
    _
  $region23: #{transformer_forward.11} parent=0 // pred_check_branch
    %195 = sbr.rel (0) target = $region25
  $region24: #{transformer_forward.11} parent=0 // pred_region
    _
  $region25: #{transformer_forward.11} parent=0 // pred_fallthru
    _

// kernel: transformer_forward.13
$region0: #{transformer_forward.13}
  #allocation0 [shape = 'u32[]', space=smem, size = 0x4, offset = 0x4, fixed_abs, tag = 'smem constant byte address 0x4 - core index']
  #allocation1 [shape = 'u32[72,128]{1,0:T(1,128)}', space=vmem, size = 0x9000, scoped, tag = 'internal scratch']
  #allocation2 [shape = 'bf16[16,32]{1,0:T(8,128)(2,1)}', space=vmem, size = 0x1000, scoped, tag = 'scratch operand']
  #allocation3 [shape = 'f32[16,32]{1,0:T(8,128)}', space=vmem, size = 0x2000, scoped, tag = 'scratch operand']
  %s0 = inlined_call_operand.vmem [shape: bf16[16,128], index: 0, kind: input, shape index: {}]
  %s1 = inlined_call_operand.vmem [shape: bf16[128,32], index: 1, kind: input, shape index: {}]
  %s2 = inlined_call_operand.vmem [shape: f32[1,32], index: 2, kind: input, shape index: {}]
  %s3 = inlined_call_operand.vmem [shape: bf16[16,32], index: 3, kind: input, shape index: {}]
  %s4 = inlined_call_operand.vmem [shape: f32[1,32], index: 4, kind: input, shape index: {}]
  %s5 = inlined_call_operand.vmem [shape: f32[1,32], index: 5, kind: input, shape index: {}]
  %s6 = inlined_call_operand.vmem [shape: bf16[32,128], index: 6, kind: input, shape index: {}]
  %s7 = inlined_call_operand.vmem [shape: f32[1,128], index: 7, kind: input, shape index: {}]
  %s8 = inlined_call_operand.vmem [shape: bf16[128,32], index: 8, kind: input, shape index: {}]
  %s9 = inlined_call_operand.vmem [shape: f32[1,32], index: 9, kind: input, shape index: {}]
  %s10 = inlined_call_operand.vmem [shape: bf16[16,32], index: 10, kind: output, shape index: {}]
  %s11 = sld [smem:[#allocation0]]
  $region58: #{transformer_forward.13} parent=0
    _
  %s13 = ssub.s32 1, %s11
  %s14 = scalar_select 0, %s13, %s11
  // Predicated region
  $region2: #{transformer_forward.13} parent=0 // pred_check
    _
  $region3: #{transformer_forward.13} parent=0 // pred_check_branch
    %16 = sbr.rel (0) target = $region5
  $region4: #{transformer_forward.13} parent=0 // pred_region
    _
  $region5: #{transformer_forward.13} parent=0 // pred_fallthru
    _
  // Predicated region
  $region6: #{transformer_forward.13} parent=0 // pred_check
    _
  $region7: #{transformer_forward.13} parent=0 // pred_check_branch
    %18 = sbr.rel (0) target = $region9
  $region8: #{transformer_forward.13} parent=0 // pred_region
    _
  $region9: #{transformer_forward.13} parent=0 // pred_fallthru
    _
  // Predicated region
  $region10: #{transformer_forward.13} parent=0 // pred_check
    _
  $region11: #{transformer_forward.13} parent=0 // pred_check_branch
    %20 = sbr.rel (0) target = $region13
  $region12: #{transformer_forward.13} parent=0 // pred_region
    _
  $region13: #{transformer_forward.13} parent=0 // pred_fallthru
    _
  // Predicated region
  $region14: #{transformer_forward.13} parent=0 // pred_check
    _
  $region15: #{transformer_forward.13} parent=0 // pred_check_branch
    %22 = sbr.rel (0) target = $region17
  $region16: #{transformer_forward.13} parent=0 // pred_region
    _
  $region17: #{transformer_forward.13} parent=0 // pred_fallthru
    _
  // Predicated region
  $region18: #{transformer_forward.13} parent=0 // pred_check
    _
  $region19: #{transformer_forward.13} parent=0 // pred_check_branch
    %24 = sbr.rel (0) target = $region21
  $region20: #{transformer_forward.13} parent=0 // pred_region
    _
  $region21: #{transformer_forward.13} parent=0 // pred_fallthru
    _
  // Predicated region
  $region22: #{transformer_forward.13} parent=0 // pred_check
    _
  $region23: #{transformer_forward.13} parent=0 // pred_check_branch
    %26 = sbr.rel (0) target = $region25
  $region24: #{transformer_forward.13} parent=0 // pred_region
    _
  $region25: #{transformer_forward.13} parent=0 // pred_fallthru
    _
  // Predicated region
  $region26: #{transformer_forward.13} parent=0 // pred_check
    _
  $region27: #{transformer_forward.13} parent=0 // pred_check_branch
    %28 = sbr.rel (0) target = $region29
  $region28: #{transformer_forward.13} parent=0 // pred_region
    _
  $region29: #{transformer_forward.13} parent=0 // pred_fallthru
    _
  // Predicated region
  $region30: #{transformer_forward.13} parent=0 // pred_check
    _
  $region31: #{transformer_forward.13} parent=0 // pred_check_branch
    %30 = sbr.rel (0) target = $region33
  $region32: #{transformer_forward.13} parent=0 // pred_region
    _
  $region33: #{transformer_forward.13} parent=0 // pred_fallthru
    _
  // Predicated region
  $region34: #{transformer_forward.13} parent=0 // pred_check
    _
  $region35: #{transformer_forward.13} parent=0 // pred_check_branch
    %32 = sbr.rel (0) target = $region37
  $region36: #{transformer_forward.13} parent=0 // pred_region
    _
  $region37: #{transformer_forward.13} parent=0 // pred_fallthru
    _
  // Predicated region
  $region38: #{transformer_forward.13} parent=0 // pred_check
    _
  $region39: #{transformer_forward.13} parent=0 // pred_check_branch
    %34 = sbr.rel (0) target = $region41
  $region40: #{transformer_forward.13} parent=0 // pred_region
    _
  $region41: #{transformer_forward.13} parent=0 // pred_fallthru
    _
  %p36 = scmp.eq.s32.totalorder 0, 0
  // Predicated region
  $region42: #{transformer_forward.13} parent=0 // pred_check
    %p37 = pneg %p36
  $region43: #{transformer_forward.13} parent=0 // pred_check_branch
    %39 = sbr.rel (%p37) target = $region45
  $region44: #{transformer_forward.13} parent=0 // pred_region
    %v40 = vld [vmem:[%s0] sm:$0xf]
    %v41 = vld [vmem:[%s0 + $0x4] sm:$0xf]
    %v42 = vld [vmem:[%s1] sm:$0xf]
    %v43 = vld [vmem:[%s1 + $0x4] sm:$0xf]
    %v44 = vld [vmem:[%s1 + $0x8] sm:$0xf]
    %v45 = vld [vmem:[%s1 + $0xc] sm:$0xf]
    %v46 = vld [vmem:[%s1 + $0x10] sm:$0xf]
    %v47 = vld [vmem:[%s1 + $0x14] sm:$0xf]
    %v48 = vld [vmem:[%s1 + $0x18] sm:$0xf]
    %v49 = vld [vmem:[%s1 + $0x1c] sm:$0xf]
    %v50 = vld [vmem:[%s1 + $0x20] sm:$0xf]
    %v51 = vld [vmem:[%s1 + $0x24] sm:$0xf]
    %v52 = vld [vmem:[%s1 + $0x28] sm:$0xf]
    %v53 = vld [vmem:[%s1 + $0x2c] sm:$0xf]
    %v54 = vld [vmem:[%s1 + $0x30] sm:$0xf]
    %v55 = vld [vmem:[%s1 + $0x34] sm:$0xf]
    %v56 = vld [vmem:[%s1 + $0x38] sm:$0xf]
    %v57 = vld [vmem:[%s1 + $0x3c] sm:$0xf]
    %v58 = vld [vmem:[%s2] sm:$0x1]
    %v60 = vperm.slane %v58, 0
    %v64 = vunpack.c.l.b16 %v40
    %v65 = vunpack.c.l.b16 %v41
    %v66 = vpack.c.b16 %v65, %v64
    %v84 = vunpack.c.l.b16 %v42
    %v85 = vunpack.c.l.b16 %v43
    %v86 = vunpack.c.l.b16 %v44
    %v87 = vunpack.c.l.b16 %v45
    %v88 = vunpack.c.l.b16 %v46
    %v89 = vunpack.c.l.b16 %v47
    %v90 = vunpack.c.l.b16 %v48
    %v91 = vunpack.c.l.b16 %v49
    %v92 = vunpack.c.l.b16 %v50
    %v93 = vunpack.c.l.b16 %v51
    %v94 = vunpack.c.l.b16 %v52
    %v95 = vunpack.c.l.b16 %v53
    %v96 = vunpack.c.l.b16 %v54
    %v97 = vunpack.c.l.b16 %v55
    %v98 = vunpack.c.l.b16 %v56
    %v99 = vunpack.c.l.b16 %v57
    %v100 = vpack.c.b16 %v85, %v84
    %v101 = vpack.c.b16 %v87, %v86
    %v102 = vpack.c.b16 %v89, %v88
    %v103 = vpack.c.b16 %v91, %v90
    %v104 = vpack.c.b16 %v93, %v92
    %v105 = vpack.c.b16 %v95, %v94
    %v106 = vpack.c.b16 %v97, %v96
    %v107 = vpack.c.b16 %v99, %v98
    %116 = vmatpush.bf16.msra.mxu0 %v107
    %117 = vmatpush.bf16.msra.mxu0 %v106
    %118 = vmatpush.bf16.msra.mxu0 %v105
    %119 = vmatpush.bf16.msra.mxu0 %v104
    %120 = vmatpush.bf16.msra.mxu0 %v103
    %121 = vmatpush.bf16.msra.mxu0 %v102
    %122 = vmatpush.bf16.msra.mxu0 %v101
    %123 = vmatpush.bf16.msra.mxu0 %v100
    %124 = vmatmul.bf16.gmra.mxu0 %v66
    %v125 = vpop.f32.mrf.mxu0
    %v126 = vadd.f32 %v60, %v125
    %v127 = vpop.f32.mrf.mxu0
    %v128 = vadd.f32 %v60, %v127
    %129 = vdwg.mxu0
    %v130 = vld [vmem:[%s3] sm:$0xf]
    %v131 = vld [vmem:[%s3 + $0x4] sm:$0xf]
    %v132 = vunpack.c.l.bf16 %v130
    %v133 = vunpack.c.l.bf16 %v131
    %v134 = vadd.f32 %v126, %v132
    %v135 = vadd.f32 %v128, %v133
    %vm136 = vcmask 261120
    %137 = vst.msk [vmem:[#allocation3] sm:$0xff] %vm136, %v134
    %138 = vst.msk [vmem:[#allocation3 + $0x8] sm:$0xff] %vm136, %v135
    %v139 = vsel %vm136, %v134, 0.0
    %140 = vadd.xlane.f32.xlu0 %v139
    %v141 = vpop.xlane.xlu0 %140
    %v142 = vsel %vm136, %v135, 0.0
    %143 = vadd.xlane.f32.xlu0 %v142
    %v144 = vpop.xlane.xlu0 %143
    %v145 = vrcp.pop 32.0
    %v146 = vmul.f32 32.0, %v145
    %v147 = vsub.f32 1.0, %v146
    %v148 = vmul.f32 %v145, %v147
    %v149 = vadd.f32 %v145, %v148
    %vm150 = vweird.f32 %v145
    %v151 = vsel %vm150, %v145, %v149
    %v152 = vmul.f32 %v141, %v151
    %v153 = vmul.f32 %v144, %v151
    %v154 = vsub.f32 %v134, %v152
    %v155 = vsub.f32 %v135, %v153
    %v156 = vmul.f32 %v154, %v154
    %v157 = vmul.f32 %v155, %v155
    %v158 = vsel %vm136, %v156, 0.0
    %159 = vadd.xlane.f32.xlu0 %v158
    %v160 = vpop.xlane.xlu0 %159
    %v161 = vsel %vm136, %v157, 0.0
    %162 = vadd.xlane.f32.xlu0 %v161
    %v163 = vpop.xlane.xlu0 %162
    %v164 = vmul.f32 %v160, %v151
    %v165 = vmul.f32 %v163, %v151
    %v166 = vadd.f32 %v164, 1e-05
    %v167 = vadd.f32 %v165, 1e-05
    %v168 = vrsqrt.pop %v166
    %v169 = vmul.f32 %v168, %v166
    %v170 = vmul.f32 %v169, %v168
    %v171 = vmul.f32 0.5, %v170
    %v172 = vsub.f32 1.5, %v171
    %v173 = vmul.f32 %v168, %v172
    %vm174 = vweird.f32 %v166
    %vm175 = vweird.f32 %v168
    %vm176 = vmor %vm174, %vm175
    %v177 = vsel %vm176, %v168, %v173
    %v178 = vrsqrt.pop %v167
    %v179 = vmul.f32 %v178, %v167
    %v180 = vmul.f32 %v179, %v178
    %v181 = vmul.f32 0.5, %v180
    %v182 = vsub.f32 1.5, %v181
    %v183 = vmul.f32 %v178, %v182
    %vm184 = vweird.f32 %v167
    %vm185 = vweird.f32 %v178
    %vm186 = vmor %vm184, %vm185
    %v187 = vsel %vm186, %v178, %v183
    %v188 = vmul.f32 %v154, %v177
    %v189 = vmul.f32 %v155, %v187
    %v190 = vld [vmem:[%s4] sm:$0x1]
    %v192 = vperm.slane %v190, 0
    %v194 = vmul.f32 %v188, %v192
    %v195 = vmul.f32 %v189, %v192
    %v196 = vld [vmem:[%s5] sm:$0x1]
    %v198 = vperm.slane %v196, 0
    %v200 = vadd.f32 %v194, %v198
    %v201 = vadd.f32 %v195, %v198
    %v202 = vpack.c.bf16 %v200, %v200
    %v203 = vpack.c.bf16 %v201, %v201
    %vm204 = vcmask 257024
    %205 = vst.msk [vmem:[#allocation2] sm:$0xf] %vm204, %v202
    %206 = vst.msk [vmem:[#allocation2 + $0x4] sm:$0xf] %vm204, %v203
  $region45: #{transformer_forward.13} parent=0 // pred_fallthru
    _
  %v207 = vld [vmem:[#allocation2] sm:$0xf]
  %v208 = vld [vmem:[#allocation2 + $0x4] sm:$0xf]
  %v209 = vld [vmem:[%s6] sm:$0xf]
  %v210 = vld [vmem:[%s6 + $0x4] sm:$0xf]
  %v211 = vld [vmem:[%s6 + $0x8] sm:$0xf]
  %v212 = vld [vmem:[%s6 + $0xc] sm:$0xf]
  %v213 = vld [vmem:[%s7] sm:$0x1]
  %v215 = vperm.slane %v213, 0
  %v219 = vunpack.c.l.b16 %v207
  %v220 = vunpack.c.l.b16 %v208
  %v221 = vpack.c.b16 %v220, %v219
  %v226 = vunpack.c.l.b16 %v209
  %v227 = vunpack.c.l.b16 %v210
  %v228 = vunpack.c.l.b16 %v211
  %v229 = vunpack.c.l.b16 %v212
  %v230 = vpack.c.b16 %v227, %v226
  %v231 = vpack.c.b16 %v229, %v228
  %vm234 = vcmask 261120
  %v236 = vsel %vm234, %v221, 0
  %238 = vmatpush.bf16.msra.mxu0 0
  %239 = vmatpush.bf16.msra.mxu0 0
  %240 = vmatpush.bf16.msra.mxu0 0
  %241 = vmatpush.bf16.msra.mxu0 0
  %242 = vmatpush.bf16.msra.mxu0 0
  %243 = vmatpush.bf16.msra.mxu0 0
  %244 = vmatpush.bf16.msra.mxu0 %v231
  %245 = vmatpush.bf16.msra.mxu0 %v230
  %246 = vmatmul.bf16.gmra.mxu0 %v236
  %v247 = vpop.f32.mrf.mxu0
  %v248 = vadd.f32 %v215, %v247
  %v249 = vpop.f32.mrf.mxu0
  %v250 = vadd.f32 %v215, %v249
  %251 = vdwg.mxu0
  %v252 = vmax.f32 %v248, 0.0
  %v253 = vmax.f32 %v250, 0.0
  %v254 = vpack.c.bf16 %v253, %v252
  %v255 = vld [vmem:[#allocation3] sm:$0xff]
  %v256 = vld [vmem:[#allocation3 + $0x8] sm:$0xff]
  %v257 = vld [vmem:[%s8] sm:$0xf]
  %v258 = vld [vmem:[%s8 + $0x4] sm:$0xf]
  %v259 = vld [vmem:[%s8 + $0x8] sm:$0xf]
  %v260 = vld [vmem:[%s8 + $0xc] sm:$0xf]
  %v261 = vld [vmem:[%s8 + $0x10] sm:$0xf]
  %v262 = vld [vmem:[%s8 + $0x14] sm:$0xf]
  %v263 = vld [vmem:[%s8 + $0x18] sm:$0xf]
  %v264 = vld [vmem:[%s8 + $0x1c] sm:$0xf]
  %v265 = vld [vmem:[%s8 + $0x20] sm:$0xf]
  %v266 = vld [vmem:[%s8 + $0x24] sm:$0xf]
  %v267 = vld [vmem:[%s8 + $0x28] sm:$0xf]
  %v268 = vld [vmem:[%s8 + $0x2c] sm:$0xf]
  %v269 = vld [vmem:[%s8 + $0x30] sm:$0xf]
  %v270 = vld [vmem:[%s8 + $0x34] sm:$0xf]
  %v271 = vld [vmem:[%s8 + $0x38] sm:$0xf]
  %v272 = vld [vmem:[%s8 + $0x3c] sm:$0xf]
  %v289 = vunpack.c.l.b16 %v257
  %v290 = vunpack.c.l.b16 %v258
  %v291 = vunpack.c.l.b16 %v259
  %v292 = vunpack.c.l.b16 %v260
  %v293 = vunpack.c.l.b16 %v261
  %v294 = vunpack.c.l.b16 %v262
  %v295 = vunpack.c.l.b16 %v263
  %v296 = vunpack.c.l.b16 %v264
  %v297 = vunpack.c.l.b16 %v265
  %v298 = vunpack.c.l.b16 %v266
  %v299 = vunpack.c.l.b16 %v267
  %v300 = vunpack.c.l.b16 %v268
  %v301 = vunpack.c.l.b16 %v269
  %v302 = vunpack.c.l.b16 %v270
  %v303 = vunpack.c.l.b16 %v271
  %v304 = vunpack.c.l.b16 %v272
  %v305 = vpack.c.b16 %v290, %v289
  %v306 = vpack.c.b16 %v292, %v291
  %v307 = vpack.c.b16 %v294, %v293
  %v308 = vpack.c.b16 %v296, %v295
  %v309 = vpack.c.b16 %v298, %v297
  %v310 = vpack.c.b16 %v300, %v299
  %v311 = vpack.c.b16 %v302, %v301
  %v312 = vpack.c.b16 %v304, %v303
  %321 = vmatpush.bf16.msra.mxu0 %v312
  %322 = vmatpush.bf16.msra.mxu0 %v311
  %323 = vmatpush.bf16.msra.mxu0 %v310
  %324 = vmatpush.bf16.msra.mxu0 %v309
  %325 = vmatpush.bf16.msra.mxu0 %v308
  %326 = vmatpush.bf16.msra.mxu0 %v307
  %327 = vmatpush.bf16.msra.mxu0 %v306
  %328 = vmatpush.bf16.msra.mxu0 %v305
  %329 = vmatmul.bf16.gmra.mxu0 %v254
  %v330 = vpop.f32.mrf.mxu0
  %v331 = vadd.f32 0.0, %v330
  %v332 = vpop.f32.mrf.mxu0
  %v333 = vadd.f32 0.0, %v332
  %334 = vdwg.mxu0
  %v335 = vadd.f32 %v255, %v331
  %v336 = vadd.f32 %v256, %v333
  %337 = vst.msk [vmem:[#allocation3] sm:$0xff] %vm234, %v335
  %338 = vst.msk [vmem:[#allocation3 + $0x8] sm:$0xff] %vm234, %v336
  // Predicated region
  $region46: #{transformer_forward.13} parent=0 // pred_check
    %p339 = pneg %p36
  $region47: #{transformer_forward.13} parent=0 // pred_check_branch
    %341 = sbr.rel (%p339) target = $region49
  $region48: #{transformer_forward.13} parent=0 // pred_region
    %v342 = vld [vmem:[#allocation3] sm:$0xff]
    %v343 = vld [vmem:[#allocation3 + $0x8] sm:$0xff]
    %v344 = vld [vmem:[%s9] sm:$0x1]
    %v346 = vperm.slane %v344, 0
    %v348 = vadd.f32 %v342, %v346
    %v349 = vadd.f32 %v343, %v346
    %v350 = vpack.c.bf16 %v348, %v348
    %v351 = vpack.c.bf16 %v349, %v349
    %vm352 = vcmask 257024
    %353 = vst.msk [vmem:[%s10] sm:$0xf] %vm352, %v350
    %354 = vst.msk [vmem:[%s10 + $0x4] sm:$0xf] %vm352, %v351
  $region49: #{transformer_forward.13} parent=0 // pred_fallthru
    _
  // Predicated region
  $region50: #{transformer_forward.13} parent=0 // pred_check
    _
  $region51: #{transformer_forward.13} parent=0 // pred_check_branch
    %356 = sbr.rel (0) target = $region53
  $region52: #{transformer_forward.13} parent=0 // pred_region
    _
  $region53: #{transformer_forward.13} parent=0 // pred_fallthru
    _
  // Predicated region
  $region54: #{transformer_forward.13} parent=0 // pred_check
    _
  $region55: #{transformer_forward.13} parent=0 // pred_check_branch
    %358 = sbr.rel (0) target = $region57
  $region56: #{transformer_forward.13} parent=0 // pred_region
    _
  $region57: #{transformer_forward.13} parent=0 // pred_fallthru
    _

// kernel: transformer_forward.14
$region0: #{transformer_forward.14}
  #allocation0 [shape = 'u32[]', space=smem, size = 0x4, offset = 0x4, fixed_abs, tag = 'smem constant byte address 0x4 - core index']
  #allocation1 [shape = 'u32[72,128]{1,0:T(1,128)}', space=vmem, size = 0x9000, scoped, tag = 'internal scratch']
  %s0 = inlined_call_operand.vmem [shape: bf16[16,32], index: 0, kind: input, shape index: {}]
  %s1 = inlined_call_operand.vmem [shape: f32[1,32], index: 1, kind: input, shape index: {}]
  %s2 = inlined_call_operand.vmem [shape: f32[1,32], index: 2, kind: input, shape index: {}]
  %s3 = inlined_call_operand.vmem [shape: bf16[32,384], index: 3, kind: input, shape index: {}]
  %s4 = inlined_call_operand.vmem [shape: bf16[16,384], index: 4, kind: output, shape index: {}]
  %s5 = sld [smem:[#allocation0]]
  $region26: #{transformer_forward.14} parent=0
    _
  %s7 = ssub.s32 1, %s5
  %s8 = scalar_select 0, %s7, %s5
  // Predicated region
  $region2: #{transformer_forward.14} parent=0 // pred_check
    _
  $region3: #{transformer_forward.14} parent=0 // pred_check_branch
    %10 = sbr.rel (0) target = $region5
  $region4: #{transformer_forward.14} parent=0 // pred_region
    _
  $region5: #{transformer_forward.14} parent=0 // pred_fallthru
    _
  // Predicated region
  $region6: #{transformer_forward.14} parent=0 // pred_check
    _
  $region7: #{transformer_forward.14} parent=0 // pred_check_branch
    %12 = sbr.rel (0) target = $region9
  $region8: #{transformer_forward.14} parent=0 // pred_region
    _
  $region9: #{transformer_forward.14} parent=0 // pred_fallthru
    _
  // Predicated region
  $region10: #{transformer_forward.14} parent=0 // pred_check
    _
  $region11: #{transformer_forward.14} parent=0 // pred_check_branch
    %14 = sbr.rel (0) target = $region13
  $region12: #{transformer_forward.14} parent=0 // pred_region
    _
  $region13: #{transformer_forward.14} parent=0 // pred_fallthru
    _
  // Predicated region
  $region14: #{transformer_forward.14} parent=0 // pred_check
    _
  $region15: #{transformer_forward.14} parent=0 // pred_check_branch
    %16 = sbr.rel (0) target = $region17
  $region16: #{transformer_forward.14} parent=0 // pred_region
    _
  $region17: #{transformer_forward.14} parent=0 // pred_fallthru
    _
  %v18 = vld [vmem:[%s0] sm:$0xf]
  %v19 = vld [vmem:[%s0 + $0x4] sm:$0xf]
  %v20 = vunpack.c.l.bf16 %v18
  %v21 = vunpack.c.l.bf16 %v19
  %vm22 = vcmask 261120
  %v23 = vsel %vm22, %v20, 0.0
  %24 = vadd.xlane.f32.xlu0 %v23
  %v25 = vpop.xlane.xlu0 %24
  %v26 = vsel %vm22, %v21, 0.0
  %27 = vadd.xlane.f32.xlu0 %v26
  %v28 = vpop.xlane.xlu0 %27
  %v29 = vrcp.pop 32.0
  %v30 = vmul.f32 32.0, %v29
  %v31 = vsub.f32 1.0, %v30
  %v32 = vmul.f32 %v29, %v31
  %v33 = vadd.f32 %v29, %v32
  %vm34 = vweird.f32 %v29
  %v35 = vsel %vm34, %v29, %v33
  %v36 = vmul.f32 %v25, %v35
  %v37 = vmul.f32 %v28, %v35
  %v38 = vsub.f32 %v20, %v36
  %v39 = vsub.f32 %v21, %v37
  %v40 = vmul.f32 %v38, %v38
  %v41 = vmul.f32 %v39, %v39
  %v42 = vsel %vm22, %v40, 0.0
  %43 = vadd.xlane.f32.xlu0 %v42
  %v44 = vpop.xlane.xlu0 %43
  %v45 = vsel %vm22, %v41, 0.0
  %46 = vadd.xlane.f32.xlu0 %v45
  %v47 = vpop.xlane.xlu0 %46
  %v48 = vmul.f32 %v44, %v35
  %v49 = vmul.f32 %v47, %v35
  %v50 = vadd.f32 %v48, 1e-05
  %v51 = vadd.f32 %v49, 1e-05
  %v52 = vrsqrt.pop %v50
  %v53 = vmul.f32 %v52, %v50
  %v54 = vmul.f32 %v53, %v52
  %v55 = vmul.f32 0.5, %v54
  %v56 = vsub.f32 1.5, %v55
  %v57 = vmul.f32 %v52, %v56
  %vm58 = vweird.f32 %v50
  %vm59 = vweird.f32 %v52
  %vm60 = vmor %vm58, %vm59
  %v61 = vsel %vm60, %v52, %v57
  %v62 = vrsqrt.pop %v51
  %v63 = vmul.f32 %v62, %v51
  %v64 = vmul.f32 %v63, %v62
  %v65 = vmul.f32 0.5, %v64
  %v66 = vsub.f32 1.5, %v65
  %v67 = vmul.f32 %v62, %v66
  %vm68 = vweird.f32 %v51
  %vm69 = vweird.f32 %v62
  %vm70 = vmor %vm68, %vm69
  %v71 = vsel %vm70, %v62, %v67
  %v72 = vmul.f32 %v38, %v61
  %v73 = vmul.f32 %v39, %v71
  %v74 = vld [vmem:[%s1] sm:$0x1]
  %v76 = vperm.slane %v74, 0
  %v78 = vmul.f32 %v72, %v76
  %v79 = vmul.f32 %v73, %v76
  %v80 = vld [vmem:[%s2] sm:$0x1]
  %v82 = vperm.slane %v80, 0
  %v84 = vadd.f32 %v78, %v82
  %v85 = vadd.f32 %v79, %v82
  %v86 = vpack.c.bf16 %v85, %v84
  %v87 = vld [vmem:[%s3] sm:$0xff]
  %v88 = vld [vmem:[%s3 + $0x8] sm:$0xf]
  %v89 = vld [vmem:[%s3 + $0xc] sm:$0xff]
  %v90 = vld [vmem:[%s3 + $0x14] sm:$0xf]
  %v91 = vld [vmem:[%s3 + $0x18] sm:$0xff]
  %v92 = vld [vmem:[%s3 + $0x20] sm:$0xf]
  %v93 = vld [vmem:[%s3 + $0x24] sm:$0xff]
  %v94 = vld [vmem:[%s3 + $0x2c] sm:$0xf]
  %v103 = vunpack.c.l.b16 %v87
  %v104 = vunpack.c.h.b16 %v87
  %v105 = vunpack.c.l.b16 %v88
  %v106 = vunpack.c.l.b16 %v89
  %v107 = vunpack.c.h.b16 %v89
  %v108 = vunpack.c.l.b16 %v90
  %v109 = vunpack.c.l.b16 %v91
  %v110 = vunpack.c.h.b16 %v91
  %v111 = vunpack.c.l.b16 %v92
  %v112 = vunpack.c.l.b16 %v93
  %v113 = vunpack.c.h.b16 %v93
  %v114 = vunpack.c.l.b16 %v94
  %v115 = vpack.c.b16 %v106, %v103
  %v116 = vpack.c.b16 %v107, %v104
  %v117 = vpack.c.b16 %v108, %v105
  %v118 = vpack.c.b16 %v112, %v109
  %v119 = vpack.c.b16 %v113, %v110
  %v120 = vpack.c.b16 %v114, %v111
  %v128 = vsel %vm22, %v86, 0
  %130 = vmatpush.bf16.msra.mxu0 0
  %131 = vmatpush.bf16.msra.mxu0 0
  %132 = vmatpush.bf16.msra.mxu0 0
  %133 = vmatpush.bf16.msra.mxu0 0
  %134 = vmatpush.bf16.msra.mxu0 0
  %135 = vmatpush.bf16.msra.mxu0 0
  %136 = vmatpush.bf16.msra.mxu0 %v118
  %137 = vmatpush.bf16.msra.mxu0 %v115
  %138 = vmatmul.bf16.gmra.mxu0 %v128
  %v139 = vpop.f32.mrf.mxu0
  %v140 = vadd.f32 0.0, %v139
  %v141 = vpop.f32.mrf.mxu0
  %v142 = vadd.f32 0.0, %v141
  %143 = vdwg.mxu0
  %144 = vmatpush.bf16.msra.mxu0 0
  %145 = vmatpush.bf16.msra.mxu0 0
  %146 = vmatpush.bf16.msra.mxu0 0
  %147 = vmatpush.bf16.msra.mxu0 0
  %148 = vmatpush.bf16.msra.mxu0 0
  %149 = vmatpush.bf16.msra.mxu0 0
  %150 = vmatpush.bf16.msra.mxu0 %v119
  %151 = vmatpush.bf16.msra.mxu0 %v116
  %152 = vmatmul.bf16.gmra.mxu0 %v128
  %v153 = vpop.f32.mrf.mxu0
  %v154 = vadd.f32 0.0, %v153
  %v155 = vpop.f32.mrf.mxu0
  %v156 = vadd.f32 0.0, %v155
  %157 = vdwg.mxu0
  %158 = vmatpush.bf16.msra.mxu0 0
  %159 = vmatpush.bf16.msra.mxu0 0
  %160 = vmatpush.bf16.msra.mxu0 0
  %161 = vmatpush.bf16.msra.mxu0 0
  %162 = vmatpush.bf16.msra.mxu0 0
  %163 = vmatpush.bf16.msra.mxu0 0
  %164 = vmatpush.bf16.msra.mxu0 %v120
  %165 = vmatpush.bf16.msra.mxu0 %v117
  %166 = vmatmul.bf16.gmra.mxu0 %v128
  %v167 = vpop.f32.mrf.mxu0
  %v168 = vadd.f32 0.0, %v167
  %v169 = vpop.f32.mrf.mxu0
  %v170 = vadd.f32 0.0, %v169
  %171 = vdwg.mxu0
  %v172 = vpack.c.bf16 %v154, %v140
  %v173 = vpack.c.bf16 %v168, %v168
  %v174 = vpack.c.bf16 %v156, %v142
  %v175 = vpack.c.bf16 %v170, %v170
  %176 = vst [vmem:[%s4] sm:$0xff] %v172
  %177 = vst [vmem:[%s4 + $0x8] sm:$0xf] %v173
  %178 = vst [vmem:[%s4 + $0xc] sm:$0xff] %v174
  %179 = vst [vmem:[%s4 + $0x14] sm:$0xf] %v175
  // Predicated region
  $region18: #{transformer_forward.14} parent=0 // pred_check
    _
  $region19: #{transformer_forward.14} parent=0 // pred_check_branch
    %181 = sbr.rel (0) target = $region21
  $region20: #{transformer_forward.14} parent=0 // pred_region
    _
  $region21: #{transformer_forward.14} parent=0 // pred_fallthru
    _
  // Predicated region
  $region22: #{transformer_forward.14} parent=0 // pred_check
    _
  $region23: #{transformer_forward.14} parent=0 // pred_check_branch
    %183 = sbr.rel (0) target = $region25
  $region24: #{transformer_forward.14} parent=0 // pred_region
    _
  $region25: #{transformer_forward.14} parent=0 // pred_fallthru
    _

// kernel: transformer_forward.15
$region0: #{transformer_forward.15}
  #allocation0 [shape = 'u32[]', space=smem, size = 0x4, offset = 0x4, fixed_abs, tag = 'smem constant byte address 0x4 - core index']
  #allocation1 [shape = 'u32[72,128]{1,0:T(1,128)}', space=vmem, size = 0x9000, scoped, tag = 'internal scratch']
  %s0 = inlined_call_operand.vmem [shape: f32[2,1,8], index: 0, kind: input, shape index: {}]
  %s1 = inlined_call_operand.vmem [shape: bf16[2,8,384], index: 1, kind: input, shape index: {}, may-alias: {1,2,3}]
  %s2 = inlined_call_operand.vmem [shape: bf16[2,8,384], index: 2, kind: input, shape index: {}, may-alias: {1,2,3}]
  %s3 = inlined_call_operand.vmem [shape: bf16[2,8,384], index: 3, kind: input, shape index: {}, may-alias: {1,2,3}]
  %s4 = inlined_call_operand.vmem [shape: bf16[2,8,128], index: 4, kind: output, shape index: {}]
  %s5 = sld [smem:[#allocation0]]
  $region49: #{transformer_forward.15} parent=0
    _
  %s7 = ssub.s32 1, %s5
  %s8 = scalar_select 0, %s7, %s5
  loop: start=0, step=1, limit=4
  $region2: #{transformer_forward.15} parent=0 // loop_pre_header
    _
  $region3: #{transformer_forward.15} parent=0 // loop_header
    %s10 = sphi 0, %s14
    %p11 = scmp.ge.s32.totalorder %s10, 4
    %s17 = sphi 0, %s29
    %s18 = sphi 0, %s25
    %s19 = sphi 0, %s17
    %s20 = sphi 0, %s18
    %s21 = sphi 0, %s19
    %s22 = sphi 0, %s20
    %s32 = sphi 0, %s34
    %s35 = sphi 0, %s32
    %s36 = sphi 0, %s35
    %s52 = sphi 0, %s36
    %s60 = sphi 0, %s62
    %s63 = sphi 0, %s60
    %s64 = sphi 0, %s63
    %s80 = sphi 0, %s64
    %s86 = sphi 0, %s88
    %s89 = sphi 0, %s86
    %s90 = sphi 0, %s89
    %s106 = sphi 0, %s90
    %s112 = sphi 0, %s114
    %s115 = sphi 0, %s112
    %s116 = sphi 0, %s115
    %s132 = sphi 0, %s116
    %s140 = sphi 0, %s142
    %s143 = sphi 0, %s140
    %s144 = sphi 0, %s143
    %s160 = sphi 0, %s144
  $region4: #{transformer_forward.15} parent=0 // loop_header_branch
    %13 = sbr.rel (%p11) target = $region8
  $region5: #{transformer_forward.15} parent=0 // loop_body
    %s15 = ssub.s32 %s10, 1
    %s16 = ssub.s32 %s10, 2
    %s23 = sadd.s32 1, %s18
    %p24 = scmp.ge.s32.totalorder %s23, 1
    %s25 = scalar_select %p24, 0, %s23
    %s26 = sadd.s32 1, %s17
    %s27 = scalar_select %p24, %s26, %s17
    %p28 = scmp.ge.s32.totalorder %s27, 2
    %s29 = scalar_select %p28, 0, %s27
    %s30 = ssub.s32 %s17, %s29
    %p31 = scmp.eq.s32.totalorder %s30, 0
    %s33 = sadd.s32 %s32, 1
    %s34 = scalar_select %p31, %s32, %s33
    %p37 = pneg %p31
    %p38 = scmp.eq.s32.totalorder %s10, 1
    %p39 = por %p37, %p38
    %p40 = scmp.ne.s32.totalorder %s32, %s35
    %p41 = scmp.eq.s32.totalorder %s10, 0
    %p42 = por %p40, %p41
    %p43 = scmp.ne.s32.totalorder %s32, %s35
    %p44 = scmp.eq.s32.totalorder %s15, 1
    %p45 = por %p43, %p44
    %p46 = scmp.ne.s32.totalorder %s35, %s36
    %p47 = scmp.eq.s32.totalorder %s15, 0
    %p48 = por %p46, %p47
    %p49 = scmp.ne.s32.totalorder %s35, %s36
    %p50 = scmp.eq.s32.totalorder %s16, 1
    %p51 = por %p49, %p50
    %p53 = scmp.ne.s32.totalorder %s36, %s52
    %p54 = scmp.eq.s32.totalorder %s16, 0
    %p55 = por %p53, %p54
    %s56 = ssub.s32 %s17, %s29
    %s57 = ssub.s32 %s18, %s25
    %s58 = sor.u32 %s56, %s57
    %p59 = scmp.eq.s32.totalorder %s58, 0
    %s61 = sadd.s32 %s60, 1
    %s62 = scalar_select %p59, %s60, %s61
    %p65 = pneg %p59
    %p66 = scmp.eq.s32.totalorder %s10, 1
    %p67 = por %p65, %p66
    %p68 = scmp.ne.s32.totalorder %s60, %s63
    %p69 = scmp.eq.s32.totalorder %s10, 0
    %p70 = por %p68, %p69
    %p71 = scmp.ne.s32.totalorder %s60, %s63
    %p72 = scmp.eq.s32.totalorder %s15, 1
    %p73 = por %p71, %p72
    %p74 = scmp.ne.s32.totalorder %s63, %s64
    %p75 = scmp.eq.s32.totalorder %s15, 0
    %p76 = por %p74, %p75
    %p77 = scmp.ne.s32.totalorder %s63, %s64
    %p78 = scmp.eq.s32.totalorder %s16, 1
    %p79 = por %p77, %p78
    %p81 = scmp.ne.s32.totalorder %s64, %s80
    %p82 = scmp.eq.s32.totalorder %s16, 0
    %p83 = por %p81, %p82
    %s84 = ssub.s32 %s17, %s29
    %p85 = scmp.eq.s32.totalorder %s84, 0
    %s87 = sadd.s32 %s86, 1
    %s88 = scalar_select %p85, %s86, %s87
    %p91 = pneg %p85
    %p92 = scmp.eq.s32.totalorder %s10, 1
    %p93 = por %p91, %p92
    %p94 = scmp.ne.s32.totalorder %s86, %s89
    %p95 = scmp.eq.s32.totalorder %s10, 0
    %p96 = por %p94, %p95
    %p97 = scmp.ne.s32.totalorder %s86, %s89
    %p98 = scmp.eq.s32.totalorder %s15, 1
    %p99 = por %p97, %p98
    %p100 = scmp.ne.s32.totalorder %s89, %s90
    %p101 = scmp.eq.s32.totalorder %s15, 0
    %p102 = por %p100, %p101
    %p103 = scmp.ne.s32.totalorder %s89, %s90
    %p104 = scmp.eq.s32.totalorder %s16, 1
    %p105 = por %p103, %p104
    %p107 = scmp.ne.s32.totalorder %s90, %s106
    %p108 = scmp.eq.s32.totalorder %s16, 0
    %p109 = por %p107, %p108
    %s110 = ssub.s32 %s17, %s29
    %p111 = scmp.eq.s32.totalorder %s110, 0
    %s113 = sadd.s32 %s112, 1
    %s114 = scalar_select %p111, %s112, %s113
    %p117 = pneg %p111
    %p118 = scmp.eq.s32.totalorder %s10, 1
    %p119 = por %p117, %p118
    %p120 = scmp.ne.s32.totalorder %s112, %s115
    %p121 = scmp.eq.s32.totalorder %s10, 0
    %p122 = por %p120, %p121
    %p123 = scmp.ne.s32.totalorder %s112, %s115
    %p124 = scmp.eq.s32.totalorder %s15, 1
    %p125 = por %p123, %p124
    %p126 = scmp.ne.s32.totalorder %s115, %s116
    %p127 = scmp.eq.s32.totalorder %s15, 0
    %p128 = por %p126, %p127
    %p129 = scmp.ne.s32.totalorder %s115, %s116
    %p130 = scmp.eq.s32.totalorder %s16, 1
    %p131 = por %p129, %p130
    %p133 = scmp.ne.s32.totalorder %s116, %s132
    %p134 = scmp.eq.s32.totalorder %s16, 0
    %p135 = por %p133, %p134
    %s136 = ssub.s32 %s17, %s29
    %s137 = ssub.s32 %s18, %s25
    %s138 = sor.u32 %s136, %s137
    %p139 = scmp.eq.s32.totalorder %s138, 0
    %s141 = sadd.s32 %s140, 1
    %s142 = scalar_select %p139, %s140, %s141
    %p145 = pneg %p139
    %p146 = scmp.eq.s32.totalorder %s10, 1
    %p147 = por %p145, %p146
    %p148 = scmp.ne.s32.totalorder %s140, %s143
    %p149 = scmp.eq.s32.totalorder %s10, 0
    %p150 = por %p148, %p149
    %p151 = scmp.ne.s32.totalorder %s140, %s143
    %p152 = scmp.eq.s32.totalorder %s15, 1
    %p153 = por %p151, %p152
    %p154 = scmp.ne.s32.totalorder %s143, %s144
    %p155 = scmp.eq.s32.totalorder %s15, 0
    %p156 = por %p154, %p155
    %p157 = scmp.ne.s32.totalorder %s143, %s144
    %p158 = scmp.eq.s32.totalorder %s16, 1
    %p159 = por %p157, %p158
    %p161 = scmp.ne.s32.totalorder %s144, %s160
    %p162 = scmp.eq.s32.totalorder %s16, 0
    %p163 = por %p161, %p162
    %p164 = scmp.le.s32.totalorder 1, %s10
    %p165 = scmp.lt.s32.totalorder %s10, 3
    %p166 = pnand %p164, %p165
    %p167 = pneg %p166
    // Predicated region
    $region9: #{transformer_forward.15} parent=5 // pred_check
      _
    $region10: #{transformer_forward.15} parent=5 // pred_check_branch
      %169 = sbr.rel (%p166) target = $region12
    $region11: #{transformer_forward.15} parent=5 // pred_region
      %s170 = ssub.s32 %s10, 1
    $region12: #{transformer_forward.15} parent=5 // pred_fallthru
      _
    %p171 = scmp.lt.s32.totalorder %s10, 2
    // Predicated region
    $region13: #{transformer_forward.15} parent=5 // pred_check
      %p172 = pneg %p171
    $region14: #{transformer_forward.15} parent=5 // pred_check_branch
      %174 = sbr.rel (%p172) target = $region16
    $region15: #{transformer_forward.15} parent=5 // pred_region
      // Predicated region
      $region17: #{transformer_forward.15} parent=15 // pred_check
        %p175 = pneg %p42
      $region18: #{transformer_forward.15} parent=15 // pred_check_branch
        %177 = sbr.rel (%p175) target = $region20
      $region19: #{transformer_forward.15} parent=15 // pred_region
        %p178 = scmp.lt.s32.totalorder %s17, 1
        %s179 = scalar_select %p178, %s17, 1
        %s180 = scalar_lea.vmem %s0, %s179
      $region20: #{transformer_forward.15} parent=15 // pred_fallthru
        _
      // Predicated region
      $region21: #{transformer_forward.15} parent=15 // pred_check
        %p181 = pneg %p70
      $region22: #{transformer_forward.15} parent=15 // pred_check_branch
        %183 = sbr.rel (%p181) target = $region24
      $region23: #{transformer_forward.15} parent=15 // pred_region
        %p184 = scmp.lt.s32.totalorder %s17, 1
        %s185 = scalar_select %p184, %s17, 1
        %p186 = scmp.lt.s32.totalorder %s18, 0
        %s187 = scalar_select %p186, %s18, 0
        %s188 = smul.addr %s187, 3
        %s189 = smul.addr %s185, 3
        %s190 = sadd.s32 %s188, %s189
        %s191 = smul.addr %s190, 4
        %s192 = scalar_lea.vmem %s1, %s191
      $region24: #{transformer_forward.15} parent=15 // pred_fallthru
        _
      // Predicated region
      $region25: #{transformer_forward.15} parent=15 // pred_check
        %p193 = pneg %p96
      $region26: #{transformer_forward.15} parent=15 // pred_check_branch
        %195 = sbr.rel (%p193) target = $region28
      $region27: #{transformer_forward.15} parent=15 // pred_region
        %p196 = scmp.lt.s32.totalorder %s17, 1
        %s197 = scalar_select %p196, %s17, 1
        %s198 = smul.addr %s197, 3
        %s199 = sadd.s32 1, %s198
        %s200 = smul.addr %s199, 4
        %s201 = scalar_lea.vmem %s2, %s200
      $region28: #{transformer_forward.15} parent=15 // pred_fallthru
        _
      // Predicated region
      $region29: #{transformer_forward.15} parent=15 // pred_check
        %p202 = pneg %p122
      $region30: #{transformer_forward.15} parent=15 // pred_check_branch
        %204 = sbr.rel (%p202) target = $region32
      $region31: #{transformer_forward.15} parent=15 // pred_region
        %p205 = scmp.lt.s32.totalorder %s17, 1
        %s206 = scalar_select %p205, %s17, 1
        %s207 = smul.addr %s206, 3
        %s208 = sadd.s32 2, %s207
        %s209 = smul.addr %s208, 4
        %s210 = scalar_lea.vmem %s3, %s209
      $region32: #{transformer_forward.15} parent=15 // pred_fallthru
        _
    $region16: #{transformer_forward.15} parent=5 // pred_fallthru
      _
    %p211 = scmp.le.s32.totalorder 1, %s10
    %p212 = scmp.lt.s32.totalorder %s10, 3
    %p213 = pnand %p211, %p212
    %p214 = pneg %p213
    // Predicated region
    $region33: #{transformer_forward.15} parent=5 // pred_check
      _
    $region34: #{transformer_forward.15} parent=5 // pred_check_branch
      %216 = sbr.rel (%p213) target = $region36
    $region35: #{transformer_forward.15} parent=5 // pred_region
      %s217 = ssub.s32 %s10, 1
      %p218 = scmp.lt.s32.totalorder %s19, 1
      %s219 = scalar_select %p218, %s19, 1
      %s220 = scalar_lea.vmem %s0, %s219
      %p221 = pneg %p48
      %p222 = pneg %p45
      %p223 = scmp.lt.s32.totalorder %s19, 1
      %s224 = scalar_select %p223, %s19, 1
      %p225 = scmp.lt.s32.totalorder %s20, 0
      %s226 = scalar_select %p225, %s20, 0
      %s227 = smul.addr %s226, 3
      %s228 = smul.addr %s224, 3
      %s229 = sadd.s32 %s227, %s228
      %s230 = smul.addr %s229, 4
      %s231 = scalar_lea.vmem %s1, %s230
      %p232 = pneg %p76
      %p233 = pneg %p73
      %p234 = scmp.lt.s32.totalorder %s19, 1
      %s235 = scalar_select %p234, %s19, 1
      %s236 = smul.addr %s235, 3
      %s237 = sadd.s32 1, %s236
      %s238 = smul.addr %s237, 4
      %s239 = scalar_lea.vmem %s2, %s238
      %p240 = pneg %p102
      %p241 = pneg %p99
      %p242 = scmp.lt.s32.totalorder %s19, 1
      %s243 = scalar_select %p242, %s19, 1
      %s244 = smul.addr %s243, 3
      %s245 = sadd.s32 2, %s244
      %s246 = smul.addr %s245, 4
      %s247 = scalar_lea.vmem %s3, %s246
      %p248 = pneg %p128
      %p249 = pneg %p125
      %p250 = pneg %p156
      %p251 = pneg %p153
      %p252 = scmp.lt.s32.totalorder %s19, 1
      %s253 = scalar_select %p252, %s19, 1
      %p254 = scmp.lt.s32.totalorder %s20, 0
      %s255 = scalar_select %p254, %s20, 0
      %s256 = sadd.s32 %s255, %s253
      %s257 = smul.addr %s256, 4
      %s258 = scalar_lea.vmem %s4, %s257
      %p259 = scmp.lt.s32.totalorder %s19, 1
      %s260 = scalar_select %p259, %s19, 1
      %s261 = scalar_lea.vmem %s0, %s260
      %p262 = scmp.lt.s32.totalorder %s19, 1
      %s263 = scalar_select %p262, %s19, 1
      %p264 = scmp.lt.s32.totalorder %s20, 0
      %s265 = scalar_select %p264, %s20, 0
      %s266 = smul.addr %s265, 3
      %s267 = smul.addr %s263, 3
      %s268 = sadd.s32 %s266, %s267
      %s269 = smul.addr %s268, 4
      %s270 = scalar_lea.vmem %s1, %s269
      %p271 = scmp.lt.s32.totalorder %s19, 1
      %s272 = scalar_select %p271, %s19, 1
      %s273 = smul.addr %s272, 3
      %s274 = sadd.s32 1, %s273
      %s275 = smul.addr %s274, 4
      %s276 = scalar_lea.vmem %s2, %s275
      %p277 = scmp.lt.s32.totalorder %s19, 1
      %s278 = scalar_select %p277, %s19, 1
      %s279 = smul.addr %s278, 3
      %s280 = sadd.s32 2, %s279
      %s281 = smul.addr %s280, 4
      %s282 = scalar_lea.vmem %s3, %s281
      %p283 = scmp.lt.s32.totalorder %s19, 1
      %s284 = scalar_select %p283, %s19, 1
      %p285 = scmp.lt.s32.totalorder %s20, 0
      %s286 = scalar_select %p285, %s20, 0
      %s287 = sadd.s32 %s286, %s284
      %s288 = smul.addr %s287, 4
      %s289 = scalar_lea.vmem %s4, %s288
      %v291 = vld [vmem:[%s261] sm:$0x1]
      %v292 = vsub.f32 %v291, 1.0
      %v293 = vmul.f32 %v292, 1e+09
      %v294 = vld [vmem:[%s270] sm:$0xf]
      %v295 = vld [vmem:[%s276] sm:$0xf]
      %v296 = vld [vmem:[%s282] sm:$0xf]
      %vm297 = vcmask 261120
      %v299 = vsel %vm297, %v294, 0
      %v302 = vsel %vm297, %v295, 0
      %304 = vmatpush.bf16.xpose.msra.mxu0 0
      %305 = vmatpush.bf16.xpose.msra.mxu0 0
      %306 = vmatpush.bf16.xpose.msra.mxu0 0
      %307 = vmatpush.bf16.xpose.msra.mxu0 0
      %308 = vmatpush.bf16.xpose.msra.mxu0 0
      %309 = vmatpush.bf16.xpose.msra.mxu0 0
      %310 = vmatpush.bf16.xpose.msra.mxu0 0
      %311 = vmatpush.bf16.xpose.msra.mxu0 %v302
      %312 = vmatmul.bf16.gmra.mxu0 %v299
      %v313 = vpop.f32.mrf.mxu0
      %v314 = vadd.f32 0.0, %v313
      %v315 = vpop.f32.mrf.mxu0
      %316 = vdwg.mxu0
      %v317 = vmul.f32 %v314, 0.17677669
      %v319 = vperm.slane %v293, 0
      %v321 = vadd.f32 %v317, %v319
      %vm322 = vcmask 64512
      %v323 = vsel %vm322, %v321, -inf
      %324 = vmax.xlane.f32.xlu0 %v323
      %v325 = vpop.xlane.xlu0 %324
      %v326 = vsub.f32 %v321, %v325
      %v327 = vmul.f32 %v326, 1.442695
      %v328 = vpow.pop %v327
      %v329 = vsel %vm322, %v328, 0.0
      %330 = vadd.xlane.f32.xlu0 %v329
      %v331 = vpop.xlane.xlu0 %330
      %v332 = vrcp.pop %v331
      %v333 = vmul.f32 %v328, %v332
      %v334 = vpack.c.bf16 %v333, %v333
      %v336 = vsel %vm322, %v334, 0
      %vm338 = vcmask 1043456
      %v340 = vsel %vm338, %v296, 0
      %342 = vmatpush.bf16.msra.mxu0 0
      %343 = vmatpush.bf16.msra.mxu0 0
      %344 = vmatpush.bf16.msra.mxu0 0
      %345 = vmatpush.bf16.msra.mxu0 0
      %346 = vmatpush.bf16.msra.mxu0 0
      %347 = vmatpush.bf16.msra.mxu0 0
      %348 = vmatpush.bf16.msra.mxu0 0
      %349 = vmatpush.bf16.msra.mxu0 %v340
      %350 = vmatmul.bf16.gmra.mxu0 %v336
      %v351 = vpop.f32.mrf.mxu0
      %v352 = vadd.f32 0.0, %v351
      %v353 = vpop.f32.mrf.mxu0
      %354 = vdwg.mxu0
      %v355 = vpack.c.bf16 %v352, %v352
      %vm356 = vcmask 257024
      %357 = vst.msk [vmem:[%s289] sm:$0xf] %vm356, %v355
      %v359 = vunpack.c.l.b16 %v294
      %v360 = vpack.c.b16 %v359, %v359
      %361 = vrot.lane.b32.xlu0 %v360, 96
      %v362 = vpop.permute.xlu0 %361
      %v364 = vunpack.c.l.b16 %v295
      %v365 = vpack.c.b16 %v364, %v364
      %366 = vrot.lane.b32.xlu0 %v365, 96
      %v367 = vpop.permute.xlu0 %366
      %v369 = vsel %vm297, %v362, 0
      %v372 = vsel %vm297, %v367, 0
      %374 = vmatpush.bf16.xpose.msra.mxu0 0
      %375 = vmatpush.bf16.xpose.msra.mxu0 0
      %376 = vmatpush.bf16.xpose.msra.mxu0 0
      %377 = vmatpush.bf16.xpose.msra.mxu0 0
      %378 = vmatpush.bf16.xpose.msra.mxu0 0
      %379 = vmatpush.bf16.xpose.msra.mxu0 0
      %380 = vmatpush.bf16.xpose.msra.mxu0 0
      %381 = vmatpush.bf16.xpose.msra.mxu0 %v372
      %382 = vmatmul.bf16.gmra.mxu0 %v369
      %v383 = vpop.f32.mrf.mxu0
      %v384 = vadd.f32 0.0, %v383
      %v385 = vpop.f32.mrf.mxu0
      %386 = vdwg.mxu0
      %v387 = vmul.f32 %v384, 0.17677669
      %v388 = vadd.f32 %v387, %v319
      %v389 = vsel %vm322, %v388, -inf
      %390 = vmax.xlane.f32.xlu0 %v389
      %v391 = vpop.xlane.xlu0 %390
      %v392 = vsub.f32 %v388, %v391
      %v393 = vmul.f32 %v392, 1.442695
      %v394 = vpow.pop %v393
      %v395 = vsel %vm322, %v394, 0.0
      %396 = vadd.xlane.f32.xlu0 %v395
      %v397 = vpop.xlane.xlu0 %396
      %v398 = vrcp.pop %v397
      %v399 = vmul.f32 %v394, %v398
      %v400 = vpack.c.bf16 %v399, %v399
      %v402 = vunpack.c.l.b16 %v296
      %v403 = vpack.c.b16 %v402, %v402
      %404 = vrot.lane.b32.xlu0 %v403, 96
      %v405 = vpop.permute.xlu0 %404
      %v407 = vsel %vm322, %v400, 0
      %v410 = vsel %vm338, %v405, 0
      %412 = vmatpush.bf16.msra.mxu0 0
      %413 = vmatpush.bf16.msra.mxu0 0
      %414 = vmatpush.bf16.msra.mxu0 0
      %415 = vmatpush.bf16.msra.mxu0 0
      %416 = vmatpush.bf16.msra.mxu0 0
      %417 = vmatpush.bf16.msra.mxu0 0
      %418 = vmatpush.bf16.msra.mxu0 0
      %419 = vmatpush.bf16.msra.mxu0 %v410
      %420 = vmatmul.bf16.gmra.mxu0 %v407
      %v421 = vpop.f32.mrf.mxu0
      %v422 = vadd.f32 0.0, %v421
      %v423 = vpop.f32.mrf.mxu0
      %424 = vdwg.mxu0
      %v425 = vpack.c.bf16 %v422, %v422
      %427 = vrot.lane.b32.xlu0 %v425, 32
      %v428 = vpop.permute.xlu0 %427
      %vm430 = vcmask 519424
      %431 = vst.msk [vmem:[%s289] sm:$0xf] %vm430, %v428
      %432 = vrot.lane.b32.xlu0 %v360, 64
      %v433 = vpop.permute.xlu0 %432
      %434 = vrot.lane.b32.xlu0 %v365, 64
      %v435 = vpop.permute.xlu0 %434
      %v437 = vsel %vm297, %v433, 0
      %v440 = vsel %vm297, %v435, 0
      %442 = vmatpush.bf16.xpose.msra.mxu0 0
      %443 = vmatpush.bf16.xpose.msra.mxu0 0
      %444 = vmatpush.bf16.xpose.msra.mxu0 0
      %445 = vmatpush.bf16.xpose.msra.mxu0 0
      %446 = vmatpush.bf16.xpose.msra.mxu0 0
      %447 = vmatpush.bf16.xpose.msra.mxu0 0
      %448 = vmatpush.bf16.xpose.msra.mxu0 0
      %449 = vmatpush.bf16.xpose.msra.mxu0 %v440
      %450 = vmatmul.bf16.gmra.mxu0 %v437
      %v451 = vpop.f32.mrf.mxu0
      %v452 = vadd.f32 0.0, %v451
      %v453 = vpop.f32.mrf.mxu0
      %454 = vdwg.mxu0
      %v455 = vmul.f32 %v452, 0.17677669
      %v456 = vadd.f32 %v455, %v319
      %v457 = vsel %vm322, %v456, -inf
      %458 = vmax.xlane.f32.xlu0 %v457
      %v459 = vpop.xlane.xlu0 %458
      %v460 = vsub.f32 %v456, %v459
      %v461 = vmul.f32 %v460, 1.442695
      %v462 = vpow.pop %v461
      %v463 = vsel %vm322, %v462, 0.0
      %464 = vadd.xlane.f32.xlu0 %v463
      %v465 = vpop.xlane.xlu0 %464
      %v466 = vrcp.pop %v465
      %v467 = vmul.f32 %v462, %v466
      %v468 = vpack.c.bf16 %v467, %v467
      %469 = vrot.lane.b32.xlu0 %v403, 64
      %v470 = vpop.permute.xlu0 %469
      %v472 = vsel %vm322, %v468, 0
      %v475 = vsel %vm338, %v470, 0
      %477 = vmatpush.bf16.msra.mxu0 0
      %478 = vmatpush.bf16.msra.mxu0 0
      %479 = vmatpush.bf16.msra.mxu0 0
      %480 = vmatpush.bf16.msra.mxu0 0
      %481 = vmatpush.bf16.msra.mxu0 0
      %482 = vmatpush.bf16.msra.mxu0 0
      %483 = vmatpush.bf16.msra.mxu0 0
      %484 = vmatpush.bf16.msra.mxu0 %v475
      %485 = vmatmul.bf16.gmra.mxu0 %v472
      %v486 = vpop.f32.mrf.mxu0
      %v487 = vadd.f32 0.0, %v486
      %v488 = vpop.f32.mrf.mxu0
      %489 = vdwg.mxu0
      %v490 = vpack.c.bf16 %v487, %v487
      %492 = vrot.lane.b32.xlu0 %v490, 64
      %v493 = vpop.permute.xlu0 %492
      %vm495 = vcmask 781824
      %496 = vst.msk [vmem:[%s289] sm:$0xf] %vm495, %v493
      %497 = vrot.lane.b32.xlu0 %v360, 32
      %v498 = vpop.permute.xlu0 %497
      %499 = vrot.lane.b32.xlu0 %v365, 32
      %v500 = vpop.permute.xlu0 %499
      %v502 = vsel %vm297, %v498, 0
      %v505 = vsel %vm297, %v500, 0
      %507 = vmatpush.bf16.xpose.msra.mxu0 0
      %508 = vmatpush.bf16.xpose.msra.mxu0 0
      %509 = vmatpush.bf16.xpose.msra.mxu0 0
      %510 = vmatpush.bf16.xpose.msra.mxu0 0
      %511 = vmatpush.bf16.xpose.msra.mxu0 0
      %512 = vmatpush.bf16.xpose.msra.mxu0 0
      %513 = vmatpush.bf16.xpose.msra.mxu0 0
      %514 = vmatpush.bf16.xpose.msra.mxu0 %v505
      %515 = vmatmul.bf16.gmra.mxu0 %v502
      %v516 = vpop.f32.mrf.mxu0
      %v517 = vadd.f32 0.0, %v516
      %v518 = vpop.f32.mrf.mxu0
      %519 = vdwg.mxu0
      %v520 = vmul.f32 %v517, 0.17677669
      %v521 = vadd.f32 %v520, %v319
      %v522 = vsel %vm322, %v521, -inf
      %523 = vmax.xlane.f32.xlu0 %v522
      %v524 = vpop.xlane.xlu0 %523
      %v525 = vsub.f32 %v521, %v524
      %v526 = vmul.f32 %v525, 1.442695
      %v527 = vpow.pop %v526
      %v528 = vsel %vm322, %v527, 0.0
      %529 = vadd.xlane.f32.xlu0 %v528
      %v530 = vpop.xlane.xlu0 %529
      %v531 = vrcp.pop %v530
      %v532 = vmul.f32 %v527, %v531
      %v533 = vpack.c.bf16 %v532, %v532
      %534 = vrot.lane.b32.xlu0 %v403, 32
      %v535 = vpop.permute.xlu0 %534
      %v537 = vsel %vm322, %v533, 0
      %v540 = vsel %vm338, %v535, 0
      %542 = vmatpush.bf16.msra.mxu0 0
      %543 = vmatpush.bf16.msra.mxu0 0
      %544 = vmatpush.bf16.msra.mxu0 0
      %545 = vmatpush.bf16.msra.mxu0 0
      %546 = vmatpush.bf16.msra.mxu0 0
      %547 = vmatpush.bf16.msra.mxu0 0
      %548 = vmatpush.bf16.msra.mxu0 0
      %549 = vmatpush.bf16.msra.mxu0 %v540
      %550 = vmatmul.bf16.gmra.mxu0 %v537
      %v551 = vpop.f32.mrf.mxu0
      %v552 = vadd.f32 0.0, %v551
      %v553 = vpop.f32.mrf.mxu0
      %554 = vdwg.mxu0
      %v555 = vpack.c.bf16 %v552, %v552
      %557 = vrot.lane.b32.xlu0 %v555, 96
      %v558 = vpop.permute.xlu0 %557
      %vm560 = vcmask 1044224
      %561 = vst.msk [vmem:[%s289] sm:$0xf] %vm560, %v558
      %p562 = scmp.lt.s32.totalorder %s19, 1
      %s563 = scalar_select %p562, %s19, 1
      %p564 = scmp.lt.s32.totalorder %s20, 0
      %s565 = scalar_select %p564, %s20, 0
      %s566 = sadd.s32 %s565, %s563
      %s567 = smul.addr %s566, 4
      %s568 = scalar_lea.vmem %s4, %s567
      // Predicated region
      $region37: #{transformer_forward.15} parent=35 // pred_check
        %p569 = pneg %p153
      $region38: #{transformer_forward.15} parent=35 // pred_check_branch
        %571 = sbr.rel (%p569) target = $region40
      $region39: #{transformer_forward.15} parent=35 // pred_region
        _
      $region40: #{transformer_forward.15} parent=35 // pred_fallthru
        _
    $region36: #{transformer_forward.15} parent=5 // pred_fallthru
      _
    %p572 = scmp.le.s32.totalorder 2, %s10
    // Predicated region
    $region41: #{transformer_forward.15} parent=5 // pred_check
      %p573 = pneg %p572
    $region42: #{transformer_forward.15} parent=5 // pred_check_branch
      %575 = sbr.rel (%p573) target = $region44
    $region43: #{transformer_forward.15} parent=5 // pred_region
      %s576 = ssub.s32 %s10, 2
      // Predicated region
      $region45: #{transformer_forward.15} parent=43 // pred_check
        %p577 = pneg %p159
      $region46: #{transformer_forward.15} parent=43 // pred_check_branch
        %579 = sbr.rel (%p577) target = $region48
      $region47: #{transformer_forward.15} parent=43 // pred_region
        %p580 = scmp.lt.s32.totalorder %s21, 1
        %s581 = scalar_select %p580, %s21, 1
        %p582 = scmp.lt.s32.totalorder %s22, 0
        %s583 = scalar_select %p582, %s22, 0
        %s584 = sadd.s32 %s583, %s581
        %s585 = smul.addr %s584, 4
        %s586 = scalar_lea.vmem %s4, %s585
      $region48: #{transformer_forward.15} parent=43 // pred_fallthru
        _
    $region44: #{transformer_forward.15} parent=5 // pred_fallthru
      _
  $region6: #{transformer_forward.15} parent=0 // loop_footer
    %s14 = sadd.s32 1, %s10
  $region7: #{transformer_forward.15} parent=0 // loop_footer_branch
    %9 = sbr.rel target = $region3
  $region8: #{transformer_forward.15} parent=0 // loop_exit
    _

// kernel: transformer_forward.17
$region0: #{transformer_forward.17}
  #allocation0 [shape = 'u32[]', space=smem, size = 0x4, offset = 0x4, fixed_abs, tag = 'smem constant byte address 0x4 - core index']
  #allocation1 [shape = 'u32[72,128]{1,0:T(1,128)}', space=vmem, size = 0x9000, scoped, tag = 'internal scratch']
  %s0 = inlined_call_operand.vmem [shape: bf16[2,8,32], index: 0, kind: input, shape index: {}]
  %s1 = inlined_call_operand.vmem [shape: f32[2,8,1], index: 1, kind: input, shape index: {}]
  %s2 = inlined_call_operand.vmem [shape: f32[32,3], index: 2, kind: input, shape index: {}]
  %s3 = inlined_call_operand.vmem [shape: f32[1,3], index: 3, kind: input, shape index: {}]
  %s4 = inlined_call_operand.hbm [shape: f32[2,3], index: 4, kind: output, shape index: {}]
  %s5 = sld [smem:[#allocation0]]
  $region26: #{transformer_forward.17} parent=0
    _
  %s7 = ssub.s32 1, %s5
  %s8 = scalar_select 0, %s7, %s5
  $region1: #{transformer_forward.17} parent=0
    #allocation2 [shape = 'u8[1024]{0}', space=vmem, size = 0x400, scoped, tag = 'output window, operand 0, single buffered']
    #allocation3 [shape = 's32[1]{0}', space=sflag, size = 0x4, scoped, tag = 'scoped memory for transformer_forward.17']
    %9 = vsyncpa [#allocation3], 0
    // Predicated region
    $region2: #{transformer_forward.17} parent=1 // pred_check
      _
    $region3: #{transformer_forward.17} parent=1 // pred_check_branch
      %11 = sbr.rel (0) target = $region5
    $region4: #{transformer_forward.17} parent=1 // pred_region
      _
    $region5: #{transformer_forward.17} parent=1 // pred_fallthru
      _
    // Predicated region
    $region6: #{transformer_forward.17} parent=1 // pred_check
      _
    $region7: #{transformer_forward.17} parent=1 // pred_check_branch
      %13 = sbr.rel (0) target = $region9
    $region8: #{transformer_forward.17} parent=1 // pred_region
      _
    $region9: #{transformer_forward.17} parent=1 // pred_fallthru
      _
    // Predicated region
    $region10: #{transformer_forward.17} parent=1 // pred_check
      _
    $region11: #{transformer_forward.17} parent=1 // pred_check_branch
      %15 = sbr.rel (0) target = $region13
    $region12: #{transformer_forward.17} parent=1 // pred_region
      _
    $region13: #{transformer_forward.17} parent=1 // pred_fallthru
      _
    // Predicated region
    $region14: #{transformer_forward.17} parent=1 // pred_check
      _
    $region15: #{transformer_forward.17} parent=1 // pred_check_branch
      %17 = sbr.rel (0) target = $region17
    $region16: #{transformer_forward.17} parent=1 // pred_region
      _
    $region17: #{transformer_forward.17} parent=1 // pred_fallthru
      _
    %v18 = vld [vmem:[%s0] sm:$0xf]
    %v19 = vld [vmem:[%s0 + $0x4] sm:$0xf]
    %v20 = vunpack.c.l.bf16 %v18
    %v21 = vunpack.c.l.bf16 %v19
    %v22 = vld [vmem:[%s1] sm:$0xff]
    %v23 = vld [vmem:[%s1 + $0x8] sm:$0xff]
    %vm24 = vcmask 7168
    %v25 = vsel %vm24, %v22, 0.0
    %v26 = vrot.slane %v25, 4
    %v27 = vadd.f32 %v25, %v26
    %v28 = vrot.slane %v27, 2
    %v29 = vadd.f32 %v27, %v28
    %v30 = vrot.slane %v29, 1
    %v31 = vadd.f32 %v29, %v30
    %v32 = vsel %vm24, %v23, 0.0
    %v33 = vrot.slane %v32, 4
    %v34 = vadd.f32 %v32, %v33
    %v35 = vrot.slane %v34, 2
    %v36 = vadd.f32 %v34, %v35
    %v37 = vrot.slane %v36, 1
    %v38 = vadd.f32 %v36, %v37
    %40 = vset.pattern.permute.xlu0 0
    %41 = vperm.xlu0 %40, %v22
    %v42 = vpop.permute.xlu0 %41
    %45 = vset.pattern.permute.xlu0 0
    %46 = vperm.xlu0 %45, %v23
    %v47 = vpop.permute.xlu0 %46
    %v49 = vmul.f32 %v20, %v42
    %v50 = vmul.f32 %v21, %v47
    %vm51 = vcmask 261120
    %v52 = vsel %vm51, %v49, 0.0
    %v53 = vrot.slane %v52, 4
    %v54 = vadd.f32 %v52, %v53
    %v55 = vrot.slane %v54, 2
    %v56 = vadd.f32 %v54, %v55
    %v57 = vrot.slane %v56, 1
    %v58 = vadd.f32 %v56, %v57
    %v59 = vsel %vm51, %v50, 0.0
    %v60 = vrot.slane %v59, 4
    %v61 = vadd.f32 %v59, %v60
    %v62 = vrot.slane %v61, 2
    %v63 = vadd.f32 %v61, %v62
    %v64 = vrot.slane %v63, 1
    %v65 = vadd.f32 %v63, %v64
    %67 = vset.pattern.permute.xlu0 0
    %68 = vperm.xlu0 %67, %v31
    %v69 = vpop.permute.xlu0 %68
    %72 = vset.pattern.permute.xlu0 0
    %73 = vperm.xlu0 %72, %v38
    %v74 = vpop.permute.xlu0 %73
    %v76 = vrcp.pop %v69
    %v77 = vmul.f32 %v69, %v76
    %v78 = vsub.f32 1.0, %v77
    %v79 = vmul.f32 %v76, %v78
    %v80 = vadd.f32 %v76, %v79
    %vm81 = vweird.f32 %v69
    %vm82 = vweird.f32 %v76
    %vm83 = vmor %vm81, %vm82
    %v84 = vsel %vm83, %v76, %v80
    %v85 = vand.u32 2147483647, %v69
    %vm86 = vcmp.eq.f32.partialorder %v85, 8.507059e+37
    %v87 = vand.u32 %v69, 2147483648
    %v88 = vor.u32 1.1754944e-38, %v87
    %v89 = vsel %vm86, %v88, %v84
    %v90 = vmul.f32 %v58, %v89
    %v91 = vrcp.pop %v74
    %v92 = vmul.f32 %v74, %v91
    %v93 = vsub.f32 1.0, %v92
    %v94 = vmul.f32 %v91, %v93
    %v95 = vadd.f32 %v91, %v94
    %vm96 = vweird.f32 %v74
    %vm97 = vweird.f32 %v91
    %vm98 = vmor %vm96, %vm97
    %v99 = vsel %vm98, %v91, %v95
    %v100 = vand.u32 2147483647, %v74
    %vm101 = vcmp.eq.f32.partialorder %v100, 8.507059e+37
    %v102 = vand.u32 %v74, 2147483648
    %v103 = vor.u32 1.1754944e-38, %v102
    %v104 = vsel %vm101, %v103, %v99
    %v105 = vmul.f32 %v65, %v104
    %v106 = vld [vmem:[%s2] sm:$0xff]
    %v107 = vld [vmem:[%s2 + $0x8] sm:$0xff]
    %v108 = vld [vmem:[%s2 + $0x10] sm:$0xff]
    %v109 = vld [vmem:[%s2 + $0x18] sm:$0xff]
    %v110 = vld [vmem:[%s3] sm:$0x1]
    %v112 = vperm.slane %v110, 0
    %vm116 = vcmask 1041409
    %v117 = vsel %vm116, %v105, %v90
    %v118 = vsel %vm51, %v117, 0
    %120 = vmatpush.msra.mxu0 0.0
    %121 = vmatpush.msra.mxu0 0.0
    %122 = vmatpush.msra.mxu0 0.0
    %123 = vmatpush.msra.mxu0 0.0
    %124 = vmatpush.msra.mxu0 0.0
    %125 = vmatpush.msra.mxu0 0.0
    %126 = vmatpush.msra.mxu0 0.0
    %127 = vmatpush.msra.mxu0 0.0
    %128 = vmatpush.msra.mxu0 0.0
    %129 = vmatpush.msra.mxu0 0.0
    %130 = vmatpush.msra.mxu0 0.0
    %131 = vmatpush.msra.mxu0 0.0
    %132 = vmatpush.msra.mxu0 %v109
    %133 = vmatpush.msra.mxu0 %v108
    %134 = vmatpush.msra.mxu0 %v107
    %135 = vmatpush.msra.mxu0 %v106
    %136 = vmatmul.f32.gmra.mxu0 %v118
    %v137 = vpop.f32.mrf.mxu0
    %v138 = vadd.f32 %v112, %v137
    %139 = vdwg.mxu0
    %vm140 = vcmask 17408
    %141 = vst.msk [vmem:[#allocation2] sm:$0x3] %vm140, %v138
    // Predicated region
    $region18: #{transformer_forward.17} parent=1 // pred_check
      _
    $region19: #{transformer_forward.17} parent=1 // pred_check_branch
      %143 = sbr.rel (0) target = $region21
    $region20: #{transformer_forward.17} parent=1 // pred_region
      %145 = vsyncadd [#allocation3], 0
      %s147 = sshll.u32 [#allocation2], 4
      %s148 = int_to_ptr.vmem [resolvable:$true] %s147
      %s149 = sshll.u32 %s4, 4
      %s150 = int_to_ptr.hbm [resolvable:$true] %s149
      %152 = dma.vmem_to_hbm [thread:$0]  %s148, 32, %s150, [#allocation3]
    $region21: #{transformer_forward.17} parent=1 // pred_fallthru
      _
    // Predicated region
    $region22: #{transformer_forward.17} parent=1 // pred_check
      _
    $region23: #{transformer_forward.17} parent=1 // pred_check_branch
      %154 = sbr.rel (0) target = $region25
    $region24: #{transformer_forward.17} parent=1 // pred_region
      %156 = dma.done [#allocation3], 32
    $region25: #{transformer_forward.17} parent=1 // pred_fallthru
      _
    %157 = vsyncpa [#allocation3], 1

</llo_original>
